<compile_context>
chip_gen: v7x
topology: tpu7x:2x2x1
jax: 0.10.0
libtpu: 0.0.40
codegen_flags: <defaults>
</compile_context>

<pallas_src>
import functools

import jax
import jax.numpy as jnp
from jax.experimental import pallas as pl
from jax.experimental.pallas import tpu as pltpu


def _shifted_w_taps(a):
    """(left, center, right) column-shifted copies with replicate edges.

    a: (rows, W, C).  left[:, w] = a[:, max(w-1, 0)], right[:, w] = a[:, min(w+1, W-1)].
    Two single-column concats total (results stay W-wide / sublane aligned); all 9 conv
    taps are then slices along the untiled row axis only.
    """
    left = jnp.concatenate([a[:, :1, :], a[:, :-1, :]], axis=1)
    right = jnp.concatenate([a[:, 1:, :], a[:, -1:, :]], axis=1)
    return (left, a, right)


def _accum_conv3x3(col_taps, w, *, row_start, rows, row_step, cols, col_step):
    """3x3 conv as 9 accumulated MXU dots -> (rows*cols, Cout) f32 accumulator.

    col_taps: (left, center, right) bases, each (R, W, Cin), already column-shifted.
    w:        (3, 3, Cin, Cout) loaded weight value.
    Output pixel (lo, wo) reads base row row_start + lo*row_step + ky and column
    wo*col_step, i.e. stride>1 is applied before the matmul, not by decimation after.
    """
    cout = w.shape[-1]
    acc = jnp.zeros((rows * cols, cout), jnp.float32)
    col_sl = slice(0, (cols - 1) * col_step + 1, col_step)
    for ky in range(3):
        row_sl = slice(row_start + ky,
                       row_start + ky + (rows - 1) * row_step + 1,
                       row_step)
        for kx in range(3):
            tap = col_taps[kx][row_sl, col_sl, :]
            acc = acc + jnp.dot(tap.reshape(rows * cols, tap.shape[-1]),
                                w[ky, kx],
                                preferred_element_type=jnp.float32)
    return acc


def _inception_kernel(x_ref, w1a_ref, w2a_ref, w1b_ref, o_ref, *, tile_h, stride):
    """Fused InceptionBlock for one (batch, H-row-tile) grid step.

    x_ref:   (H+4, W, Cin)  bf16, replicate pre-padded by 2 rows top/bottom (batch squeezed)
    w*_ref:  (3, 3, Cin, Cout) bf16
    o_ref:   (TH//stride, Wout, planes)  = [conv2a(conv1a(x)) | conv1b(x)]
    """
    th, s = tile_h, stride
    _, w_dim, _ = x_ref.shape
    tho, wout, planes = o_ref.shape

    t = pl.program_id(1)
    r0 = pl.multiple_of(t * th, th)

    # (TH+4)-row slab = image rows r0-2 .. r0+TH+1 (halo comes from the wrapper pre-pad,
    # so this is always a plain in-bounds slice).
    xs = x_ref[pl.ds(r0, th + 4), :, :]
    x_taps = _shifted_w_taps(xs)

    w1a = w1a_ref[...]
    w2a = w2a_ref[...]
    w1b = w1b_ref[...]

    # ---- stage 1: conv1a, stride 1, over TH+2 rows (1-row halo for conv2a) ----
    y1 = _accum_conv3x3(x_taps, w1a, row_start=0, rows=th + 2, row_step=1,
                        cols=w_dim, col_step=1).reshape(th + 2, w_dim, -1)

    # At the true image borders the halo row of y1 must be the *replicated* edge row of
    # y1 (a conv over doubly-replicated x is not the same thing).  Interior tiles use
    # real neighbor rows and are untouched.
    row = jax.lax.broadcasted_iota(jnp.int32, (th + 2, 1, 1), 0)
    y1 = jnp.where((t == 0) & (row == 0), y1[1:2], y1)
    y1 = jnp.where((t == pl.num_programs(1) - 1) & (row == th + 1), y1[th:th + 1], y1)

    # bf16 intermediate for the second MXU pass (review: widen tolerance vs f32 ref).
    y1_taps = _shifted_w_taps(y1.astype(x_ref.dtype))

    # ---- stage 2 (conv2a on VMEM-resident y1) + branch b (conv1b), strided taps ----
    acc_a = _accum_conv3x3(y1_taps, w2a, row_start=0, rows=tho, row_step=s,
                           cols=wout, col_step=s)
    acc_b = _accum_conv3x3(x_taps, w1b, row_start=1, rows=tho, row_step=s,
                           cols=wout, col_step=s)

    # Channel order matches torch.cat((conv2a(conv1a(x)), conv1b(x)), dim=1).
    out = jnp.concatenate([acc_a, acc_b], axis=-1)            # (tho*wout, planes)
    o_ref[...] = out.reshape(tho, wout, planes).astype(o_ref.dtype)


def _vmem_limit_bytes():
    """Per-generation scoped-VMEM budget (v5e/v6e: 128 MiB physical, v7x: 64 MiB/TC)."""
    try:
        kind = jax.devices()[0].device_kind.lower()
    except Exception:
        kind = ""
    if "v5 lite" in kind or "v5e" in kind or "v6" in kind:
        return 96 * 1024 * 1024
    return 48 * 1024 * 1024


@functools.partial(jax.jit, static_argnames=("stride", "block_h"))
def inception_block(x_nchw, params, stride=1, block_h=8):
    """Forward pass of InceptionBlock. Input/output are NCHW (PyTorch layout)."""
    w1a, w2a, w1b = params["conv1a"], params["conv2a"], params["conv1b"]
    N, cin, H, W = x_nchw.shape
    planes = w1a.shape[-1]
    half = planes // 2
    hout = (H - 1) // stride + 1
    wout = (W - 1) // stride + 1

    # H-row tile: must divide H and be a multiple of the stride.
    if block_h and H % block_h == 0 and block_h % stride == 0 and H % stride == 0:
        th = block_h
    else:
        th = H                      # TODO(synk): ragged last tile for odd H / stride
    n_t = H // th
    tho = th // stride if n_t > 1 else hout

    # Layout glue + operand prep (one fused XLA pass): NCHW -> NHWC, bf16 operands for
    # the native MXU path, replicate pre-pad of H by 2 rows (1 conv pad + 1 halo row).
    x = jnp.transpose(x_nchw, (0, 2, 3, 1)).astype(jnp.bfloat16)
    x = jnp.pad(x, ((0, 0), (2, 2), (0, 0), (0, 0)), mode="edge")

    kern = functools.partial(_inception_kernel, tile_h=th, stride=stride)

    out_nhwc = pl.pallas_call(
        kern,
        out_shape=jax.ShapeDtypeStruct((N, hout, wout, planes), x_nchw.dtype),
        grid_spec=pltpu.PrefetchScalarGridSpec(
            num_scalar_prefetch=0,
            grid=(N, n_t),
            in_specs=[
                # Full padded image per batch element; row tiles slice it in-kernel
                # (block index ignores t, so it is DMA'd once per batch element).
                pl.BlockSpec((None, H + 4, W, cin), lambda b, t: (b, 0, 0, 0)),
                pl.BlockSpec((3, 3, cin, planes), lambda b, t: (0, 0, 0, 0)),
                pl.BlockSpec((3, 3, planes, half), lambda b, t: (0, 0, 0, 0)),
                pl.BlockSpec((3, 3, cin, half), lambda b, t: (0, 0, 0, 0)),
            ],
            out_specs=pl.BlockSpec((None, tho, wout, planes),
                                   lambda b, t: (b, t, 0, 0)),
        ),
        compiler_params=pltpu.CompilerParams(
            # Batch AND row tiles are independent -> megacore can split either axis.
            dimension_semantics=("parallel", "parallel"),
            vmem_limit_bytes=_vmem_limit_bytes(),
        ),
    )(x,
      w1a.astype(jnp.bfloat16),
      w2a.astype(jnp.bfloat16),
      w1b.astype(jnp.bfloat16))

    return jnp.transpose(out_nhwc, (0, 3, 1, 2))  # NHWC -> NCHW


def init_inception_params(key, inplanes, planes):
    k1, k2, k3 = jax.random.split(key, 3)
    half = planes // 2
    # weights stored as (kh, kw, Cin, Cout) (HWIO) for the NHWC kernel
    return {
        "conv1a": 0.1 * jax.random.normal(k1, (3, 3, inplanes, planes), jnp.float32),
        "conv2a": 0.1 * jax.random.normal(k2, (3, 3, planes, half), jnp.float32),
        "conv1b": 0.1 * jax.random.normal(k3, (3, 3, inplanes, half), jnp.float32),
    }


# ----- pure-JAX reference (for correctness check only) -----
def _conv3x3_ref(x_nhwc, w, *, stride=1):
    # PyTorch conv3x3: kernel=3, padding=1, padding_mode='replicate', bias=False
    xpad = jnp.pad(x_nhwc, ((0, 0), (1, 1), (1, 1), (0, 0)), mode="edge")
    return jax.lax.conv_general_dilated(
        xpad, w,
        window_strides=(stride, stride),
        padding="VALID",
        dimension_numbers=("NHWC", "HWIO", "NHWC"),
    )


def _inception_ref(x_nchw, params, *, stride=1):
    x = jnp.transpose(x_nchw, (0, 2, 3, 1))
    y1 = _conv3x3_ref(x, params["conv1a"], stride=1)
    ya = _conv3x3_ref(y1, params["conv2a"], stride=stride)
    yb = _conv3x3_ref(x, params["conv1b"], stride=stride)
    y = jnp.concatenate([ya, yb], axis=-1)
    return jnp.transpose(y, (0, 3, 1, 2))


if __name__ == "__main__":
    inplanes, planes, stride = 4, 8, 1
    N, H, W = 2, 16, 16
    hout = (H - 1) // stride + 1
    wout = (W - 1) // stride + 1

    key = jax.random.PRNGKey(0)
    kx_, kp = jax.random.split(key)
    x = jax.random.normal(kx_, (N, inplanes, H, W), jnp.float32)  # NCHW like PyTorch
    params = init_inception_params(kp, inplanes, planes)

    out = inception_block(x, params, stride=stride, block_h=8)
    out = jax.block_until_ready(out)
    assert out.shape == (N, planes, hout, wout), out.shape

    # Reference uses bf16-rounded operands with f32 math (the kernel intentionally
    # feeds the MXU bf16); tolerance covers the bf16 conv1a->conv2a intermediate.
    rnd = lambda a: a.astype(jnp.bfloat16).astype(jnp.float32)
    ref = _inception_ref(rnd(x), {k: rnd(v) for k, v in params.items()}, stride=stride)
    err = float(jnp.max(jnp.abs(out - ref)))
    assert jnp.allclose(out, ref, atol=2e-2, rtol=2e-2), err

    print("KERNEL_OK")
</pallas_src>

<mosaic_0001>
module attributes {stable_mosaic.version = 11 : i64} {
  func.func @_inception_kernel(%arg0: i32, %arg1: i32, %arg2: memref<1x20x16x4xbf16, #tpu.memory_space<vmem>>, %arg3: memref<3x3x4x8xbf16, #tpu.memory_space<vmem>>, %arg4: memref<3x3x8x4xbf16, #tpu.memory_space<vmem>>, %arg5: memref<3x3x4x4xbf16, #tpu.memory_space<vmem>>, %arg6: memref<1x8x16x8xf32, #tpu.memory_space<vmem>>) attributes {dimension_semantics = [#tpu.dimension_semantics<parallel>, #tpu.dimension_semantics<parallel>], iteration_bounds = array<i64: 2, 2>, scalar_prefetch = 0 : i64, scratch_operands = 0 : i64, tpu.core_type = #tpu.core_type<tc>, window_params = [{transform_indices = @transform_0, window_bounds = array<i64: 1, 20, 16, 4>}, {pipeline_mode = #tpu.pipeline_mode<synchronous>, transform_indices = @transform_1, window_bounds = array<i64: 3, 3, 4, 8>}, {pipeline_mode = #tpu.pipeline_mode<synchronous>, transform_indices = @transform_2, window_bounds = array<i64: 3, 3, 8, 4>}, {pipeline_mode = #tpu.pipeline_mode<synchronous>, transform_indices = @transform_3, window_bounds = array<i64: 3, 3, 4, 4>}, {transform_indices = @transform_4, window_bounds = array<i64: 1, 8, 16, 8>}]} {
    %c8_i32 = arith.constant 8 : i32
    %0 = arith.muli %arg1, %c8_i32 : i32
    %1 = tpu.assume_multiple %0, 8 : i32
    %c0 = arith.constant 0 : index
    %2 = arith.index_cast %1 : i32 to index
    %c0_0 = arith.constant 0 : index
    %c0_1 = arith.constant 0 : index
    %3 = vector.load %arg2[%c0, %2, %c0_0, %c0_1] : memref<1x20x16x4xbf16, #tpu.memory_space<vmem>>, vector<1x12x16x4xbf16>
    %4 = vector.shape_cast %3 : vector<1x12x16x4xbf16> to vector<12x16x4xbf16>
    %5 = vector.extract_strided_slice %4 {offsets = [0, 0, 0], sizes = [12, 1, 4], strides = [1, 1, 1]} : vector<12x16x4xbf16> to vector<12x1x4xbf16>
    %6 = vector.extract_strided_slice %4 {offsets = [0, 0, 0], sizes = [12, 15, 4], strides = [1, 1, 1]} : vector<12x16x4xbf16> to vector<12x15x4xbf16>
    %7 = tpu.concatenate %5, %6 in 1 : vector<12x1x4xbf16>, vector<12x15x4xbf16> -> vector<12x16x4xbf16>
    %8 = vector.extract_strided_slice %4 {offsets = [0, 1, 0], sizes = [12, 15, 4], strides = [1, 1, 1]} : vector<12x16x4xbf16> to vector<12x15x4xbf16>
    %9 = vector.extract_strided_slice %4 {offsets = [0, 15, 0], sizes = [12, 1, 4], strides = [1, 1, 1]} : vector<12x16x4xbf16> to vector<12x1x4xbf16>
    %10 = tpu.concatenate %8, %9 in 1 : vector<12x15x4xbf16>, vector<12x1x4xbf16> -> vector<12x16x4xbf16>
    %c0_2 = arith.constant 0 : index
    %c0_3 = arith.constant 0 : index
    %c0_4 = arith.constant 0 : index
    %c0_5 = arith.constant 0 : index
    %11 = vector.load %arg3[%c0_2, %c0_3, %c0_4, %c0_5] : memref<3x3x4x8xbf16, #tpu.memory_space<vmem>>, vector<3x3x4x8xbf16>
    %c0_6 = arith.constant 0 : index
    %c0_7 = arith.constant 0 : index
    %c0_8 = arith.constant 0 : index
    %c0_9 = arith.constant 0 : index
    %12 = vector.load %arg4[%c0_6, %c0_7, %c0_8, %c0_9] : memref<3x3x8x4xbf16, #tpu.memory_space<vmem>>, vector<3x3x8x4xbf16>
    %c0_10 = arith.constant 0 : index
    %c0_11 = arith.constant 0 : index
    %c0_12 = arith.constant 0 : index
    %c0_13 = arith.constant 0 : index
    %13 = vector.load %arg5[%c0_10, %c0_11, %c0_12, %c0_13] : memref<3x3x4x4xbf16, #tpu.memory_space<vmem>>, vector<3x3x4x4xbf16>
    %cst = arith.constant 0.000000e+00 : f32
    %14 = vector.broadcast %cst : f32 to vector<160x8xf32>
    %15 = vector.extract_strided_slice %7 {offsets = [0, 0, 0], sizes = [10, 16, 4], strides = [1, 1, 1]} : vector<12x16x4xbf16> to vector<10x16x4xbf16>
    %16 = vector.shape_cast %15 : vector<10x16x4xbf16> to vector<160x4xbf16>
    %17 = vector.extract_strided_slice %11 {offsets = [0, 0, 0, 0], sizes = [1, 1, 4, 8], strides = [1, 1, 1, 1]} : vector<3x3x4x8xbf16> to vector<1x1x4x8xbf16>
    %18 = vector.shape_cast %17 : vector<1x1x4x8xbf16> to vector<4x8xbf16>
    %cst_14 = arith.constant dense<0.000000e+00> : vector<160x8xf32>
    %19 = tpu.matmul %16, %18, %cst_14 {dimension_numbers = #tpu.dot_dimension_numbers<[1], [0], [0], [1], [0, 0, 1, 1], [], []>} : vector<160x4xbf16>, vector<4x8xbf16>, vector<160x8xf32> -> vector<160x8xf32>
    %20 = arith.addf %14, %19 : vector<160x8xf32>
    %21 = vector.extract_strided_slice %4 {offsets = [0, 0, 0], sizes = [10, 16, 4], strides = [1, 1, 1]} : vector<12x16x4xbf16> to vector<10x16x4xbf16>
    %22 = vector.shape_cast %21 : vector<10x16x4xbf16> to vector<160x4xbf16>
    %23 = vector.extract_strided_slice %11 {offsets = [0, 1, 0, 0], sizes = [1, 1, 4, 8], strides = [1, 1, 1, 1]} : vector<3x3x4x8xbf16> to vector<1x1x4x8xbf16>
    %24 = vector.shape_cast %23 : vector<1x1x4x8xbf16> to vector<4x8xbf16>
    %cst_15 = arith.constant dense<0.000000e+00> : vector<160x8xf32>
    %25 = tpu.matmul %22, %24, %cst_15 {dimension_numbers = #tpu.dot_dimension_numbers<[1], [0], [0], [1], [0, 0, 1, 1], [], []>} : vector<160x4xbf16>, vector<4x8xbf16>, vector<160x8xf32> -> vector<160x8xf32>
    %26 = arith.addf %20, %25 : vector<160x8xf32>
    %27 = vector.extract_strided_slice %10 {offsets = [0, 0, 0], sizes = [10, 16, 4], strides = [1, 1, 1]} : vector<12x16x4xbf16> to vector<10x16x4xbf16>
    %28 = vector.shape_cast %27 : vector<10x16x4xbf16> to vector<160x4xbf16>
    %29 = vector.extract_strided_slice %11 {offsets = [0, 2, 0, 0], sizes = [1, 1, 4, 8], strides = [1, 1, 1, 1]} : vector<3x3x4x8xbf16> to vector<1x1x4x8xbf16>
    %30 = vector.shape_cast %29 : vector<1x1x4x8xbf16> to vector<4x8xbf16>
    %cst_16 = arith.constant dense<0.000000e+00> : vector<160x8xf32>
    %31 = tpu.matmul %28, %30, %cst_16 {dimension_numbers = #tpu.dot_dimension_numbers<[1], [0], [0], [1], [0, 0, 1, 1], [], []>} : vector<160x4xbf16>, vector<4x8xbf16>, vector<160x8xf32> -> vector<160x8xf32>
    %32 = arith.addf %26, %31 : vector<160x8xf32>
    %33 = vector.extract_strided_slice %7 {offsets = [1, 0, 0], sizes = [10, 16, 4], strides = [1, 1, 1]} : vector<12x16x4xbf16> to vector<10x16x4xbf16>
    %34 = vector.shape_cast %33 : vector<10x16x4xbf16> to vector<160x4xbf16>
    %35 = vector.extract_strided_slice %11 {offsets = [1, 0, 0, 0], sizes = [1, 1, 4, 8], strides = [1, 1, 1, 1]} : vector<3x3x4x8xbf16> to vector<1x1x4x8xbf16>
    %36 = vector.shape_cast %35 : vector<1x1x4x8xbf16> to vector<4x8xbf16>
    %cst_17 = arith.constant dense<0.000000e+00> : vector<160x8xf32>
    %37 = tpu.matmul %34, %36, %cst_17 {dimension_numbers = #tpu.dot_dimension_numbers<[1], [0], [0], [1], [0, 0, 1, 1], [], []>} : vector<160x4xbf16>, vector<4x8xbf16>, vector<160x8xf32> -> vector<160x8xf32>
    %38 = arith.addf %32, %37 : vector<160x8xf32>
    %39 = vector.extract_strided_slice %4 {offsets = [1, 0, 0], sizes = [10, 16, 4], strides = [1, 1, 1]} : vector<12x16x4xbf16> to vector<10x16x4xbf16>
    %40 = vector.shape_cast %39 : vector<10x16x4xbf16> to vector<160x4xbf16>
    %41 = vector.extract_strided_slice %11 {offsets = [1, 1, 0, 0], sizes = [1, 1, 4, 8], strides = [1, 1, 1, 1]} : vector<3x3x4x8xbf16> to vector<1x1x4x8xbf16>
    %42 = vector.shape_cast %41 : vector<1x1x4x8xbf16> to vector<4x8xbf16>
    %cst_18 = arith.constant dense<0.000000e+00> : vector<160x8xf32>
    %43 = tpu.matmul %40, %42, %cst_18 {dimension_numbers = #tpu.dot_dimension_numbers<[1], [0], [0], [1], [0, 0, 1, 1], [], []>} : vector<160x4xbf16>, vector<4x8xbf16>, vector<160x8xf32> -> vector<160x8xf32>
    %44 = arith.addf %38, %43 : vector<160x8xf32>
    %45 = vector.extract_strided_slice %10 {offsets = [1, 0, 0], sizes = [10, 16, 4], strides = [1, 1, 1]} : vector<12x16x4xbf16> to vector<10x16x4xbf16>
    %46 = vector.shape_cast %45 : vector<10x16x4xbf16> to vector<160x4xbf16>
    %47 = vector.extract_strided_slice %11 {offsets = [1, 2, 0, 0], sizes = [1, 1, 4, 8], strides = [1, 1, 1, 1]} : vector<3x3x4x8xbf16> to vector<1x1x4x8xbf16>
    %48 = vector.shape_cast %47 : vector<1x1x4x8xbf16> to vector<4x8xbf16>
    %cst_19 = arith.constant dense<0.000000e+00> : vector<160x8xf32>
    %49 = tpu.matmul %46, %48, %cst_19 {dimension_numbers = #tpu.dot_dimension_numbers<[1], [0], [0], [1], [0, 0, 1, 1], [], []>} : vector<160x4xbf16>, vector<4x8xbf16>, vector<160x8xf32> -> vector<160x8xf32>
    %50 = arith.addf %44, %49 : vector<160x8xf32>
    %51 = vector.extract_strided_slice %7 {offsets = [2, 0, 0], sizes = [10, 16, 4], strides = [1, 1, 1]} : vector<12x16x4xbf16> to vector<10x16x4xbf16>
    %52 = vector.shape_cast %51 : vector<10x16x4xbf16> to vector<160x4xbf16>
    %53 = vector.extract_strided_slice %11 {offsets = [2, 0, 0, 0], sizes = [1, 1, 4, 8], strides = [1, 1, 1, 1]} : vector<3x3x4x8xbf16> to vector<1x1x4x8xbf16>
    %54 = vector.shape_cast %53 : vector<1x1x4x8xbf16> to vector<4x8xbf16>
    %cst_20 = arith.constant dense<0.000000e+00> : vector<160x8xf32>
    %55 = tpu.matmul %52, %54, %cst_20 {dimension_numbers = #tpu.dot_dimension_numbers<[1], [0], [0], [1], [0, 0, 1, 1], [], []>} : vector<160x4xbf16>, vector<4x8xbf16>, vector<160x8xf32> -> vector<160x8xf32>
    %56 = arith.addf %50, %55 : vector<160x8xf32>
    %57 = vector.extract_strided_slice %4 {offsets = [2, 0, 0], sizes = [10, 16, 4], strides = [1, 1, 1]} : vector<12x16x4xbf16> to vector<10x16x4xbf16>
    %58 = vector.shape_cast %57 : vector<10x16x4xbf16> to vector<160x4xbf16>
    %59 = vector.extract_strided_slice %11 {offsets = [2, 1, 0, 0], sizes = [1, 1, 4, 8], strides = [1, 1, 1, 1]} : vector<3x3x4x8xbf16> to vector<1x1x4x8xbf16>
    %60 = vector.shape_cast %59 : vector<1x1x4x8xbf16> to vector<4x8xbf16>
    %cst_21 = arith.constant dense<0.000000e+00> : vector<160x8xf32>
    %61 = tpu.matmul %58, %60, %cst_21 {dimension_numbers = #tpu.dot_dimension_numbers<[1], [0], [0], [1], [0, 0, 1, 1], [], []>} : vector<160x4xbf16>, vector<4x8xbf16>, vector<160x8xf32> -> vector<160x8xf32>
    %62 = arith.addf %56, %61 : vector<160x8xf32>
    %63 = vector.extract_strided_slice %10 {offsets = [2, 0, 0], sizes = [10, 16, 4], strides = [1, 1, 1]} : vector<12x16x4xbf16> to vector<10x16x4xbf16>
    %64 = vector.shape_cast %63 : vector<10x16x4xbf16> to vector<160x4xbf16>
    %65 = vector.extract_strided_slice %11 {offsets = [2, 2, 0, 0], sizes = [1, 1, 4, 8], strides = [1, 1, 1, 1]} : vector<3x3x4x8xbf16> to vector<1x1x4x8xbf16>
    %66 = vector.shape_cast %65 : vector<1x1x4x8xbf16> to vector<4x8xbf16>
    %cst_22 = arith.constant dense<0.000000e+00> : vector<160x8xf32>
    %67 = tpu.matmul %64, %66, %cst_22 {dimension_numbers = #tpu.dot_dimension_numbers<[1], [0], [0], [1], [0, 0, 1, 1], [], []>} : vector<160x4xbf16>, vector<4x8xbf16>, vector<160x8xf32> -> vector<160x8xf32>
    %68 = arith.addf %62, %67 : vector<160x8xf32>
    %69 = vector.shape_cast %68 : vector<160x8xf32> to vector<10x16x8xf32>
    %70 = tpu.iota {dimensions = array<i32: 0>} : vector<10x1x1xi32>
    %c0_i32 = arith.constant 0 : i32
    %71 = arith.cmpi eq, %arg1, %c0_i32 : i32
    %c0_i32_23 = arith.constant 0 : i32
    %72 = vector.broadcast %c0_i32_23 : i32 to vector<10x1x1xi32>
    %73 = arith.cmpi eq, %70, %72 : vector<10x1x1xi32>
    %74 = vector.broadcast %71 : i1 to vector<10x1x1xi1>
    %75 = arith.andi %74, %73 : vector<10x1x1xi1>
    %76 = vector.extract_strided_slice %69 {offsets = [1, 0, 0], sizes = [1, 16, 8], strides = [1, 1, 1]} : vector<10x16x8xf32> to vector<1x16x8xf32>
    %77 = vector.shape_cast %75 : vector<10x1x1xi1> to vector<10x1x1xi1>
    %78 = vector.broadcast %77 : vector<10x1x1xi1> to vector<10x16x8xi1>
    %79 = vector.shape_cast %76 : vector<1x16x8xf32> to vector<1x16x8xf32>
    %80 = vector.broadcast %79 : vector<1x16x8xf32> to vector<10x16x8xf32>
    %81 = arith.select %78, %80, %69 : vector<10x16x8xi1>, vector<10x16x8xf32>
    %c1_i32 = arith.constant 1 : i32
    %82 = arith.cmpi eq, %arg1, %c1_i32 : i32
    %c9_i32 = arith.constant 9 : i32
    %83 = vector.broadcast %c9_i32 : i32 to vector<10x1x1xi32>
    %84 = arith.cmpi eq, %70, %83 : vector<10x1x1xi32>
    %85 = vector.broadcast %82 : i1 to vector<10x1x1xi1>
    %86 = arith.andi %85, %84 : vector<10x1x1xi1>
    %87 = vector.extract_strided_slice %81 {offsets = [8, 0, 0], sizes = [1, 16, 8], strides = [1, 1, 1]} : vector<10x16x8xf32> to vector<1x16x8xf32>
    %88 = vector.shape_cast %86 : vector<10x1x1xi1> to vector<10x1x1xi1>
    %89 = vector.broadcast %88 : vector<10x1x1xi1> to vector<10x16x8xi1>
    %90 = vector.shape_cast %87 : vector<1x16x8xf32> to vector<1x16x8xf32>
    %91 = vector.broadcast %90 : vector<1x16x8xf32> to vector<10x16x8xf32>
    %92 = arith.select %89, %91, %81 : vector<10x16x8xi1>, vector<10x16x8xf32>
    %93 = arith.truncf %92 : vector<10x16x8xf32> to vector<10x16x8xbf16>
    %94 = vector.extract_strided_slice %93 {offsets = [0, 0, 0], sizes = [10, 1, 8], strides = [1, 1, 1]} : vector<10x16x8xbf16> to vector<10x1x8xbf16>
    %95 = vector.extract_strided_slice %93 {offsets = [0, 0, 0], sizes = [10, 15, 8], strides = [1, 1, 1]} : vector<10x16x8xbf16> to vector<10x15x8xbf16>
    %96 = tpu.concatenate %94, %95 in 1 : vector<10x1x8xbf16>, vector<10x15x8xbf16> -> vector<10x16x8xbf16>
    %97 = vector.extract_strided_slice %93 {offsets = [0, 1, 0], sizes = [10, 15, 8], strides = [1, 1, 1]} : vector<10x16x8xbf16> to vector<10x15x8xbf16>
    %98 = vector.extract_strided_slice %93 {offsets = [0, 15, 0], sizes = [10, 1, 8], strides = [1, 1, 1]} : vector<10x16x8xbf16> to vector<10x1x8xbf16>
    %99 = tpu.concatenate %97, %98 in 1 : vector<10x15x8xbf16>, vector<10x1x8xbf16> -> vector<10x16x8xbf16>
    %cst_24 = arith.constant 0.000000e+00 : f32
    %100 = vector.broadcast %cst_24 : f32 to vector<128x4xf32>
    %101 = vector.extract_strided_slice %96 {offsets = [0, 0, 0], sizes = [8, 16, 8], strides = [1, 1, 1]} : vector<10x16x8xbf16> to vector<8x16x8xbf16>
    %102 = vector.shape_cast %101 : vector<8x16x8xbf16> to vector<128x8xbf16>
    %103 = vector.extract_strided_slice %12 {offsets = [0, 0, 0, 0], sizes = [1, 1, 8, 4], strides = [1, 1, 1, 1]} : vector<3x3x8x4xbf16> to vector<1x1x8x4xbf16>
    %104 = vector.shape_cast %103 : vector<1x1x8x4xbf16> to vector<8x4xbf16>
    %cst_25 = arith.constant dense<0.000000e+00> : vector<128x4xf32>
    %105 = tpu.matmul %102, %104, %cst_25 {dimension_numbers = #tpu.dot_dimension_numbers<[1], [0], [0], [1], [0, 0, 1, 1], [], []>} : vector<128x8xbf16>, vector<8x4xbf16>, vector<128x4xf32> -> vector<128x4xf32>
    %106 = arith.addf %100, %105 : vector<128x4xf32>
    %107 = vector.extract_strided_slice %93 {offsets = [0, 0, 0], sizes = [8, 16, 8], strides = [1, 1, 1]} : vector<10x16x8xbf16> to vector<8x16x8xbf16>
    %108 = vector.shape_cast %107 : vector<8x16x8xbf16> to vector<128x8xbf16>
    %109 = vector.extract_strided_slice %12 {offsets = [0, 1, 0, 0], sizes = [1, 1, 8, 4], strides = [1, 1, 1, 1]} : vector<3x3x8x4xbf16> to vector<1x1x8x4xbf16>
    %110 = vector.shape_cast %109 : vector<1x1x8x4xbf16> to vector<8x4xbf16>
    %cst_26 = arith.constant dense<0.000000e+00> : vector<128x4xf32>
    %111 = tpu.matmul %108, %110, %cst_26 {dimension_numbers = #tpu.dot_dimension_numbers<[1], [0], [0], [1], [0, 0, 1, 1], [], []>} : vector<128x8xbf16>, vector<8x4xbf16>, vector<128x4xf32> -> vector<128x4xf32>
    %112 = arith.addf %106, %111 : vector<128x4xf32>
    %113 = vector.extract_strided_slice %99 {offsets = [0, 0, 0], sizes = [8, 16, 8], strides = [1, 1, 1]} : vector<10x16x8xbf16> to vector<8x16x8xbf16>
    %114 = vector.shape_cast %113 : vector<8x16x8xbf16> to vector<128x8xbf16>
    %115 = vector.extract_strided_slice %12 {offsets = [0, 2, 0, 0], sizes = [1, 1, 8, 4], strides = [1, 1, 1, 1]} : vector<3x3x8x4xbf16> to vector<1x1x8x4xbf16>
    %116 = vector.shape_cast %115 : vector<1x1x8x4xbf16> to vector<8x4xbf16>
    %cst_27 = arith.constant dense<0.000000e+00> : vector<128x4xf32>
    %117 = tpu.matmul %114, %116, %cst_27 {dimension_numbers = #tpu.dot_dimension_numbers<[1], [0], [0], [1], [0, 0, 1, 1], [], []>} : vector<128x8xbf16>, vector<8x4xbf16>, vector<128x4xf32> -> vector<128x4xf32>
    %118 = arith.addf %112, %117 : vector<128x4xf32>
    %119 = vector.extract_strided_slice %96 {offsets = [1, 0, 0], sizes = [8, 16, 8], strides = [1, 1, 1]} : vector<10x16x8xbf16> to vector<8x16x8xbf16>
    %120 = vector.shape_cast %119 : vector<8x16x8xbf16> to vector<128x8xbf16>
    %121 = vector.extract_strided_slice %12 {offsets = [1, 0, 0, 0], sizes = [1, 1, 8, 4], strides = [1, 1, 1, 1]} : vector<3x3x8x4xbf16> to vector<1x1x8x4xbf16>
    %122 = vector.shape_cast %121 : vector<1x1x8x4xbf16> to vector<8x4xbf16>
    %cst_28 = arith.constant dense<0.000000e+00> : vector<128x4xf32>
    %123 = tpu.matmul %120, %122, %cst_28 {dimension_numbers = #tpu.dot_dimension_numbers<[1], [0], [0], [1], [0, 0, 1, 1], [], []>} : vector<128x8xbf16>, vector<8x4xbf16>, vector<128x4xf32> -> vector<128x4xf32>
    %124 = arith.addf %118, %123 : vector<128x4xf32>
    %125 = vector.extract_strided_slice %93 {offsets = [1, 0, 0], sizes = [8, 16, 8], strides = [1, 1, 1]} : vector<10x16x8xbf16> to vector<8x16x8xbf16>
    %126 = vector.shape_cast %125 : vector<8x16x8xbf16> to vector<128x8xbf16>
    %127 = vector.extract_strided_slice %12 {offsets = [1, 1, 0, 0], sizes = [1, 1, 8, 4], strides = [1, 1, 1, 1]} : vector<3x3x8x4xbf16> to vector<1x1x8x4xbf16>
    %128 = vector.shape_cast %127 : vector<1x1x8x4xbf16> to vector<8x4xbf16>
    %cst_29 = arith.constant dense<0.000000e+00> : vector<128x4xf32>
    %129 = tpu.matmul %126, %128, %cst_29 {dimension_numbers = #tpu.dot_dimension_numbers<[1], [0], [0], [1], [0, 0, 1, 1], [], []>} : vector<128x8xbf16>, vector<8x4xbf16>, vector<128x4xf32> -> vector<128x4xf32>
    %130 = arith.addf %124, %129 : vector<128x4xf32>
    %131 = vector.extract_strided_slice %99 {offsets = [1, 0, 0], sizes = [8, 16, 8], strides = [1, 1, 1]} : vector<10x16x8xbf16> to vector<8x16x8xbf16>
    %132 = vector.shape_cast %131 : vector<8x16x8xbf16> to vector<128x8xbf16>
    %133 = vector.extract_strided_slice %12 {offsets = [1, 2, 0, 0], sizes = [1, 1, 8, 4], strides = [1, 1, 1, 1]} : vector<3x3x8x4xbf16> to vector<1x1x8x4xbf16>
    %134 = vector.shape_cast %133 : vector<1x1x8x4xbf16> to vector<8x4xbf16>
    %cst_30 = arith.constant dense<0.000000e+00> : vector<128x4xf32>
    %135 = tpu.matmul %132, %134, %cst_30 {dimension_numbers = #tpu.dot_dimension_numbers<[1], [0], [0], [1], [0, 0, 1, 1], [], []>} : vector<128x8xbf16>, vector<8x4xbf16>, vector<128x4xf32> -> vector<128x4xf32>
    %136 = arith.addf %130, %135 : vector<128x4xf32>
    %137 = vector.extract_strided_slice %96 {offsets = [2, 0, 0], sizes = [8, 16, 8], strides = [1, 1, 1]} : vector<10x16x8xbf16> to vector<8x16x8xbf16>
    %138 = vector.shape_cast %137 : vector<8x16x8xbf16> to vector<128x8xbf16>
    %139 = vector.extract_strided_slice %12 {offsets = [2, 0, 0, 0], sizes = [1, 1, 8, 4], strides = [1, 1, 1, 1]} : vector<3x3x8x4xbf16> to vector<1x1x8x4xbf16>
    %140 = vector.shape_cast %139 : vector<1x1x8x4xbf16> to vector<8x4xbf16>
    %cst_31 = arith.constant dense<0.000000e+00> : vector<128x4xf32>
    %141 = tpu.matmul %138, %140, %cst_31 {dimension_numbers = #tpu.dot_dimension_numbers<[1], [0], [0], [1], [0, 0, 1, 1], [], []>} : vector<128x8xbf16>, vector<8x4xbf16>, vector<128x4xf32> -> vector<128x4xf32>
    %142 = arith.addf %136, %141 : vector<128x4xf32>
    %143 = vector.extract_strided_slice %93 {offsets = [2, 0, 0], sizes = [8, 16, 8], strides = [1, 1, 1]} : vector<10x16x8xbf16> to vector<8x16x8xbf16>
    %144 = vector.shape_cast %143 : vector<8x16x8xbf16> to vector<128x8xbf16>
    %145 = vector.extract_strided_slice %12 {offsets = [2, 1, 0, 0], sizes = [1, 1, 8, 4], strides = [1, 1, 1, 1]} : vector<3x3x8x4xbf16> to vector<1x1x8x4xbf16>
    %146 = vector.shape_cast %145 : vector<1x1x8x4xbf16> to vector<8x4xbf16>
    %cst_32 = arith.constant dense<0.000000e+00> : vector<128x4xf32>
    %147 = tpu.matmul %144, %146, %cst_32 {dimension_numbers = #tpu.dot_dimension_numbers<[1], [0], [0], [1], [0, 0, 1, 1], [], []>} : vector<128x8xbf16>, vector<8x4xbf16>, vector<128x4xf32> -> vector<128x4xf32>
    %148 = arith.addf %142, %147 : vector<128x4xf32>
    %149 = vector.extract_strided_slice %99 {offsets = [2, 0, 0], sizes = [8, 16, 8], strides = [1, 1, 1]} : vector<10x16x8xbf16> to vector<8x16x8xbf16>
    %150 = vector.shape_cast %149 : vector<8x16x8xbf16> to vector<128x8xbf16>
    %151 = vector.extract_strided_slice %12 {offsets = [2, 2, 0, 0], sizes = [1, 1, 8, 4], strides = [1, 1, 1, 1]} : vector<3x3x8x4xbf16> to vector<1x1x8x4xbf16>
    %152 = vector.shape_cast %151 : vector<1x1x8x4xbf16> to vector<8x4xbf16>
    %cst_33 = arith.constant dense<0.000000e+00> : vector<128x4xf32>
    %153 = tpu.matmul %150, %152, %cst_33 {dimension_numbers = #tpu.dot_dimension_numbers<[1], [0], [0], [1], [0, 0, 1, 1], [], []>} : vector<128x8xbf16>, vector<8x4xbf16>, vector<128x4xf32> -> vector<128x4xf32>
    %154 = arith.addf %148, %153 : vector<128x4xf32>
    %cst_34 = arith.constant 0.000000e+00 : f32
    %155 = vector.broadcast %cst_34 : f32 to vector<128x4xf32>
    %156 = vector.extract_strided_slice %7 {offsets = [1, 0, 0], sizes = [8, 16, 4], strides = [1, 1, 1]} : vector<12x16x4xbf16> to vector<8x16x4xbf16>
    %157 = vector.shape_cast %156 : vector<8x16x4xbf16> to vector<128x4xbf16>
    %158 = vector.extract_strided_slice %13 {offsets = [0, 0, 0, 0], sizes = [1, 1, 4, 4], strides = [1, 1, 1, 1]} : vector<3x3x4x4xbf16> to vector<1x1x4x4xbf16>
    %159 = vector.shape_cast %158 : vector<1x1x4x4xbf16> to vector<4x4xbf16>
    %cst_35 = arith.constant dense<0.000000e+00> : vector<128x4xf32>
    %160 = tpu.matmul %157, %159, %cst_35 {dimension_numbers = #tpu.dot_dimension_numbers<[1], [0], [0], [1], [0, 0, 1, 1], [], []>} : vector<128x4xbf16>, vector<4x4xbf16>, vector<128x4xf32> -> vector<128x4xf32>
    %161 = arith.addf %155, %160 : vector<128x4xf32>
    %162 = vector.extract_strided_slice %4 {offsets = [1, 0, 0], sizes = [8, 16, 4], strides = [1, 1, 1]} : vector<12x16x4xbf16> to vector<8x16x4xbf16>
    %163 = vector.shape_cast %162 : vector<8x16x4xbf16> to vector<128x4xbf16>
    %164 = vector.extract_strided_slice %13 {offsets = [0, 1, 0, 0], sizes = [1, 1, 4, 4], strides = [1, 1, 1, 1]} : vector<3x3x4x4xbf16> to vector<1x1x4x4xbf16>
    %165 = vector.shape_cast %164 : vector<1x1x4x4xbf16> to vector<4x4xbf16>
    %cst_36 = arith.constant dense<0.000000e+00> : vector<128x4xf32>
    %166 = tpu.matmul %163, %165, %cst_36 {dimension_numbers = #tpu.dot_dimension_numbers<[1], [0], [0], [1], [0, 0, 1, 1], [], []>} : vector<128x4xbf16>, vector<4x4xbf16>, vector<128x4xf32> -> vector<128x4xf32>
    %167 = arith.addf %161, %166 : vector<128x4xf32>
    %168 = vector.extract_strided_slice %10 {offsets = [1, 0, 0], sizes = [8, 16, 4], strides = [1, 1, 1]} : vector<12x16x4xbf16> to vector<8x16x4xbf16>
    %169 = vector.shape_cast %168 : vector<8x16x4xbf16> to vector<128x4xbf16>
    %170 = vector.extract_strided_slice %13 {offsets = [0, 2, 0, 0], sizes = [1, 1, 4, 4], strides = [1, 1, 1, 1]} : vector<3x3x4x4xbf16> to vector<1x1x4x4xbf16>
    %171 = vector.shape_cast %170 : vector<1x1x4x4xbf16> to vector<4x4xbf16>
    %cst_37 = arith.constant dense<0.000000e+00> : vector<128x4xf32>
    %172 = tpu.matmul %169, %171, %cst_37 {dimension_numbers = #tpu.dot_dimension_numbers<[1], [0], [0], [1], [0, 0, 1, 1], [], []>} : vector<128x4xbf16>, vector<4x4xbf16>, vector<128x4xf32> -> vector<128x4xf32>
    %173 = arith.addf %167, %172 : vector<128x4xf32>
    %174 = vector.extract_strided_slice %7 {offsets = [2, 0, 0], sizes = [8, 16, 4], strides = [1, 1, 1]} : vector<12x16x4xbf16> to vector<8x16x4xbf16>
    %175 = vector.shape_cast %174 : vector<8x16x4xbf16> to vector<128x4xbf16>
    %176 = vector.extract_strided_slice %13 {offsets = [1, 0, 0, 0], sizes = [1, 1, 4, 4], strides = [1, 1, 1, 1]} : vector<3x3x4x4xbf16> to vector<1x1x4x4xbf16>
    %177 = vector.shape_cast %176 : vector<1x1x4x4xbf16> to vector<4x4xbf16>
    %cst_38 = arith.constant dense<0.000000e+00> : vector<128x4xf32>
    %178 = tpu.matmul %175, %177, %cst_38 {dimension_numbers = #tpu.dot_dimension_numbers<[1], [0], [0], [1], [0, 0, 1, 1], [], []>} : vector<128x4xbf16>, vector<4x4xbf16>, vector<128x4xf32> -> vector<128x4xf32>
    %179 = arith.addf %173, %178 : vector<128x4xf32>
    %180 = vector.extract_strided_slice %4 {offsets = [2, 0, 0], sizes = [8, 16, 4], strides = [1, 1, 1]} : vector<12x16x4xbf16> to vector<8x16x4xbf16>
    %181 = vector.shape_cast %180 : vector<8x16x4xbf16> to vector<128x4xbf16>
    %182 = vector.extract_strided_slice %13 {offsets = [1, 1, 0, 0], sizes = [1, 1, 4, 4], strides = [1, 1, 1, 1]} : vector<3x3x4x4xbf16> to vector<1x1x4x4xbf16>
    %183 = vector.shape_cast %182 : vector<1x1x4x4xbf16> to vector<4x4xbf16>
    %cst_39 = arith.constant dense<0.000000e+00> : vector<128x4xf32>
    %184 = tpu.matmul %181, %183, %cst_39 {dimension_numbers = #tpu.dot_dimension_numbers<[1], [0], [0], [1], [0, 0, 1, 1], [], []>} : vector<128x4xbf16>, vector<4x4xbf16>, vector<128x4xf32> -> vector<128x4xf32>
    %185 = arith.addf %179, %184 : vector<128x4xf32>
    %186 = vector.extract_strided_slice %10 {offsets = [2, 0, 0], sizes = [8, 16, 4], strides = [1, 1, 1]} : vector<12x16x4xbf16> to vector<8x16x4xbf16>
    %187 = vector.shape_cast %186 : vector<8x16x4xbf16> to vector<128x4xbf16>
    %188 = vector.extract_strided_slice %13 {offsets = [1, 2, 0, 0], sizes = [1, 1, 4, 4], strides = [1, 1, 1, 1]} : vector<3x3x4x4xbf16> to vector<1x1x4x4xbf16>
    %189 = vector.shape_cast %188 : vector<1x1x4x4xbf16> to vector<4x4xbf16>
    %cst_40 = arith.constant dense<0.000000e+00> : vector<128x4xf32>
    %190 = tpu.matmul %187, %189, %cst_40 {dimension_numbers = #tpu.dot_dimension_numbers<[1], [0], [0], [1], [0, 0, 1, 1], [], []>} : vector<128x4xbf16>, vector<4x4xbf16>, vector<128x4xf32> -> vector<128x4xf32>
    %191 = arith.addf %185, %190 : vector<128x4xf32>
    %192 = vector.extract_strided_slice %7 {offsets = [3, 0, 0], sizes = [8, 16, 4], strides = [1, 1, 1]} : vector<12x16x4xbf16> to vector<8x16x4xbf16>
    %193 = vector.shape_cast %192 : vector<8x16x4xbf16> to vector<128x4xbf16>
    %194 = vector.extract_strided_slice %13 {offsets = [2, 0, 0, 0], sizes = [1, 1, 4, 4], strides = [1, 1, 1, 1]} : vector<3x3x4x4xbf16> to vector<1x1x4x4xbf16>
    %195 = vector.shape_cast %194 : vector<1x1x4x4xbf16> to vector<4x4xbf16>
    %cst_41 = arith.constant dense<0.000000e+00> : vector<128x4xf32>
    %196 = tpu.matmul %193, %195, %cst_41 {dimension_numbers = #tpu.dot_dimension_numbers<[1], [0], [0], [1], [0, 0, 1, 1], [], []>} : vector<128x4xbf16>, vector<4x4xbf16>, vector<128x4xf32> -> vector<128x4xf32>
    %197 = arith.addf %191, %196 : vector<128x4xf32>
    %198 = vector.extract_strided_slice %4 {offsets = [3, 0, 0], sizes = [8, 16, 4], strides = [1, 1, 1]} : vector<12x16x4xbf16> to vector<8x16x4xbf16>
    %199 = vector.shape_cast %198 : vector<8x16x4xbf16> to vector<128x4xbf16>
    %200 = vector.extract_strided_slice %13 {offsets = [2, 1, 0, 0], sizes = [1, 1, 4, 4], strides = [1, 1, 1, 1]} : vector<3x3x4x4xbf16> to vector<1x1x4x4xbf16>
    %201 = vector.shape_cast %200 : vector<1x1x4x4xbf16> to vector<4x4xbf16>
    %cst_42 = arith.constant dense<0.000000e+00> : vector<128x4xf32>
    %202 = tpu.matmul %199, %201, %cst_42 {dimension_numbers = #tpu.dot_dimension_numbers<[1], [0], [0], [1], [0, 0, 1, 1], [], []>} : vector<128x4xbf16>, vector<4x4xbf16>, vector<128x4xf32> -> vector<128x4xf32>
    %203 = arith.addf %197, %202 : vector<128x4xf32>
    %204 = vector.extract_strided_slice %10 {offsets = [3, 0, 0], sizes = [8, 16, 4], strides = [1, 1, 1]} : vector<12x16x4xbf16> to vector<8x16x4xbf16>
    %205 = vector.shape_cast %204 : vector<8x16x4xbf16> to vector<128x4xbf16>
    %206 = vector.extract_strided_slice %13 {offsets = [2, 2, 0, 0], sizes = [1, 1, 4, 4], strides = [1, 1, 1, 1]} : vector<3x3x4x4xbf16> to vector<1x1x4x4xbf16>
    %207 = vector.shape_cast %206 : vector<1x1x4x4xbf16> to vector<4x4xbf16>
    %cst_43 = arith.constant dense<0.000000e+00> : vector<128x4xf32>
    %208 = tpu.matmul %205, %207, %cst_43 {dimension_numbers = #tpu.dot_dimension_numbers<[1], [0], [0], [1], [0, 0, 1, 1], [], []>} : vector<128x4xbf16>, vector<4x4xbf16>, vector<128x4xf32> -> vector<128x4xf32>
    %209 = arith.addf %203, %208 : vector<128x4xf32>
    %210 = tpu.concatenate %154, %209 in 1 : vector<128x4xf32>, vector<128x4xf32> -> vector<128x8xf32>
    %211 = vector.shape_cast %210 : vector<128x8xf32> to vector<8x16x8xf32>
    %c0_44 = arith.constant 0 : index
    %c0_45 = arith.constant 0 : index
    %c0_46 = arith.constant 0 : index
    %c0_47 = arith.constant 0 : index
    %212 = vector.load %arg6[%c0_44, %c0_45, %c0_46, %c0_47] : memref<1x8x16x8xf32, #tpu.memory_space<vmem>>, vector<1x8x16x8xf32>
    %213 = vector.shape_cast %212 : vector<1x8x16x8xf32> to vector<8x16x8xf32>
    %214 = vector.shape_cast %211 : vector<8x16x8xf32> to vector<1x8x16x8xf32>
    tpu.vector_store %arg6[%c0_44, %c0_45, %c0_46, %c0_47], %214 {strides = array<i32>} : memref<1x8x16x8xf32, #tpu.memory_space<vmem>>, vector<1x8x16x8xf32>,
    return
  }
  func.func @transform_0(%arg0: i32, %arg1: i32) -> (i32, i32, i32, i32) {
    %c0_i32 = arith.constant 0 : i32
    %c0_i32_0 = arith.constant 0 : i32
    %c0_i32_1 = arith.constant 0 : i32
    %c0_i32_2 = arith.constant 0 : i32
    return %arg0, %c0_i32, %c0_i32_0, %c0_i32_1 : i32, i32, i32, i32
  }
  func.func @transform_1(%arg0: i32, %arg1: i32) -> (i32, i32, i32, i32) {
    %c0_i32 = arith.constant 0 : i32
    %c0_i32_0 = arith.constant 0 : i32
    %c0_i32_1 = arith.constant 0 : i32
    %c0_i32_2 = arith.constant 0 : i32
    %c0_i32_3 = arith.constant 0 : i32
    return %c0_i32, %c0_i32_0, %c0_i32_1, %c0_i32_2 : i32, i32, i32, i32
  }
  func.func @transform_2(%arg0: i32, %arg1: i32) -> (i32, i32, i32, i32) {
    %c0_i32 = arith.constant 0 : i32
    %c0_i32_0 = arith.constant 0 : i32
    %c0_i32_1 = arith.constant 0 : i32
    %c0_i32_2 = arith.constant 0 : i32
    %c0_i32_3 = arith.constant 0 : i32
    return %c0_i32, %c0_i32_0, %c0_i32_1, %c0_i32_2 : i32, i32, i32, i32
  }
  func.func @transform_3(%arg0: i32, %arg1: i32) -> (i32, i32, i32, i32) {
    %c0_i32 = arith.constant 0 : i32
    %c0_i32_0 = arith.constant 0 : i32
    %c0_i32_1 = arith.constant 0 : i32
    %c0_i32_2 = arith.constant 0 : i32
    %c0_i32_3 = arith.constant 0 : i32
    return %c0_i32, %c0_i32_0, %c0_i32_1, %c0_i32_2 : i32, i32, i32, i32
  }
  func.func @transform_4(%arg0: i32, %arg1: i32) -> (i32, i32, i32, i32) {
    %c0_i32 = arith.constant 0 : i32
    %c0_i32_0 = arith.constant 0 : i32
    %c0_i32_1 = arith.constant 0 : i32
    return %arg0, %arg1, %c0_i32, %c0_i32_0 : i32, i32, i32, i32
  }
}

</mosaic_0001>

<llo_original>
// kernel: inception_block.1
$region0: #{inception_block.1}
  #allocation0 [shape = 'u32[]', space=smem, size = 0x4, offset = 0x4, fixed_abs, tag = 'smem constant byte address 0x4 - core index']
  #allocation1 [shape = 'u32[144,128]{1,0:T(1,128)}', space=vmem, size = 0x12000, scoped, tag = 'internal scratch']
  %s0 = inlined_call_operand.vmem [shape: bf16[2,20,16,4], index: 0, kind: input, shape index: {}]
  %s1 = inlined_call_operand.vmem [shape: bf16[3,3,4,8], index: 1, kind: input, shape index: {}]
  %s2 = inlined_call_operand.vmem [shape: bf16[3,3,8,4], index: 2, kind: input, shape index: {}]
  %s3 = inlined_call_operand.vmem [shape: bf16[3,3,4,4], index: 3, kind: input, shape index: {}]
  %s4 = inlined_call_operand.vmem [shape: f32[2,16,16,8], index: 4, kind: output, shape index: {}]
  %s5 = sld [smem:[#allocation0]]
  $region49: #{inception_block.1} parent=0
    _
  %s7 = ssub.s32 1, %s5
  %s8 = scalar_select 0, %s7, %s5
  loop: start=0, step=1, limit=6
  $region2: #{inception_block.1} parent=0 // loop_pre_header
    _
  $region3: #{inception_block.1} parent=0 // loop_header
    %s10 = sphi 0, %s14
    %p11 = scmp.ge.s32.totalorder %s10, 6
    %s17 = sphi 0, %s29
    %s18 = sphi 0, %s25
    %s19 = sphi 0, %s17
    %s20 = sphi 0, %s18
    %s21 = sphi 0, %s19
    %s22 = sphi 0, %s20
    %s32 = sphi 0, %s34
    %s35 = sphi 0, %s32
    %s36 = sphi 0, %s35
    %s52 = sphi 0, %s36
    %s56 = sphi 0, %s56
    %s58 = sphi 0, %s56
    %s59 = sphi 0, %s58
    %s73 = sphi 0, %s59
    %s77 = sphi 0, %s77
    %s79 = sphi 0, %s77
    %s80 = sphi 0, %s79
    %s94 = sphi 0, %s80
    %s98 = sphi 0, %s98
    %s100 = sphi 0, %s98
    %s101 = sphi 0, %s100
    %s115 = sphi 0, %s101
    %s123 = sphi 0, %s125
    %s126 = sphi 0, %s123
    %s127 = sphi 0, %s126
    %s143 = sphi 0, %s127
  $region4: #{inception_block.1} parent=0 // loop_header_branch
    %13 = sbr.rel (%p11) target = $region8
  $region5: #{inception_block.1} parent=0 // loop_body
    %s15 = ssub.s32 %s10, 1
    %s16 = ssub.s32 %s10, 2
    %s23 = sadd.s32 1, %s18
    %p24 = scmp.ge.s32.totalorder %s23, 2
    %s25 = scalar_select %p24, 0, %s23
    %s26 = sadd.s32 1, %s17
    %s27 = scalar_select %p24, %s26, %s17
    %p28 = scmp.ge.s32.totalorder %s27, 2
    %s29 = scalar_select %p28, 0, %s27
    %s30 = ssub.s32 %s17, %s29
    %p31 = scmp.eq.s32.totalorder %s30, 0
    %s33 = sadd.s32 %s32, 1
    %s34 = scalar_select %p31, %s32, %s33
    %p37 = pneg %p31
    %p38 = scmp.eq.s32.totalorder %s10, 3
    %p39 = por %p37, %p38
    %p40 = scmp.ne.s32.totalorder %s32, %s35
    %p41 = scmp.eq.s32.totalorder %s10, 0
    %p42 = por %p40, %p41
    %p43 = scmp.ne.s32.totalorder %s32, %s35
    %p44 = scmp.eq.s32.totalorder %s15, 3
    %p45 = por %p43, %p44
    %p46 = scmp.ne.s32.totalorder %s35, %s36
    %p47 = scmp.eq.s32.totalorder %s15, 0
    %p48 = por %p46, %p47
    %p49 = scmp.ne.s32.totalorder %s35, %s36
    %p50 = scmp.eq.s32.totalorder %s16, 3
    %p51 = por %p49, %p50
    %p53 = scmp.ne.s32.totalorder %s36, %s52
    %p54 = scmp.eq.s32.totalorder %s16, 0
    %p55 = por %p53, %p54
    %s57 = sadd.s32 %s56, 1
    %p60 = scmp.eq.s32.totalorder %s10, 3
    %p61 = scmp.ne.s32.totalorder %s56, %s58
    %p62 = scmp.eq.s32.totalorder %s10, 0
    %p63 = por %p61, %p62
    %p64 = scmp.ne.s32.totalorder %s56, %s58
    %p65 = scmp.eq.s32.totalorder %s15, 3
    %p66 = por %p64, %p65
    %p67 = scmp.ne.s32.totalorder %s58, %s59
    %p68 = scmp.eq.s32.totalorder %s15, 0
    %p69 = por %p67, %p68
    %p70 = scmp.ne.s32.totalorder %s58, %s59
    %p71 = scmp.eq.s32.totalorder %s16, 3
    %p72 = por %p70, %p71
    %p74 = scmp.ne.s32.totalorder %s59, %s73
    %p75 = scmp.eq.s32.totalorder %s16, 0
    %p76 = por %p74, %p75
    %s78 = sadd.s32 %s77, 1
    %p81 = scmp.eq.s32.totalorder %s10, 3
    %p82 = scmp.ne.s32.totalorder %s77, %s79
    %p83 = scmp.eq.s32.totalorder %s10, 0
    %p84 = por %p82, %p83
    %p85 = scmp.ne.s32.totalorder %s77, %s79
    %p86 = scmp.eq.s32.totalorder %s15, 3
    %p87 = por %p85, %p86
    %p88 = scmp.ne.s32.totalorder %s79, %s80
    %p89 = scmp.eq.s32.totalorder %s15, 0
    %p90 = por %p88, %p89
    %p91 = scmp.ne.s32.totalorder %s79, %s80
    %p92 = scmp.eq.s32.totalorder %s16, 3
    %p93 = por %p91, %p92
    %p95 = scmp.ne.s32.totalorder %s80, %s94
    %p96 = scmp.eq.s32.totalorder %s16, 0
    %p97 = por %p95, %p96
    %s99 = sadd.s32 %s98, 1
    %p102 = scmp.eq.s32.totalorder %s10, 3
    %p103 = scmp.ne.s32.totalorder %s98, %s100
    %p104 = scmp.eq.s32.totalorder %s10, 0
    %p105 = por %p103, %p104
    %p106 = scmp.ne.s32.totalorder %s98, %s100
    %p107 = scmp.eq.s32.totalorder %s15, 3
    %p108 = por %p106, %p107
    %p109 = scmp.ne.s32.totalorder %s100, %s101
    %p110 = scmp.eq.s32.totalorder %s15, 0
    %p111 = por %p109, %p110
    %p112 = scmp.ne.s32.totalorder %s100, %s101
    %p113 = scmp.eq.s32.totalorder %s16, 3
    %p114 = por %p112, %p113
    %p116 = scmp.ne.s32.totalorder %s101, %s115
    %p117 = scmp.eq.s32.totalorder %s16, 0
    %p118 = por %p116, %p117
    %s119 = ssub.s32 %s17, %s29
    %s120 = ssub.s32 %s18, %s25
    %s121 = sor.u32 %s119, %s120
    %p122 = scmp.eq.s32.totalorder %s121, 0
    %s124 = sadd.s32 %s123, 1
    %s125 = scalar_select %p122, %s123, %s124
    %p128 = pneg %p122
    %p129 = scmp.eq.s32.totalorder %s10, 3
    %p130 = por %p128, %p129
    %p131 = scmp.ne.s32.totalorder %s123, %s126
    %p132 = scmp.eq.s32.totalorder %s10, 0
    %p133 = por %p131, %p132
    %p134 = scmp.ne.s32.totalorder %s123, %s126
    %p135 = scmp.eq.s32.totalorder %s15, 3
    %p136 = por %p134, %p135
    %p137 = scmp.ne.s32.totalorder %s126, %s127
    %p138 = scmp.eq.s32.totalorder %s15, 0
    %p139 = por %p137, %p138
    %p140 = scmp.ne.s32.totalorder %s126, %s127
    %p141 = scmp.eq.s32.totalorder %s16, 3
    %p142 = por %p140, %p141
    %p144 = scmp.ne.s32.totalorder %s127, %s143
    %p145 = scmp.eq.s32.totalorder %s16, 0
    %p146 = por %p144, %p145
    %p147 = scmp.le.s32.totalorder 1, %s10
    %p148 = scmp.lt.s32.totalorder %s10, 5
    %p149 = pnand %p147, %p148
    %p150 = pneg %p149
    // Predicated region
    $region9: #{inception_block.1} parent=5 // pred_check
      _
    $region10: #{inception_block.1} parent=5 // pred_check_branch
      %152 = sbr.rel (%p149) target = $region12
    $region11: #{inception_block.1} parent=5 // pred_region
      %s153 = ssub.s32 %s10, 1
      // Predicated region
      $region13: #{inception_block.1} parent=11 // pred_check
        %p154 = pneg %p69
      $region14: #{inception_block.1} parent=11 // pred_check_branch
        %156 = sbr.rel (%p154) target = $region16
      $region15: #{inception_block.1} parent=11 // pred_region
        _
      $region16: #{inception_block.1} parent=11 // pred_fallthru
        _
      // Predicated region
      $region17: #{inception_block.1} parent=11 // pred_check
        %p157 = pneg %p90
      $region18: #{inception_block.1} parent=11 // pred_check_branch
        %159 = sbr.rel (%p157) target = $region20
      $region19: #{inception_block.1} parent=11 // pred_region
        _
      $region20: #{inception_block.1} parent=11 // pred_fallthru
        _
      // Predicated region
      $region21: #{inception_block.1} parent=11 // pred_check
        %p160 = pneg %p111
      $region22: #{inception_block.1} parent=11 // pred_check_branch
        %162 = sbr.rel (%p160) target = $region24
      $region23: #{inception_block.1} parent=11 // pred_region
        _
      $region24: #{inception_block.1} parent=11 // pred_fallthru
        _
    $region12: #{inception_block.1} parent=5 // pred_fallthru
      _
    %p163 = scmp.lt.s32.totalorder %s10, 4
    // Predicated region
    $region25: #{inception_block.1} parent=5 // pred_check
      %p164 = pneg %p163
    $region26: #{inception_block.1} parent=5 // pred_check_branch
      %166 = sbr.rel (%p164) target = $region28
    $region27: #{inception_block.1} parent=5 // pred_region
      // Predicated region
      $region29: #{inception_block.1} parent=27 // pred_check
        %p167 = pneg %p42
      $region30: #{inception_block.1} parent=27 // pred_check_branch
        %169 = sbr.rel (%p167) target = $region32
      $region31: #{inception_block.1} parent=27 // pred_region
        %p170 = scmp.lt.s32.totalorder %s17, 1
        %s171 = scalar_select %p170, %s17, 1
        %s172 = smul.addr %s171, 40
        %s173 = smul.addr %s172, 4
        %s174 = scalar_lea.vmem %s0, %s173
      $region32: #{inception_block.1} parent=27 // pred_fallthru
        _
    $region28: #{inception_block.1} parent=5 // pred_fallthru
      _
    %p175 = scmp.le.s32.totalorder 1, %s10
    %p176 = scmp.lt.s32.totalorder %s10, 5
    %p177 = pnand %p175, %p176
    %p178 = pneg %p177
    // Predicated region
    $region33: #{inception_block.1} parent=5 // pred_check
      _
    $region34: #{inception_block.1} parent=5 // pred_check_branch
      %180 = sbr.rel (%p177) target = $region36
    $region35: #{inception_block.1} parent=5 // pred_region
      %s181 = ssub.s32 %s10, 1
      %p182 = scmp.lt.s32.totalorder %s19, 1
      %s183 = scalar_select %p182, %s19, 1
      %s184 = smul.addr %s183, 40
      %s185 = smul.addr %s184, 4
      %s186 = scalar_lea.vmem %s0, %s185
      %p187 = pneg %p48
      %p188 = pneg %p45
      %p189 = pneg %p69
      %p190 = pneg %p66
      %p191 = pneg %p90
      %p192 = pneg %p87
      %p193 = pneg %p111
      %p194 = pneg %p108
      %p195 = pneg %p139
      %p196 = pneg %p136
      %s197 = smul.u32 8, %s20
      %p198 = scmp.lt.s32.totalorder %s19, 1
      %s199 = scalar_select %p198, %s19, 1
      %p200 = scmp.lt.s32.totalorder %s197, 15
      %s201 = scalar_select %p200, %s197, 15
      %s202 = smul.addr %s201, 2
      %s203 = smul.addr %s199, 32
      %s204 = sadd.s32 %s202, %s203
      %s205 = smul.addr %s204, 8
      %s206 = scalar_lea.vmem %s4, %s205
      %p207 = scmp.lt.s32.totalorder %s19, 1
      %s208 = scalar_select %p207, %s19, 1
      %s209 = smul.addr %s208, 40
      %s210 = smul.addr %s209, 4
      %s211 = scalar_lea.vmem %s0, %s210
      %s212 = smul.u32 8, %s20
      %p213 = scmp.lt.s32.totalorder %s19, 1
      %s214 = scalar_select %p213, %s19, 1
      %p215 = scmp.lt.s32.totalorder %s212, 15
      %s216 = scalar_select %p215, %s212, 15
      %s217 = smul.addr %s216, 2
      %s218 = smul.addr %s214, 32
      %s219 = sadd.s32 %s217, %s218
      %s220 = smul.addr %s219, 8
      %s221 = scalar_lea.vmem %s4, %s220
      %s222 = smul.u32 8, %s20
      %s224 = smul.u32 %s20, 8
      %s225 = smul.u32 %s224, 2
      %s226 = smul.addr %s225, 4
      %s227 = scalar_lea.vmem %s211, %s226
      %v228 = vld [vmem:[%s227] sm:$0xf]
      %v229 = vld [vmem:[%s227 + $0x4] sm:$0xf]
      %v230 = vld [vmem:[%s227 + $0x8] sm:$0xf]
      %v231 = vld [vmem:[%s227 + $0xc] sm:$0xf]
      %v232 = vld [vmem:[%s227 + $0x10] sm:$0xf]
      %v233 = vld [vmem:[%s227 + $0x14] sm:$0xf]
      %v234 = vld [vmem:[%s227 + $0x18] sm:$0xf]
      %v235 = vld [vmem:[%s227 + $0x1c] sm:$0xf]
      %v236 = vld [vmem:[%s227 + $0x20] sm:$0xf]
      %v237 = vld [vmem:[%s227 + $0x24] sm:$0xf]
      %v238 = vld [vmem:[%s227 + $0x28] sm:$0xf]
      %v239 = vld [vmem:[%s227 + $0x2c] sm:$0xf]
      %v240 = vld [vmem:[%s227 + $0x30] sm:$0xf]
      %v241 = vld [vmem:[%s227 + $0x34] sm:$0xf]
      %v242 = vld [vmem:[%s227 + $0x38] sm:$0xf]
      %v243 = vld [vmem:[%s227 + $0x3c] sm:$0xf]
      %v244 = vld [vmem:[%s227 + $0x40] sm:$0xf]
      %v245 = vld [vmem:[%s227 + $0x44] sm:$0xf]
      %v246 = vld [vmem:[%s227 + $0x48] sm:$0xf]
      %v247 = vld [vmem:[%s227 + $0x4c] sm:$0xf]
      %v248 = vld [vmem:[%s227 + $0x50] sm:$0xf]
      %v249 = vld [vmem:[%s227 + $0x54] sm:$0xf]
      %v250 = vld [vmem:[%s227 + $0x58] sm:$0xf]
      %v251 = vld [vmem:[%s227 + $0x5c] sm:$0xf]
      %v276 = vunpack.c.l.b16 %v228
      %v277 = vunpack.c.l.b16 %v229
      %v278 = vunpack.c.l.b16 %v230
      %v279 = vunpack.c.l.b16 %v231
      %v280 = vunpack.c.l.b16 %v232
      %v281 = vunpack.c.l.b16 %v233
      %v282 = vunpack.c.l.b16 %v234
      %v283 = vunpack.c.l.b16 %v235
      %v284 = vunpack.c.l.b16 %v236
      %v285 = vunpack.c.l.b16 %v237
      %v286 = vunpack.c.l.b16 %v238
      %v287 = vunpack.c.l.b16 %v239
      %v288 = vunpack.c.l.b16 %v240
      %v289 = vunpack.c.l.b16 %v241
      %v290 = vunpack.c.l.b16 %v242
      %v291 = vunpack.c.l.b16 %v243
      %v292 = vunpack.c.l.b16 %v244
      %v293 = vunpack.c.l.b16 %v245
      %v294 = vunpack.c.l.b16 %v246
      %v295 = vunpack.c.l.b16 %v247
      %v296 = vunpack.c.l.b16 %v248
      %v297 = vunpack.c.l.b16 %v249
      %v298 = vunpack.c.l.b16 %v250
      %v299 = vunpack.c.l.b16 %v251
      %v300 = vpack.c.b16 %v277, %v276
      %v301 = vpack.c.b16 %v279, %v278
      %v302 = vpack.c.b16 %v281, %v280
      %v303 = vpack.c.b16 %v283, %v282
      %v304 = vpack.c.b16 %v285, %v284
      %v305 = vpack.c.b16 %v287, %v286
      %v306 = vpack.c.b16 %v289, %v288
      %v307 = vpack.c.b16 %v291, %v290
      %v308 = vpack.c.b16 %v293, %v292
      %v309 = vpack.c.b16 %v295, %v294
      %v310 = vpack.c.b16 %v297, %v296
      %v311 = vpack.c.b16 %v299, %v298
      %v313 = vshrl.u32 %v300, 16
      %v315 = vrot.slane %v313, 7
      %v316 = vshll.u32 %v300, 16
      %v318 = vor.u32 %v315, %v316
      %v320 = vshrl.u32 %v301, 16
      %v322 = vrot.slane %v320, 7
      %v323 = vshll.u32 %v301, 16
      %v325 = vor.u32 %v322, %v323
      %v327 = vshrl.u32 %v302, 16
      %v329 = vrot.slane %v327, 7
      %v330 = vshll.u32 %v302, 16
      %v332 = vor.u32 %v329, %v330
      %v334 = vshrl.u32 %v303, 16
      %v336 = vrot.slane %v334, 7
      %v337 = vshll.u32 %v303, 16
      %v339 = vor.u32 %v336, %v337
      %v341 = vshrl.u32 %v304, 16
      %v343 = vrot.slane %v341, 7
      %v344 = vshll.u32 %v304, 16
      %v346 = vor.u32 %v343, %v344
      %v348 = vshrl.u32 %v305, 16
      %v350 = vrot.slane %v348, 7
      %v351 = vshll.u32 %v305, 16
      %v353 = vor.u32 %v350, %v351
      %v355 = vshrl.u32 %v306, 16
      %v357 = vrot.slane %v355, 7
      %v358 = vshll.u32 %v306, 16
      %v360 = vor.u32 %v357, %v358
      %v362 = vshrl.u32 %v307, 16
      %v364 = vrot.slane %v362, 7
      %v365 = vshll.u32 %v307, 16
      %v367 = vor.u32 %v364, %v365
      %v369 = vshrl.u32 %v308, 16
      %v371 = vrot.slane %v369, 7
      %v372 = vshll.u32 %v308, 16
      %v374 = vor.u32 %v371, %v372
      %v376 = vshrl.u32 %v309, 16
      %v378 = vrot.slane %v376, 7
      %v379 = vshll.u32 %v309, 16
      %v381 = vor.u32 %v378, %v379
      %v383 = vshrl.u32 %v310, 16
      %v385 = vrot.slane %v383, 7
      %v386 = vshll.u32 %v310, 16
      %v388 = vor.u32 %v385, %v386
      %v390 = vshrl.u32 %v311, 16
      %v392 = vrot.slane %v390, 7
      %v393 = vshll.u32 %v311, 16
      %v395 = vor.u32 %v392, %v393
      %vm408 = vcmask 1040384
      %vm409 = vsmask.f32 256
      %vm410 = vmand %vm408, %vm409
      %v411 = vsel %vm410, %v228, %v318
      %v412 = vsel %vm410, %v230, %v325
      %v413 = vsel %vm410, %v232, %v332
      %v414 = vsel %vm410, %v234, %v339
      %v415 = vsel %vm410, %v236, %v346
      %v416 = vsel %vm410, %v238, %v353
      %v417 = vsel %vm410, %v240, %v360
      %v418 = vsel %vm410, %v242, %v367
      %v419 = vsel %vm410, %v244, %v374
      %v420 = vsel %vm410, %v246, %v381
      %v421 = vsel %vm410, %v248, %v388
      %v422 = vsel %vm410, %v250, %v395
      %v423 = vrot.slane %v316, 1
      %v424 = vor.u32 %v313, %v423
      %v425 = vrot.slane %v323, 1
      %v426 = vor.u32 %v320, %v425
      %v427 = vrot.slane %v330, 1
      %v428 = vor.u32 %v327, %v427
      %v429 = vrot.slane %v337, 1
      %v430 = vor.u32 %v334, %v429
      %v431 = vrot.slane %v344, 1
      %v432 = vor.u32 %v341, %v431
      %v433 = vrot.slane %v351, 1
      %v434 = vor.u32 %v348, %v433
      %v435 = vrot.slane %v358, 1
      %v436 = vor.u32 %v355, %v435
      %v437 = vrot.slane %v365, 1
      %v438 = vor.u32 %v362, %v437
      %v439 = vrot.slane %v372, 1
      %v440 = vor.u32 %v369, %v439
      %v441 = vrot.slane %v379, 1
      %v442 = vor.u32 %v376, %v441
      %v443 = vrot.slane %v386, 1
      %v444 = vor.u32 %v383, %v443
      %v445 = vrot.slane %v393, 1
      %v446 = vor.u32 %v390, %v445
      %v459 = vpack.c.b16 %v277, %v277
      %v460 = vpack.c.b16 %v279, %v279
      %v461 = vpack.c.b16 %v281, %v281
      %v462 = vpack.c.b16 %v283, %v283
      %v463 = vpack.c.b16 %v285, %v285
      %v464 = vpack.c.b16 %v287, %v287
      %v465 = vpack.c.b16 %v289, %v289
      %v466 = vpack.c.b16 %v291, %v291
      %v467 = vpack.c.b16 %v293, %v293
      %v468 = vpack.c.b16 %v295, %v295
      %v469 = vpack.c.b16 %v297, %v297
      %v470 = vpack.c.b16 %v299, %v299
      %vm483 = vcmask 1047552
      %vm484 = vsmask.f32 7424
      %vm485 = vmand %vm483, %vm484
      %v486 = vsel %vm485, %v424, %v459
      %v487 = vsel %vm485, %v426, %v460
      %v488 = vsel %vm485, %v428, %v461
      %v489 = vsel %vm485, %v430, %v462
      %v490 = vsel %vm485, %v432, %v463
      %v491 = vsel %vm485, %v434, %v464
      %v492 = vsel %vm485, %v436, %v465
      %v493 = vsel %vm485, %v438, %v466
      %v494 = vsel %vm485, %v440, %v467
      %v495 = vsel %vm485, %v442, %v468
      %v496 = vsel %vm485, %v444, %v469
      %v497 = vsel %vm485, %v446, %v470
      %v498 = vld [vmem:[%s1] sm:$0x3]
      %v499 = vld [vmem:[%s1 + $0x2] sm:$0x3]
      %v500 = vld [vmem:[%s1 + $0x4] sm:$0x3]
      %v501 = vld [vmem:[%s1 + $0x6] sm:$0x3]
      %v502 = vld [vmem:[%s1 + $0x8] sm:$0x3]
      %v503 = vld [vmem:[%s1 + $0xa] sm:$0x3]
      %v504 = vld [vmem:[%s1 + $0xc] sm:$0x3]
      %v505 = vld [vmem:[%s1 + $0xe] sm:$0x3]
      %v506 = vld [vmem:[%s1 + $0x10] sm:$0x3]
      %v507 = vld [vmem:[%s2] sm:$0xf]
      %v508 = vld [vmem:[%s2 + $0x4] sm:$0xf]
      %v509 = vld [vmem:[%s2 + $0x8] sm:$0xf]
      %v510 = vld [vmem:[%s2 + $0xc] sm:$0xf]
      %v511 = vld [vmem:[%s2 + $0x10] sm:$0xf]
      %v512 = vld [vmem:[%s2 + $0x14] sm:$0xf]
      %v513 = vld [vmem:[%s2 + $0x18] sm:$0xf]
      %v514 = vld [vmem:[%s2 + $0x1c] sm:$0xf]
      %v515 = vld [vmem:[%s2 + $0x20] sm:$0xf]
      %v516 = vld [vmem:[%s3] sm:$0x3]
      %v517 = vld [vmem:[%s3 + $0x2] sm:$0x3]
      %v518 = vld [vmem:[%s3 + $0x4] sm:$0x3]
      %v519 = vld [vmem:[%s3 + $0x6] sm:$0x3]
      %v520 = vld [vmem:[%s3 + $0x8] sm:$0x3]
      %v521 = vld [vmem:[%s3 + $0xa] sm:$0x3]
      %v522 = vld [vmem:[%s3 + $0xc] sm:$0x3]
      %v523 = vld [vmem:[%s3 + $0xe] sm:$0x3]
      %v524 = vld [vmem:[%s3 + $0x10] sm:$0x3]
      %vm525 = vcmask 31744
      %v526 = vsel %vm525, %v300, 0
      %v528 = vsel %vm525, %v301, 0
      %v530 = vsel %vm525, %v302, 0
      %v532 = vsel %vm525, %v303, 0
      %v534 = vsel %vm525, %v304, 0
      %v536 = vsel %vm525, %v305, 0
      %v538 = vsel %vm525, %v306, 0
      %v540 = vsel %vm525, %v307, 0
      %v542 = vsel %vm525, %v308, 0
      %v544 = vsel %vm525, %v309, 0
      %vm546 = vcmask 1041408
      %v548 = vsel %vm546, %v499, 0
      %550 = vmatprep.subr.bf16.mxu0 0
      %551 = vmatpush1.bf16.msra.mxu0 %v548
      %552 = vmatprep.subr.bf16.mxu0 0
      %553 = vmatpush1.bf16.msra.mxu0 0
      %554 = vmatprep.subr.bf16.mxu0 0
      %555 = vmatpush1.bf16.msra.mxu0 0
      %556 = vmatprep.subr.bf16.mxu0 0
      %557 = vmatpush1.bf16.msra.mxu0 0
      %558 = vmatprep.subr.bf16.mxu0 0
      %559 = vmatpush1.bf16.msra.mxu0 0
      %560 = vmatprep.subr.bf16.mxu0 0
      %561 = vmatpush1.bf16.msra.mxu0 0
      %562 = vmatprep.subr.bf16.mxu0 0
      %563 = vmatpush1.bf16.msra.mxu0 0
      %564 = vmatprep.subr.bf16.mxu0 0
      %565 = vmatpush1.bf16.msra.mxu0 0
      %566 = vmatprep.subr.bf16.mxu0 0
      %567 = vmatpush1.bf16.msra.mxu0 0
      %568 = vmatprep.subr.bf16.mxu0 0
      %569 = vmatpush1.bf16.msra.mxu0 0
      %570 = vmatprep.subr.bf16.mxu0 0
      %571 = vmatpush1.bf16.msra.mxu0 0
      %572 = vmatprep.subr.bf16.mxu0 0
      %573 = vmatpush1.bf16.msra.mxu0 0
      %574 = vmatprep.subr.bf16.mxu0 0
      %575 = vmatpush1.bf16.msra.mxu0 0
      %576 = vmatprep.subr.bf16.mxu0 0
      %577 = vmatpush1.bf16.msra.mxu0 0
      %578 = vmatprep.subr.bf16.mxu0 0
      %579 = vmatpush1.bf16.msra.mxu0 0
      %580 = vmatprep.subr.bf16.mxu0 0
      %581 = vmatpush1.bf16.msra.mxu0 0
      %582 = vmatprep.mubr.bf16.mxu0 0
      %583 = vmatmul.mubr.bf16.gmra.mrb[0].mxu0 %v526
      %v584 = vpop.f32.mrb[0].mxu0
      %v585 = vadd.f32 0.0, %v584
      %v586 = vpop.f32.mrb[0].mxu0
      %v587 = vpop.f32.mrb[0].mxu0
      %v588 = vadd.f32 0.0, %v587
      %v589 = vpop.f32.mrb[0].mxu0
      %590 = vmatprep.mubr.bf16.mxu0 0
      %591 = vmatmul.mubr.bf16.gmra.mrb[0].mxu0 %v528
      %v592 = vpop.f32.mrb[0].mxu0
      %v593 = vadd.f32 0.0, %v592
      %v594 = vpop.f32.mrb[0].mxu0
      %v595 = vpop.f32.mrb[0].mxu0
      %v596 = vadd.f32 0.0, %v595
      %v597 = vpop.f32.mrb[0].mxu0
      %598 = vmatprep.mubr.bf16.mxu0 0
      %599 = vmatmul.mubr.bf16.gmra.mrb[0].mxu0 %v530
      %v600 = vpop.f32.mrb[0].mxu0
      %v601 = vadd.f32 0.0, %v600
      %v602 = vpop.f32.mrb[0].mxu0
      %v603 = vpop.f32.mrb[0].mxu0
      %v604 = vadd.f32 0.0, %v603
      %v605 = vpop.f32.mrb[0].mxu0
      %606 = vmatprep.mubr.bf16.mxu0 0
      %607 = vmatmul.mubr.bf16.gmra.mrb[0].mxu0 %v532
      %v608 = vpop.f32.mrb[0].mxu0
      %v609 = vadd.f32 0.0, %v608
      %v610 = vpop.f32.mrb[0].mxu0
      %v611 = vpop.f32.mrb[0].mxu0
      %v612 = vadd.f32 0.0, %v611
      %v613 = vpop.f32.mrb[0].mxu0
      %614 = vmatprep.mubr.bf16.mxu0 0
      %615 = vmatmul.mubr.bf16.gmra.mrb[0].mxu0 %v534
      %v616 = vpop.f32.mrb[0].mxu0
      %v617 = vadd.f32 0.0, %v616
      %v618 = vpop.f32.mrb[0].mxu0
      %v619 = vpop.f32.mrb[0].mxu0
      %v620 = vadd.f32 0.0, %v619
      %v621 = vpop.f32.mrb[0].mxu0
      %622 = vmatprep.mubr.bf16.mxu0 0
      %623 = vmatmul.mubr.bf16.gmra.mrb[0].mxu0 %v536
      %v624 = vpop.f32.mrb[0].mxu0
      %v625 = vadd.f32 0.0, %v624
      %v626 = vpop.f32.mrb[0].mxu0
      %v627 = vpop.f32.mrb[0].mxu0
      %v628 = vadd.f32 0.0, %v627
      %v629 = vpop.f32.mrb[0].mxu0
      %630 = vmatprep.mubr.bf16.mxu0 0
      %631 = vmatmul.mubr.bf16.gmra.mrb[0].mxu0 %v538
      %v632 = vpop.f32.mrb[0].mxu0
      %v633 = vadd.f32 0.0, %v632
      %v634 = vpop.f32.mrb[0].mxu0
      %v635 = vpop.f32.mrb[0].mxu0
      %v636 = vadd.f32 0.0, %v635
      %v637 = vpop.f32.mrb[0].mxu0
      %638 = vmatprep.mubr.bf16.mxu0 0
      %639 = vmatmul.mubr.bf16.gmra.mrb[0].mxu0 %v540
      %v640 = vpop.f32.mrb[0].mxu0
      %v641 = vadd.f32 0.0, %v640
      %v642 = vpop.f32.mrb[0].mxu0
      %v643 = vpop.f32.mrb[0].mxu0
      %v644 = vadd.f32 0.0, %v643
      %v645 = vpop.f32.mrb[0].mxu0
      %646 = vmatprep.mubr.bf16.mxu0 0
      %647 = vmatmul.mubr.bf16.gmra.mrb[0].mxu0 %v542
      %v648 = vpop.f32.mrb[0].mxu0
      %v649 = vadd.f32 0.0, %v648
      %v650 = vpop.f32.mrb[0].mxu0
      %v651 = vpop.f32.mrb[0].mxu0
      %v652 = vadd.f32 0.0, %v651
      %v653 = vpop.f32.mrb[0].mxu0
      %654 = vmatprep.mubr.bf16.mxu0 0
      %655 = vmatmul.mubr.bf16.gmra.mrb[0].mxu0 %v544
      %v656 = vpop.f32.mrb[0].mxu0
      %v657 = vadd.f32 0.0, %v656
      %v658 = vpop.f32.mrb[0].mxu0
      %v659 = vpop.f32.mrb[0].mxu0
      %v660 = vadd.f32 0.0, %v659
      %v661 = vpop.f32.mrb[0].mxu0
      %662 = vdwg.mxu0
      %v664 = vsel %vm525, %v411, 0
      %v667 = vsel %vm525, %v412, 0
      %v670 = vsel %vm525, %v413, 0
      %v673 = vsel %vm525, %v414, 0
      %v676 = vsel %vm525, %v415, 0
      %v679 = vsel %vm525, %v416, 0
      %v682 = vsel %vm525, %v417, 0
      %v685 = vsel %vm525, %v418, 0
      %v688 = vsel %vm525, %v419, 0
      %v691 = vsel %vm525, %v420, 0
      %v694 = vsel %vm546, %v498, 0
      %696 = vmatprep.subr.bf16.mxu0 0
      %697 = vmatpush1.bf16.msra.mxu0 %v694
      %698 = vmatprep.subr.bf16.mxu0 0
      %699 = vmatpush1.bf16.msra.mxu0 0
      %700 = vmatprep.subr.bf16.mxu0 0
      %701 = vmatpush1.bf16.msra.mxu0 0
      %702 = vmatprep.subr.bf16.mxu0 0
      %703 = vmatpush1.bf16.msra.mxu0 0
      %704 = vmatprep.subr.bf16.mxu0 0
      %705 = vmatpush1.bf16.msra.mxu0 0
      %706 = vmatprep.subr.bf16.mxu0 0
      %707 = vmatpush1.bf16.msra.mxu0 0
      %708 = vmatprep.subr.bf16.mxu0 0
      %709 = vmatpush1.bf16.msra.mxu0 0
      %710 = vmatprep.subr.bf16.mxu0 0
      %711 = vmatpush1.bf16.msra.mxu0 0
      %712 = vmatprep.subr.bf16.mxu0 0
      %713 = vmatpush1.bf16.msra.mxu0 0
      %714 = vmatprep.subr.bf16.mxu0 0
      %715 = vmatpush1.bf16.msra.mxu0 0
      %716 = vmatprep.subr.bf16.mxu0 0
      %717 = vmatpush1.bf16.msra.mxu0 0
      %718 = vmatprep.subr.bf16.mxu0 0
      %719 = vmatpush1.bf16.msra.mxu0 0
      %720 = vmatprep.subr.bf16.mxu0 0
      %721 = vmatpush1.bf16.msra.mxu0 0
      %722 = vmatprep.subr.bf16.mxu0 0
      %723 = vmatpush1.bf16.msra.mxu0 0
      %724 = vmatprep.subr.bf16.mxu0 0
      %725 = vmatpush1.bf16.msra.mxu0 0
      %726 = vmatprep.subr.bf16.mxu0 0
      %727 = vmatpush1.bf16.msra.mxu0 0
      %728 = vmatprep.mubr.bf16.mxu0 0
      %729 = vmatmul.mubr.bf16.gmra.mrb[0].mxu0 %v664
      %v730 = vpop.f32.mrb[0].mxu0
      %v731 = vadd.f32 %v585, %v730
      %v732 = vpop.f32.mrb[0].mxu0
      %v733 = vpop.f32.mrb[0].mxu0
      %v734 = vadd.f32 %v588, %v733
      %v735 = vpop.f32.mrb[0].mxu0
      %736 = vmatprep.mubr.bf16.mxu0 0
      %737 = vmatmul.mubr.bf16.gmra.mrb[0].mxu0 %v667
      %v738 = vpop.f32.mrb[0].mxu0
      %v739 = vadd.f32 %v593, %v738
      %v740 = vpop.f32.mrb[0].mxu0
      %v741 = vpop.f32.mrb[0].mxu0
      %v742 = vadd.f32 %v596, %v741
      %v743 = vpop.f32.mrb[0].mxu0
      %744 = vmatprep.mubr.bf16.mxu0 0
      %745 = vmatmul.mubr.bf16.gmra.mrb[0].mxu0 %v670
      %v746 = vpop.f32.mrb[0].mxu0
      %v747 = vadd.f32 %v601, %v746
      %v748 = vpop.f32.mrb[0].mxu0
      %v749 = vpop.f32.mrb[0].mxu0
      %v750 = vadd.f32 %v604, %v749
      %v751 = vpop.f32.mrb[0].mxu0
      %752 = vmatprep.mubr.bf16.mxu0 0
      %753 = vmatmul.mubr.bf16.gmra.mrb[0].mxu0 %v673
      %v754 = vpop.f32.mrb[0].mxu0
      %v755 = vadd.f32 %v609, %v754
      %v756 = vpop.f32.mrb[0].mxu0
      %v757 = vpop.f32.mrb[0].mxu0
      %v758 = vadd.f32 %v612, %v757
      %v759 = vpop.f32.mrb[0].mxu0
      %760 = vmatprep.mubr.bf16.mxu0 0
      %761 = vmatmul.mubr.bf16.gmra.mrb[0].mxu0 %v676
      %v762 = vpop.f32.mrb[0].mxu0
      %v763 = vadd.f32 %v617, %v762
      %v764 = vpop.f32.mrb[0].mxu0
      %v765 = vpop.f32.mrb[0].mxu0
      %v766 = vadd.f32 %v620, %v765
      %v767 = vpop.f32.mrb[0].mxu0
      %768 = vmatprep.mubr.bf16.mxu0 0
      %769 = vmatmul.mubr.bf16.gmra.mrb[0].mxu0 %v679
      %v770 = vpop.f32.mrb[0].mxu0
      %v771 = vadd.f32 %v625, %v770
      %v772 = vpop.f32.mrb[0].mxu0
      %v773 = vpop.f32.mrb[0].mxu0
      %v774 = vadd.f32 %v628, %v773
      %v775 = vpop.f32.mrb[0].mxu0
      %776 = vmatprep.mubr.bf16.mxu0 0
      %777 = vmatmul.mubr.bf16.gmra.mrb[0].mxu0 %v682
      %v778 = vpop.f32.mrb[0].mxu0
      %v779 = vadd.f32 %v633, %v778
      %v780 = vpop.f32.mrb[0].mxu0
      %v781 = vpop.f32.mrb[0].mxu0
      %v782 = vadd.f32 %v636, %v781
      %v783 = vpop.f32.mrb[0].mxu0
      %784 = vmatprep.mubr.bf16.mxu0 0
      %785 = vmatmul.mubr.bf16.gmra.mrb[0].mxu0 %v685
      %v786 = vpop.f32.mrb[0].mxu0
      %v787 = vadd.f32 %v641, %v786
      %v788 = vpop.f32.mrb[0].mxu0
      %v789 = vpop.f32.mrb[0].mxu0
      %v790 = vadd.f32 %v644, %v789
      %v791 = vpop.f32.mrb[0].mxu0
      %792 = vmatprep.mubr.bf16.mxu0 0
      %793 = vmatmul.mubr.bf16.gmra.mrb[0].mxu0 %v688
      %v794 = vpop.f32.mrb[0].mxu0
      %v795 = vadd.f32 %v649, %v794
      %v796 = vpop.f32.mrb[0].mxu0
      %v797 = vpop.f32.mrb[0].mxu0
      %v798 = vadd.f32 %v652, %v797
      %v799 = vpop.f32.mrb[0].mxu0
      %800 = vmatprep.mubr.bf16.mxu0 0
      %801 = vmatmul.mubr.bf16.gmra.mrb[0].mxu0 %v691
      %v802 = vpop.f32.mrb[0].mxu0
      %v803 = vadd.f32 %v657, %v802
      %v804 = vpop.f32.mrb[0].mxu0
      %v805 = vpop.f32.mrb[0].mxu0
      %v806 = vadd.f32 %v660, %v805
      %v807 = vpop.f32.mrb[0].mxu0
      %808 = vdwg.mxu0
      %v810 = vsel %vm525, %v486, 0
      %v813 = vsel %vm525, %v487, 0
      %v816 = vsel %vm525, %v488, 0
      %v819 = vsel %vm525, %v489, 0
      %v822 = vsel %vm525, %v490, 0
      %v825 = vsel %vm525, %v491, 0
      %v828 = vsel %vm525, %v492, 0
      %v831 = vsel %vm525, %v493, 0
      %v834 = vsel %vm525, %v494, 0
      %v837 = vsel %vm525, %v495, 0
      %v840 = vsel %vm546, %v500, 0
      %842 = vmatprep.subr.bf16.mxu0 0
      %843 = vmatpush1.bf16.msra.mxu0 %v840
      %844 = vmatprep.subr.bf16.mxu0 0
      %845 = vmatpush1.bf16.msra.mxu0 0
      %846 = vmatprep.subr.bf16.mxu0 0
      %847 = vmatpush1.bf16.msra.mxu0 0
      %848 = vmatprep.subr.bf16.mxu0 0
      %849 = vmatpush1.bf16.msra.mxu0 0
      %850 = vmatprep.subr.bf16.mxu0 0
      %851 = vmatpush1.bf16.msra.mxu0 0
      %852 = vmatprep.subr.bf16.mxu0 0
      %853 = vmatpush1.bf16.msra.mxu0 0
      %854 = vmatprep.subr.bf16.mxu0 0
      %855 = vmatpush1.bf16.msra.mxu0 0
      %856 = vmatprep.subr.bf16.mxu0 0
      %857 = vmatpush1.bf16.msra.mxu0 0
      %858 = vmatprep.subr.bf16.mxu0 0
      %859 = vmatpush1.bf16.msra.mxu0 0
      %860 = vmatprep.subr.bf16.mxu0 0
      %861 = vmatpush1.bf16.msra.mxu0 0
      %862 = vmatprep.subr.bf16.mxu0 0
      %863 = vmatpush1.bf16.msra.mxu0 0
      %864 = vmatprep.subr.bf16.mxu0 0
      %865 = vmatpush1.bf16.msra.mxu0 0
      %866 = vmatprep.subr.bf16.mxu0 0
      %867 = vmatpush1.bf16.msra.mxu0 0
      %868 = vmatprep.subr.bf16.mxu0 0
      %869 = vmatpush1.bf16.msra.mxu0 0
      %870 = vmatprep.subr.bf16.mxu0 0
      %871 = vmatpush1.bf16.msra.mxu0 0
      %872 = vmatprep.subr.bf16.mxu0 0
      %873 = vmatpush1.bf16.msra.mxu0 0
      %874 = vmatprep.mubr.bf16.mxu0 0
      %875 = vmatmul.mubr.bf16.gmra.mrb[0].mxu0 %v810
      %v876 = vpop.f32.mrb[0].mxu0
      %v877 = vadd.f32 0.0, %v876
      %v878 = vpop.f32.mrb[0].mxu0
      %v879 = vpop.f32.mrb[0].mxu0
      %v880 = vadd.f32 0.0, %v879
      %v881 = vpop.f32.mrb[0].mxu0
      %882 = vmatprep.mubr.bf16.mxu0 0
      %883 = vmatmul.mubr.bf16.gmra.mrb[0].mxu0 %v813
      %v884 = vpop.f32.mrb[0].mxu0
      %v885 = vadd.f32 0.0, %v884
      %v886 = vpop.f32.mrb[0].mxu0
      %v887 = vpop.f32.mrb[0].mxu0
      %v888 = vadd.f32 0.0, %v887
      %v889 = vpop.f32.mrb[0].mxu0
      %890 = vmatprep.mubr.bf16.mxu0 0
      %891 = vmatmul.mubr.bf16.gmra.mrb[0].mxu0 %v816
      %v892 = vpop.f32.mrb[0].mxu0
      %v893 = vadd.f32 0.0, %v892
      %v894 = vpop.f32.mrb[0].mxu0
      %v895 = vpop.f32.mrb[0].mxu0
      %v896 = vadd.f32 0.0, %v895
      %v897 = vpop.f32.mrb[0].mxu0
      %898 = vmatprep.mubr.bf16.mxu0 0
      %899 = vmatmul.mubr.bf16.gmra.mrb[0].mxu0 %v819
      %v900 = vpop.f32.mrb[0].mxu0
      %v901 = vadd.f32 0.0, %v900
      %v902 = vpop.f32.mrb[0].mxu0
      %v903 = vpop.f32.mrb[0].mxu0
      %v904 = vadd.f32 0.0, %v903
      %v905 = vpop.f32.mrb[0].mxu0
      %906 = vmatprep.mubr.bf16.mxu0 0
      %907 = vmatmul.mubr.bf16.gmra.mrb[0].mxu0 %v822
      %v908 = vpop.f32.mrb[0].mxu0
      %v909 = vadd.f32 0.0, %v908
      %v910 = vpop.f32.mrb[0].mxu0
      %v911 = vpop.f32.mrb[0].mxu0
      %v912 = vadd.f32 0.0, %v911
      %v913 = vpop.f32.mrb[0].mxu0
      %914 = vmatprep.mubr.bf16.mxu0 0
      %915 = vmatmul.mubr.bf16.gmra.mrb[0].mxu0 %v825
      %v916 = vpop.f32.mrb[0].mxu0
      %v917 = vadd.f32 0.0, %v916
      %v918 = vpop.f32.mrb[0].mxu0
      %v919 = vpop.f32.mrb[0].mxu0
      %v920 = vadd.f32 0.0, %v919
      %v921 = vpop.f32.mrb[0].mxu0
      %922 = vmatprep.mubr.bf16.mxu0 0
      %923 = vmatmul.mubr.bf16.gmra.mrb[0].mxu0 %v828
      %v924 = vpop.f32.mrb[0].mxu0
      %v925 = vadd.f32 0.0, %v924
      %v926 = vpop.f32.mrb[0].mxu0
      %v927 = vpop.f32.mrb[0].mxu0
      %v928 = vadd.f32 0.0, %v927
      %v929 = vpop.f32.mrb[0].mxu0
      %930 = vmatprep.mubr.bf16.mxu0 0
      %931 = vmatmul.mubr.bf16.gmra.mrb[0].mxu0 %v831
      %v932 = vpop.f32.mrb[0].mxu0
      %v933 = vadd.f32 0.0, %v932
      %v934 = vpop.f32.mrb[0].mxu0
      %v935 = vpop.f32.mrb[0].mxu0
      %v936 = vadd.f32 0.0, %v935
      %v937 = vpop.f32.mrb[0].mxu0
      %938 = vmatprep.mubr.bf16.mxu0 0
      %939 = vmatmul.mubr.bf16.gmra.mrb[0].mxu0 %v834
      %v940 = vpop.f32.mrb[0].mxu0
      %v941 = vadd.f32 0.0, %v940
      %v942 = vpop.f32.mrb[0].mxu0
      %v943 = vpop.f32.mrb[0].mxu0
      %v944 = vadd.f32 0.0, %v943
      %v945 = vpop.f32.mrb[0].mxu0
      %946 = vmatprep.mubr.bf16.mxu0 0
      %947 = vmatmul.mubr.bf16.gmra.mrb[0].mxu0 %v837
      %v948 = vpop.f32.mrb[0].mxu0
      %v949 = vadd.f32 0.0, %v948
      %v950 = vpop.f32.mrb[0].mxu0
      %v951 = vpop.f32.mrb[0].mxu0
      %v952 = vadd.f32 0.0, %v951
      %v953 = vpop.f32.mrb[0].mxu0
      %954 = vdwg.mxu0
      %v955 = vadd.f32 %v731, %v877
      %v956 = vadd.f32 %v734, %v880
      %v957 = vadd.f32 %v739, %v885
      %v958 = vadd.f32 %v742, %v888
      %v959 = vadd.f32 %v747, %v893
      %v960 = vadd.f32 %v750, %v896
      %v961 = vadd.f32 %v755, %v901
      %v962 = vadd.f32 %v758, %v904
      %v963 = vadd.f32 %v763, %v909
      %v964 = vadd.f32 %v766, %v912
      %v965 = vadd.f32 %v771, %v917
      %v966 = vadd.f32 %v774, %v920
      %v967 = vadd.f32 %v779, %v925
      %v968 = vadd.f32 %v782, %v928
      %v969 = vadd.f32 %v787, %v933
      %v970 = vadd.f32 %v790, %v936
      %v971 = vadd.f32 %v795, %v941
      %v972 = vadd.f32 %v798, %v944
      %v973 = vadd.f32 %v803, %v949
      %v974 = vadd.f32 %v806, %v952
      %v976 = vsel %vm525, %v421, 0
      %v979 = vsel %vm546, %v501, 0
      %981 = vmatprep.subr.bf16.mxu0 0
      %982 = vmatpush1.bf16.msra.mxu0 %v979
      %983 = vmatprep.subr.bf16.mxu0 0
      %984 = vmatpush1.bf16.msra.mxu0 0
      %985 = vmatprep.subr.bf16.mxu0 0
      %986 = vmatpush1.bf16.msra.mxu0 0
      %987 = vmatprep.subr.bf16.mxu0 0
      %988 = vmatpush1.bf16.msra.mxu0 0
      %989 = vmatprep.subr.bf16.mxu0 0
      %990 = vmatpush1.bf16.msra.mxu0 0
      %991 = vmatprep.subr.bf16.mxu0 0
      %992 = vmatpush1.bf16.msra.mxu0 0
      %993 = vmatprep.subr.bf16.mxu0 0
      %994 = vmatpush1.bf16.msra.mxu0 0
      %995 = vmatprep.subr.bf16.mxu0 0
      %996 = vmatpush1.bf16.msra.mxu0 0
      %997 = vmatprep.subr.bf16.mxu0 0
      %998 = vmatpush1.bf16.msra.mxu0 0
      %999 = vmatprep.subr.bf16.mxu0 0
      %1000 = vmatpush1.bf16.msra.mxu0 0
      %1001 = vmatprep.subr.bf16.mxu0 0
      %1002 = vmatpush1.bf16.msra.mxu0 0
      %1003 = vmatprep.subr.bf16.mxu0 0
      %1004 = vmatpush1.bf16.msra.mxu0 0
      %1005 = vmatprep.subr.bf16.mxu0 0
      %1006 = vmatpush1.bf16.msra.mxu0 0
      %1007 = vmatprep.subr.bf16.mxu0 0
      %1008 = vmatpush1.bf16.msra.mxu0 0
      %1009 = vmatprep.subr.bf16.mxu0 0
      %1010 = vmatpush1.bf16.msra.mxu0 0
      %1011 = vmatprep.subr.bf16.mxu0 0
      %1012 = vmatpush1.bf16.msra.mxu0 0
      %1013 = vmatprep.mubr.bf16.mxu0 0
      %1014 = vmatmul.mubr.bf16.gmra.mrb[0].mxu0 %v667
      %v1015 = vpop.f32.mrb[0].mxu0
      %v1016 = vadd.f32 0.0, %v1015
      %v1017 = vpop.f32.mrb[0].mxu0
      %v1018 = vpop.f32.mrb[0].mxu0
      %v1019 = vadd.f32 0.0, %v1018
      %v1020 = vpop.f32.mrb[0].mxu0
      %1021 = vmatprep.mubr.bf16.mxu0 0
      %1022 = vmatmul.mubr.bf16.gmra.mrb[0].mxu0 %v670
      %v1023 = vpop.f32.mrb[0].mxu0
      %v1024 = vadd.f32 0.0, %v1023
      %v1025 = vpop.f32.mrb[0].mxu0
      %v1026 = vpop.f32.mrb[0].mxu0
      %v1027 = vadd.f32 0.0, %v1026
      %v1028 = vpop.f32.mrb[0].mxu0
      %1029 = vmatprep.mubr.bf16.mxu0 0
      %1030 = vmatmul.mubr.bf16.gmra.mrb[0].mxu0 %v673
      %v1031 = vpop.f32.mrb[0].mxu0
      %v1032 = vadd.f32 0.0, %v1031
      %v1033 = vpop.f32.mrb[0].mxu0
      %v1034 = vpop.f32.mrb[0].mxu0
      %v1035 = vadd.f32 0.0, %v1034
      %v1036 = vpop.f32.mrb[0].mxu0
      %1037 = vmatprep.mubr.bf16.mxu0 0
      %1038 = vmatmul.mubr.bf16.gmra.mrb[0].mxu0 %v676
      %v1039 = vpop.f32.mrb[0].mxu0
      %v1040 = vadd.f32 0.0, %v1039
      %v1041 = vpop.f32.mrb[0].mxu0
      %v1042 = vpop.f32.mrb[0].mxu0
      %v1043 = vadd.f32 0.0, %v1042
      %v1044 = vpop.f32.mrb[0].mxu0
      %1045 = vmatprep.mubr.bf16.mxu0 0
      %1046 = vmatmul.mubr.bf16.gmra.mrb[0].mxu0 %v679
      %v1047 = vpop.f32.mrb[0].mxu0
      %v1048 = vadd.f32 0.0, %v1047
      %v1049 = vpop.f32.mrb[0].mxu0
      %v1050 = vpop.f32.mrb[0].mxu0
      %v1051 = vadd.f32 0.0, %v1050
      %v1052 = vpop.f32.mrb[0].mxu0
      %1053 = vmatprep.mubr.bf16.mxu0 0
      %1054 = vmatmul.mubr.bf16.gmra.mrb[0].mxu0 %v682
      %v1055 = vpop.f32.mrb[0].mxu0
      %v1056 = vadd.f32 0.0, %v1055
      %v1057 = vpop.f32.mrb[0].mxu0
      %v1058 = vpop.f32.mrb[0].mxu0
      %v1059 = vadd.f32 0.0, %v1058
      %v1060 = vpop.f32.mrb[0].mxu0
      %1061 = vmatprep.mubr.bf16.mxu0 0
      %1062 = vmatmul.mubr.bf16.gmra.mrb[0].mxu0 %v685
      %v1063 = vpop.f32.mrb[0].mxu0
      %v1064 = vadd.f32 0.0, %v1063
      %v1065 = vpop.f32.mrb[0].mxu0
      %v1066 = vpop.f32.mrb[0].mxu0
      %v1067 = vadd.f32 0.0, %v1066
      %v1068 = vpop.f32.mrb[0].mxu0
      %1069 = vmatprep.mubr.bf16.mxu0 0
      %1070 = vmatmul.mubr.bf16.gmra.mrb[0].mxu0 %v688
      %v1071 = vpop.f32.mrb[0].mxu0
      %v1072 = vadd.f32 0.0, %v1071
      %v1073 = vpop.f32.mrb[0].mxu0
      %v1074 = vpop.f32.mrb[0].mxu0
      %v1075 = vadd.f32 0.0, %v1074
      %v1076 = vpop.f32.mrb[0].mxu0
      %1077 = vmatprep.mubr.bf16.mxu0 0
      %1078 = vmatmul.mubr.bf16.gmra.mrb[0].mxu0 %v691
      %v1079 = vpop.f32.mrb[0].mxu0
      %v1080 = vadd.f32 0.0, %v1079
      %v1081 = vpop.f32.mrb[0].mxu0
      %v1082 = vpop.f32.mrb[0].mxu0
      %v1083 = vadd.f32 0.0, %v1082
      %v1084 = vpop.f32.mrb[0].mxu0
      %1085 = vmatprep.mubr.bf16.mxu0 0
      %1086 = vmatmul.mubr.bf16.gmra.mrb[0].mxu0 %v976
      %v1087 = vpop.f32.mrb[0].mxu0
      %v1088 = vadd.f32 0.0, %v1087
      %v1089 = vpop.f32.mrb[0].mxu0
      %v1090 = vpop.f32.mrb[0].mxu0
      %v1091 = vadd.f32 0.0, %v1090
      %v1092 = vpop.f32.mrb[0].mxu0
      %1093 = vdwg.mxu0
      %v1094 = vadd.f32 %v955, %v1016
      %v1095 = vadd.f32 %v956, %v1019
      %v1096 = vadd.f32 %v957, %v1024
      %v1097 = vadd.f32 %v958, %v1027
      %v1098 = vadd.f32 %v959, %v1032
      %v1099 = vadd.f32 %v960, %v1035
      %v1100 = vadd.f32 %v961, %v1040
      %v1101 = vadd.f32 %v962, %v1043
      %v1102 = vadd.f32 %v963, %v1048
      %v1103 = vadd.f32 %v964, %v1051
      %v1104 = vadd.f32 %v965, %v1056
      %v1105 = vadd.f32 %v966, %v1059
      %v1106 = vadd.f32 %v967, %v1064
      %v1107 = vadd.f32 %v968, %v1067
      %v1108 = vadd.f32 %v969, %v1072
      %v1109 = vadd.f32 %v970, %v1075
      %v1110 = vadd.f32 %v971, %v1080
      %v1111 = vadd.f32 %v972, %v1083
      %v1112 = vadd.f32 %v973, %v1088
      %v1113 = vadd.f32 %v974, %v1091
      %v1114 = vsel %vm525, %v310, 0
      %v1117 = vsel %vm546, %v502, 0
      %1119 = vmatprep.subr.bf16.mxu0 0
      %1120 = vmatpush1.bf16.msra.mxu0 %v1117
      %1121 = vmatprep.subr.bf16.mxu0 0
      %1122 = vmatpush1.bf16.msra.mxu0 0
      %1123 = vmatprep.subr.bf16.mxu0 0
      %1124 = vmatpush1.bf16.msra.mxu0 0
      %1125 = vmatprep.subr.bf16.mxu0 0
      %1126 = vmatpush1.bf16.msra.mxu0 0
      %1127 = vmatprep.subr.bf16.mxu0 0
      %1128 = vmatpush1.bf16.msra.mxu0 0
      %1129 = vmatprep.subr.bf16.mxu0 0
      %1130 = vmatpush1.bf16.msra.mxu0 0
      %1131 = vmatprep.subr.bf16.mxu0 0
      %1132 = vmatpush1.bf16.msra.mxu0 0
      %1133 = vmatprep.subr.bf16.mxu0 0
      %1134 = vmatpush1.bf16.msra.mxu0 0
      %1135 = vmatprep.subr.bf16.mxu0 0
      %1136 = vmatpush1.bf16.msra.mxu0 0
      %1137 = vmatprep.subr.bf16.mxu0 0
      %1138 = vmatpush1.bf16.msra.mxu0 0
      %1139 = vmatprep.subr.bf16.mxu0 0
      %1140 = vmatpush1.bf16.msra.mxu0 0
      %1141 = vmatprep.subr.bf16.mxu0 0
      %1142 = vmatpush1.bf16.msra.mxu0 0
      %1143 = vmatprep.subr.bf16.mxu0 0
      %1144 = vmatpush1.bf16.msra.mxu0 0
      %1145 = vmatprep.subr.bf16.mxu0 0
      %1146 = vmatpush1.bf16.msra.mxu0 0
      %1147 = vmatprep.subr.bf16.mxu0 0
      %1148 = vmatpush1.bf16.msra.mxu0 0
      %1149 = vmatprep.subr.bf16.mxu0 0
      %1150 = vmatpush1.bf16.msra.mxu0 0
      %1151 = vmatprep.mubr.bf16.mxu0 0
      %1152 = vmatmul.mubr.bf16.gmra.mrb[0].mxu0 %v528
      %v1153 = vpop.f32.mrb[0].mxu0
      %v1154 = vadd.f32 0.0, %v1153
      %v1155 = vpop.f32.mrb[0].mxu0
      %v1156 = vpop.f32.mrb[0].mxu0
      %v1157 = vadd.f32 0.0, %v1156
      %v1158 = vpop.f32.mrb[0].mxu0
      %1159 = vmatprep.mubr.bf16.mxu0 0
      %1160 = vmatmul.mubr.bf16.gmra.mrb[0].mxu0 %v530
      %v1161 = vpop.f32.mrb[0].mxu0
      %v1162 = vadd.f32 0.0, %v1161
      %v1163 = vpop.f32.mrb[0].mxu0
      %v1164 = vpop.f32.mrb[0].mxu0
      %v1165 = vadd.f32 0.0, %v1164
      %v1166 = vpop.f32.mrb[0].mxu0
      %1167 = vmatprep.mubr.bf16.mxu0 0
      %1168 = vmatmul.mubr.bf16.gmra.mrb[0].mxu0 %v532
      %v1169 = vpop.f32.mrb[0].mxu0
      %v1170 = vadd.f32 0.0, %v1169
      %v1171 = vpop.f32.mrb[0].mxu0
      %v1172 = vpop.f32.mrb[0].mxu0
      %v1173 = vadd.f32 0.0, %v1172
      %v1174 = vpop.f32.mrb[0].mxu0
      %1175 = vmatprep.mubr.bf16.mxu0 0
      %1176 = vmatmul.mubr.bf16.gmra.mrb[0].mxu0 %v534
      %v1177 = vpop.f32.mrb[0].mxu0
      %v1178 = vadd.f32 0.0, %v1177
      %v1179 = vpop.f32.mrb[0].mxu0
      %v1180 = vpop.f32.mrb[0].mxu0
      %v1181 = vadd.f32 0.0, %v1180
      %v1182 = vpop.f32.mrb[0].mxu0
      %1183 = vmatprep.mubr.bf16.mxu0 0
      %1184 = vmatmul.mubr.bf16.gmra.mrb[0].mxu0 %v536
      %v1185 = vpop.f32.mrb[0].mxu0
      %v1186 = vadd.f32 0.0, %v1185
      %v1187 = vpop.f32.mrb[0].mxu0
      %v1188 = vpop.f32.mrb[0].mxu0
      %v1189 = vadd.f32 0.0, %v1188
      %v1190 = vpop.f32.mrb[0].mxu0
      %1191 = vmatprep.mubr.bf16.mxu0 0
      %1192 = vmatmul.mubr.bf16.gmra.mrb[0].mxu0 %v538
      %v1193 = vpop.f32.mrb[0].mxu0
      %v1194 = vadd.f32 0.0, %v1193
      %v1195 = vpop.f32.mrb[0].mxu0
      %v1196 = vpop.f32.mrb[0].mxu0
      %v1197 = vadd.f32 0.0, %v1196
      %v1198 = vpop.f32.mrb[0].mxu0
      %1199 = vmatprep.mubr.bf16.mxu0 0
      %1200 = vmatmul.mubr.bf16.gmra.mrb[0].mxu0 %v540
      %v1201 = vpop.f32.mrb[0].mxu0
      %v1202 = vadd.f32 0.0, %v1201
      %v1203 = vpop.f32.mrb[0].mxu0
      %v1204 = vpop.f32.mrb[0].mxu0
      %v1205 = vadd.f32 0.0, %v1204
      %v1206 = vpop.f32.mrb[0].mxu0
      %1207 = vmatprep.mubr.bf16.mxu0 0
      %1208 = vmatmul.mubr.bf16.gmra.mrb[0].mxu0 %v542
      %v1209 = vpop.f32.mrb[0].mxu0
      %v1210 = vadd.f32 0.0, %v1209
      %v1211 = vpop.f32.mrb[0].mxu0
      %v1212 = vpop.f32.mrb[0].mxu0
      %v1213 = vadd.f32 0.0, %v1212
      %v1214 = vpop.f32.mrb[0].mxu0
      %1215 = vmatprep.mubr.bf16.mxu0 0
      %1216 = vmatmul.mubr.bf16.gmra.mrb[0].mxu0 %v544
      %v1217 = vpop.f32.mrb[0].mxu0
      %v1218 = vadd.f32 0.0, %v1217
      %v1219 = vpop.f32.mrb[0].mxu0
      %v1220 = vpop.f32.mrb[0].mxu0
      %v1221 = vadd.f32 0.0, %v1220
      %v1222 = vpop.f32.mrb[0].mxu0
      %1223 = vmatprep.mubr.bf16.mxu0 0
      %1224 = vmatmul.mubr.bf16.gmra.mrb[0].mxu0 %v1114
      %v1225 = vpop.f32.mrb[0].mxu0
      %v1226 = vadd.f32 0.0, %v1225
      %v1227 = vpop.f32.mrb[0].mxu0
      %v1228 = vpop.f32.mrb[0].mxu0
      %v1229 = vadd.f32 0.0, %v1228
      %v1230 = vpop.f32.mrb[0].mxu0
      %1231 = vdwg.mxu0
      %v1232 = vadd.f32 %v1094, %v1154
      %v1233 = vadd.f32 %v1095, %v1157
      %v1234 = vadd.f32 %v1096, %v1162
      %v1235 = vadd.f32 %v1097, %v1165
      %v1236 = vadd.f32 %v1098, %v1170
      %v1237 = vadd.f32 %v1099, %v1173
      %v1238 = vadd.f32 %v1100, %v1178
      %v1239 = vadd.f32 %v1101, %v1181
      %v1240 = vadd.f32 %v1102, %v1186
      %v1241 = vadd.f32 %v1103, %v1189
      %v1242 = vadd.f32 %v1104, %v1194
      %v1243 = vadd.f32 %v1105, %v1197
      %v1244 = vadd.f32 %v1106, %v1202
      %v1245 = vadd.f32 %v1107, %v1205
      %v1246 = vadd.f32 %v1108, %v1210
      %v1247 = vadd.f32 %v1109, %v1213
      %v1248 = vadd.f32 %v1110, %v1218
      %v1249 = vadd.f32 %v1111, %v1221
      %v1250 = vadd.f32 %v1112, %v1226
      %v1251 = vadd.f32 %v1113, %v1229
      %v1253 = vsel %vm525, %v496, 0
      %v1256 = vsel %vm546, %v503, 0
      %1258 = vmatprep.subr.bf16.mxu0 0
      %1259 = vmatpush1.bf16.msra.mxu0 %v1256
      %1260 = vmatprep.subr.bf16.mxu0 0
      %1261 = vmatpush1.bf16.msra.mxu0 0
      %1262 = vmatprep.subr.bf16.mxu0 0
      %1263 = vmatpush1.bf16.msra.mxu0 0
      %1264 = vmatprep.subr.bf16.mxu0 0
      %1265 = vmatpush1.bf16.msra.mxu0 0
      %1266 = vmatprep.subr.bf16.mxu0 0
      %1267 = vmatpush1.bf16.msra.mxu0 0
      %1268 = vmatprep.subr.bf16.mxu0 0
      %1269 = vmatpush1.bf16.msra.mxu0 0
      %1270 = vmatprep.subr.bf16.mxu0 0
      %1271 = vmatpush1.bf16.msra.mxu0 0
      %1272 = vmatprep.subr.bf16.mxu0 0
      %1273 = vmatpush1.bf16.msra.mxu0 0
      %1274 = vmatprep.subr.bf16.mxu0 0
      %1275 = vmatpush1.bf16.msra.mxu0 0
      %1276 = vmatprep.subr.bf16.mxu0 0
      %1277 = vmatpush1.bf16.msra.mxu0 0
      %1278 = vmatprep.subr.bf16.mxu0 0
      %1279 = vmatpush1.bf16.msra.mxu0 0
      %1280 = vmatprep.subr.bf16.mxu0 0
      %1281 = vmatpush1.bf16.msra.mxu0 0
      %1282 = vmatprep.subr.bf16.mxu0 0
      %1283 = vmatpush1.bf16.msra.mxu0 0
      %1284 = vmatprep.subr.bf16.mxu0 0
      %1285 = vmatpush1.bf16.msra.mxu0 0
      %1286 = vmatprep.subr.bf16.mxu0 0
      %1287 = vmatpush1.bf16.msra.mxu0 0
      %1288 = vmatprep.subr.bf16.mxu0 0
      %1289 = vmatpush1.bf16.msra.mxu0 0
      %1290 = vmatprep.mubr.bf16.mxu0 0
      %1291 = vmatmul.mubr.bf16.gmra.mrb[0].mxu0 %v813
      %v1292 = vpop.f32.mrb[0].mxu0
      %v1293 = vadd.f32 0.0, %v1292
      %v1294 = vpop.f32.mrb[0].mxu0
      %v1295 = vpop.f32.mrb[0].mxu0
      %v1296 = vadd.f32 0.0, %v1295
      %v1297 = vpop.f32.mrb[0].mxu0
      %1298 = vmatprep.mubr.bf16.mxu0 0
      %1299 = vmatmul.mubr.bf16.gmra.mrb[0].mxu0 %v816
      %v1300 = vpop.f32.mrb[0].mxu0
      %v1301 = vadd.f32 0.0, %v1300
      %v1302 = vpop.f32.mrb[0].mxu0
      %v1303 = vpop.f32.mrb[0].mxu0
      %v1304 = vadd.f32 0.0, %v1303
      %v1305 = vpop.f32.mrb[0].mxu0
      %1306 = vmatprep.mubr.bf16.mxu0 0
      %1307 = vmatmul.mubr.bf16.gmra.mrb[0].mxu0 %v819
      %v1308 = vpop.f32.mrb[0].mxu0
      %v1309 = vadd.f32 0.0, %v1308
      %v1310 = vpop.f32.mrb[0].mxu0
      %v1311 = vpop.f32.mrb[0].mxu0
      %v1312 = vadd.f32 0.0, %v1311
      %v1313 = vpop.f32.mrb[0].mxu0
      %1314 = vmatprep.mubr.bf16.mxu0 0
      %1315 = vmatmul.mubr.bf16.gmra.mrb[0].mxu0 %v822
      %v1316 = vpop.f32.mrb[0].mxu0
      %v1317 = vadd.f32 0.0, %v1316
      %v1318 = vpop.f32.mrb[0].mxu0
      %v1319 = vpop.f32.mrb[0].mxu0
      %v1320 = vadd.f32 0.0, %v1319
      %v1321 = vpop.f32.mrb[0].mxu0
      %1322 = vmatprep.mubr.bf16.mxu0 0
      %1323 = vmatmul.mubr.bf16.gmra.mrb[0].mxu0 %v825
      %v1324 = vpop.f32.mrb[0].mxu0
      %v1325 = vadd.f32 0.0, %v1324
      %v1326 = vpop.f32.mrb[0].mxu0
      %v1327 = vpop.f32.mrb[0].mxu0
      %v1328 = vadd.f32 0.0, %v1327
      %v1329 = vpop.f32.mrb[0].mxu0
      %1330 = vmatprep.mubr.bf16.mxu0 0
      %1331 = vmatmul.mubr.bf16.gmra.mrb[0].mxu0 %v828
      %v1332 = vpop.f32.mrb[0].mxu0
      %v1333 = vadd.f32 0.0, %v1332
      %v1334 = vpop.f32.mrb[0].mxu0
      %v1335 = vpop.f32.mrb[0].mxu0
      %v1336 = vadd.f32 0.0, %v1335
      %v1337 = vpop.f32.mrb[0].mxu0
      %1338 = vmatprep.mubr.bf16.mxu0 0
      %1339 = vmatmul.mubr.bf16.gmra.mrb[0].mxu0 %v831
      %v1340 = vpop.f32.mrb[0].mxu0
      %v1341 = vadd.f32 0.0, %v1340
      %v1342 = vpop.f32.mrb[0].mxu0
      %v1343 = vpop.f32.mrb[0].mxu0
      %v1344 = vadd.f32 0.0, %v1343
      %v1345 = vpop.f32.mrb[0].mxu0
      %1346 = vmatprep.mubr.bf16.mxu0 0
      %1347 = vmatmul.mubr.bf16.gmra.mrb[0].mxu0 %v834
      %v1348 = vpop.f32.mrb[0].mxu0
      %v1349 = vadd.f32 0.0, %v1348
      %v1350 = vpop.f32.mrb[0].mxu0
      %v1351 = vpop.f32.mrb[0].mxu0
      %v1352 = vadd.f32 0.0, %v1351
      %v1353 = vpop.f32.mrb[0].mxu0
      %1354 = vmatprep.mubr.bf16.mxu0 0
      %1355 = vmatmul.mubr.bf16.gmra.mrb[0].mxu0 %v837
      %v1356 = vpop.f32.mrb[0].mxu0
      %v1357 = vadd.f32 0.0, %v1356
      %v1358 = vpop.f32.mrb[0].mxu0
      %v1359 = vpop.f32.mrb[0].mxu0
      %v1360 = vadd.f32 0.0, %v1359
      %v1361 = vpop.f32.mrb[0].mxu0
      %1362 = vmatprep.mubr.bf16.mxu0 0
      %1363 = vmatmul.mubr.bf16.gmra.mrb[0].mxu0 %v1253
      %v1364 = vpop.f32.mrb[0].mxu0
      %v1365 = vadd.f32 0.0, %v1364
      %v1366 = vpop.f32.mrb[0].mxu0
      %v1367 = vpop.f32.mrb[0].mxu0
      %v1368 = vadd.f32 0.0, %v1367
      %v1369 = vpop.f32.mrb[0].mxu0
      %1370 = vdwg.mxu0
      %v1371 = vadd.f32 %v1232, %v1293
      %v1372 = vadd.f32 %v1233, %v1296
      %v1373 = vadd.f32 %v1234, %v1301
      %v1374 = vadd.f32 %v1235, %v1304
      %v1375 = vadd.f32 %v1236, %v1309
      %v1376 = vadd.f32 %v1237, %v1312
      %v1377 = vadd.f32 %v1238, %v1317
      %v1378 = vadd.f32 %v1239, %v1320
      %v1379 = vadd.f32 %v1240, %v1325
      %v1380 = vadd.f32 %v1241, %v1328
      %v1381 = vadd.f32 %v1242, %v1333
      %v1382 = vadd.f32 %v1243, %v1336
      %v1383 = vadd.f32 %v1244, %v1341
      %v1384 = vadd.f32 %v1245, %v1344
      %v1385 = vadd.f32 %v1246, %v1349
      %v1386 = vadd.f32 %v1247, %v1352
      %v1387 = vadd.f32 %v1248, %v1357
      %v1388 = vadd.f32 %v1249, %v1360
      %v1389 = vadd.f32 %v1250, %v1365
      %v1390 = vadd.f32 %v1251, %v1368
      %v1392 = vsel %vm525, %v422, 0
      %v1395 = vsel %vm546, %v504, 0
      %1397 = vmatprep.subr.bf16.mxu0 0
      %1398 = vmatpush1.bf16.msra.mxu0 %v1395
      %1399 = vmatprep.subr.bf16.mxu0 0
      %1400 = vmatpush1.bf16.msra.mxu0 0
      %1401 = vmatprep.subr.bf16.mxu0 0
      %1402 = vmatpush1.bf16.msra.mxu0 0
      %1403 = vmatprep.subr.bf16.mxu0 0
      %1404 = vmatpush1.bf16.msra.mxu0 0
      %1405 = vmatprep.subr.bf16.mxu0 0
      %1406 = vmatpush1.bf16.msra.mxu0 0
      %1407 = vmatprep.subr.bf16.mxu0 0
      %1408 = vmatpush1.bf16.msra.mxu0 0
      %1409 = vmatprep.subr.bf16.mxu0 0
      %1410 = vmatpush1.bf16.msra.mxu0 0
      %1411 = vmatprep.subr.bf16.mxu0 0
      %1412 = vmatpush1.bf16.msra.mxu0 0
      %1413 = vmatprep.subr.bf16.mxu0 0
      %1414 = vmatpush1.bf16.msra.mxu0 0
      %1415 = vmatprep.subr.bf16.mxu0 0
      %1416 = vmatpush1.bf16.msra.mxu0 0
      %1417 = vmatprep.subr.bf16.mxu0 0
      %1418 = vmatpush1.bf16.msra.mxu0 0
      %1419 = vmatprep.subr.bf16.mxu0 0
      %1420 = vmatpush1.bf16.msra.mxu0 0
      %1421 = vmatprep.subr.bf16.mxu0 0
      %1422 = vmatpush1.bf16.msra.mxu0 0
      %1423 = vmatprep.subr.bf16.mxu0 0
      %1424 = vmatpush1.bf16.msra.mxu0 0
      %1425 = vmatprep.subr.bf16.mxu0 0
      %1426 = vmatpush1.bf16.msra.mxu0 0
      %1427 = vmatprep.subr.bf16.mxu0 0
      %1428 = vmatpush1.bf16.msra.mxu0 0
      %1429 = vmatprep.mubr.bf16.mxu0 0
      %1430 = vmatmul.mubr.bf16.gmra.mrb[0].mxu0 %v670
      %v1431 = vpop.f32.mrb[0].mxu0
      %v1432 = vadd.f32 0.0, %v1431
      %v1433 = vpop.f32.mrb[0].mxu0
      %v1434 = vpop.f32.mrb[0].mxu0
      %v1435 = vadd.f32 0.0, %v1434
      %v1436 = vpop.f32.mrb[0].mxu0
      %1437 = vmatprep.mubr.bf16.mxu0 0
      %1438 = vmatmul.mubr.bf16.gmra.mrb[0].mxu0 %v673
      %v1439 = vpop.f32.mrb[0].mxu0
      %v1440 = vadd.f32 0.0, %v1439
      %v1441 = vpop.f32.mrb[0].mxu0
      %v1442 = vpop.f32.mrb[0].mxu0
      %v1443 = vadd.f32 0.0, %v1442
      %v1444 = vpop.f32.mrb[0].mxu0
      %1445 = vmatprep.mubr.bf16.mxu0 0
      %1446 = vmatmul.mubr.bf16.gmra.mrb[0].mxu0 %v676
      %v1447 = vpop.f32.mrb[0].mxu0
      %v1448 = vadd.f32 0.0, %v1447
      %v1449 = vpop.f32.mrb[0].mxu0
      %v1450 = vpop.f32.mrb[0].mxu0
      %v1451 = vadd.f32 0.0, %v1450
      %v1452 = vpop.f32.mrb[0].mxu0
      %1453 = vmatprep.mubr.bf16.mxu0 0
      %1454 = vmatmul.mubr.bf16.gmra.mrb[0].mxu0 %v679
      %v1455 = vpop.f32.mrb[0].mxu0
      %v1456 = vadd.f32 0.0, %v1455
      %v1457 = vpop.f32.mrb[0].mxu0
      %v1458 = vpop.f32.mrb[0].mxu0
      %v1459 = vadd.f32 0.0, %v1458
      %v1460 = vpop.f32.mrb[0].mxu0
      %1461 = vmatprep.mubr.bf16.mxu0 0
      %1462 = vmatmul.mubr.bf16.gmra.mrb[0].mxu0 %v682
      %v1463 = vpop.f32.mrb[0].mxu0
      %v1464 = vadd.f32 0.0, %v1463
      %v1465 = vpop.f32.mrb[0].mxu0
      %v1466 = vpop.f32.mrb[0].mxu0
      %v1467 = vadd.f32 0.0, %v1466
      %v1468 = vpop.f32.mrb[0].mxu0
      %1469 = vmatprep.mubr.bf16.mxu0 0
      %1470 = vmatmul.mubr.bf16.gmra.mrb[0].mxu0 %v685
      %v1471 = vpop.f32.mrb[0].mxu0
      %v1472 = vadd.f32 0.0, %v1471
      %v1473 = vpop.f32.mrb[0].mxu0
      %v1474 = vpop.f32.mrb[0].mxu0
      %v1475 = vadd.f32 0.0, %v1474
      %v1476 = vpop.f32.mrb[0].mxu0
      %1477 = vmatprep.mubr.bf16.mxu0 0
      %1478 = vmatmul.mubr.bf16.gmra.mrb[0].mxu0 %v688
      %v1479 = vpop.f32.mrb[0].mxu0
      %v1480 = vadd.f32 0.0, %v1479
      %v1481 = vpop.f32.mrb[0].mxu0
      %v1482 = vpop.f32.mrb[0].mxu0
      %v1483 = vadd.f32 0.0, %v1482
      %v1484 = vpop.f32.mrb[0].mxu0
      %1485 = vmatprep.mubr.bf16.mxu0 0
      %1486 = vmatmul.mubr.bf16.gmra.mrb[0].mxu0 %v691
      %v1487 = vpop.f32.mrb[0].mxu0
      %v1488 = vadd.f32 0.0, %v1487
      %v1489 = vpop.f32.mrb[0].mxu0
      %v1490 = vpop.f32.mrb[0].mxu0
      %v1491 = vadd.f32 0.0, %v1490
      %v1492 = vpop.f32.mrb[0].mxu0
      %1493 = vmatprep.mubr.bf16.mxu0 0
      %1494 = vmatmul.mubr.bf16.gmra.mrb[0].mxu0 %v976
      %v1495 = vpop.f32.mrb[0].mxu0
      %v1496 = vadd.f32 0.0, %v1495
      %v1497 = vpop.f32.mrb[0].mxu0
      %v1498 = vpop.f32.mrb[0].mxu0
      %v1499 = vadd.f32 0.0, %v1498
      %v1500 = vpop.f32.mrb[0].mxu0
      %1501 = vmatprep.mubr.bf16.mxu0 0
      %1502 = vmatmul.mubr.bf16.gmra.mrb[0].mxu0 %v1392
      %v1503 = vpop.f32.mrb[0].mxu0
      %v1504 = vadd.f32 0.0, %v1503
      %v1505 = vpop.f32.mrb[0].mxu0
      %v1506 = vpop.f32.mrb[0].mxu0
      %v1507 = vadd.f32 0.0, %v1506
      %v1508 = vpop.f32.mrb[0].mxu0
      %1509 = vdwg.mxu0
      %v1510 = vadd.f32 %v1371, %v1432
      %v1511 = vadd.f32 %v1372, %v1435
      %v1512 = vadd.f32 %v1373, %v1440
      %v1513 = vadd.f32 %v1374, %v1443
      %v1514 = vadd.f32 %v1375, %v1448
      %v1515 = vadd.f32 %v1376, %v1451
      %v1516 = vadd.f32 %v1377, %v1456
      %v1517 = vadd.f32 %v1378, %v1459
      %v1518 = vadd.f32 %v1379, %v1464
      %v1519 = vadd.f32 %v1380, %v1467
      %v1520 = vadd.f32 %v1381, %v1472
      %v1521 = vadd.f32 %v1382, %v1475
      %v1522 = vadd.f32 %v1383, %v1480
      %v1523 = vadd.f32 %v1384, %v1483
      %v1524 = vadd.f32 %v1385, %v1488
      %v1525 = vadd.f32 %v1386, %v1491
      %v1526 = vadd.f32 %v1387, %v1496
      %v1527 = vadd.f32 %v1388, %v1499
      %v1528 = vadd.f32 %v1389, %v1504
      %v1529 = vadd.f32 %v1390, %v1507
      %v1530 = vsel %vm525, %v311, 0
      %v1533 = vsel %vm546, %v505, 0
      %1535 = vmatprep.subr.bf16.mxu0 0
      %1536 = vmatpush1.bf16.msra.mxu0 %v1533
      %1537 = vmatprep.subr.bf16.mxu0 0
      %1538 = vmatpush1.bf16.msra.mxu0 0
      %1539 = vmatprep.subr.bf16.mxu0 0
      %1540 = vmatpush1.bf16.msra.mxu0 0
      %1541 = vmatprep.subr.bf16.mxu0 0
      %1542 = vmatpush1.bf16.msra.mxu0 0
      %1543 = vmatprep.subr.bf16.mxu0 0
      %1544 = vmatpush1.bf16.msra.mxu0 0
      %1545 = vmatprep.subr.bf16.mxu0 0
      %1546 = vmatpush1.bf16.msra.mxu0 0
      %1547 = vmatprep.subr.bf16.mxu0 0
      %1548 = vmatpush1.bf16.msra.mxu0 0
      %1549 = vmatprep.subr.bf16.mxu0 0
      %1550 = vmatpush1.bf16.msra.mxu0 0
      %1551 = vmatprep.subr.bf16.mxu0 0
      %1552 = vmatpush1.bf16.msra.mxu0 0
      %1553 = vmatprep.subr.bf16.mxu0 0
      %1554 = vmatpush1.bf16.msra.mxu0 0
      %1555 = vmatprep.subr.bf16.mxu0 0
      %1556 = vmatpush1.bf16.msra.mxu0 0
      %1557 = vmatprep.subr.bf16.mxu0 0
      %1558 = vmatpush1.bf16.msra.mxu0 0
      %1559 = vmatprep.subr.bf16.mxu0 0
      %1560 = vmatpush1.bf16.msra.mxu0 0
      %1561 = vmatprep.subr.bf16.mxu0 0
      %1562 = vmatpush1.bf16.msra.mxu0 0
      %1563 = vmatprep.subr.bf16.mxu0 0
      %1564 = vmatpush1.bf16.msra.mxu0 0
      %1565 = vmatprep.subr.bf16.mxu0 0
      %1566 = vmatpush1.bf16.msra.mxu0 0
      %1567 = vmatprep.mubr.bf16.mxu0 0
      %1568 = vmatmul.mubr.bf16.gmra.mrb[0].mxu0 %v530
      %v1569 = vpop.f32.mrb[0].mxu0
      %v1570 = vadd.f32 0.0, %v1569
      %v1571 = vpop.f32.mrb[0].mxu0
      %v1572 = vpop.f32.mrb[0].mxu0
      %v1573 = vadd.f32 0.0, %v1572
      %v1574 = vpop.f32.mrb[0].mxu0
      %1575 = vmatprep.mubr.bf16.mxu0 0
      %1576 = vmatmul.mubr.bf16.gmra.mrb[0].mxu0 %v532
      %v1577 = vpop.f32.mrb[0].mxu0
      %v1578 = vadd.f32 0.0, %v1577
      %v1579 = vpop.f32.mrb[0].mxu0
      %v1580 = vpop.f32.mrb[0].mxu0
      %v1581 = vadd.f32 0.0, %v1580
      %v1582 = vpop.f32.mrb[0].mxu0
      %1583 = vmatprep.mubr.bf16.mxu0 0
      %1584 = vmatmul.mubr.bf16.gmra.mrb[0].mxu0 %v534
      %v1585 = vpop.f32.mrb[0].mxu0
      %v1586 = vadd.f32 0.0, %v1585
      %v1587 = vpop.f32.mrb[0].mxu0
      %v1588 = vpop.f32.mrb[0].mxu0
      %v1589 = vadd.f32 0.0, %v1588
      %v1590 = vpop.f32.mrb[0].mxu0
      %1591 = vmatprep.mubr.bf16.mxu0 0
      %1592 = vmatmul.mubr.bf16.gmra.mrb[0].mxu0 %v536
      %v1593 = vpop.f32.mrb[0].mxu0
      %v1594 = vadd.f32 0.0, %v1593
      %v1595 = vpop.f32.mrb[0].mxu0
      %v1596 = vpop.f32.mrb[0].mxu0
      %v1597 = vadd.f32 0.0, %v1596
      %v1598 = vpop.f32.mrb[0].mxu0
      %1599 = vmatprep.mubr.bf16.mxu0 0
      %1600 = vmatmul.mubr.bf16.gmra.mrb[0].mxu0 %v538
      %v1601 = vpop.f32.mrb[0].mxu0
      %v1602 = vadd.f32 0.0, %v1601
      %v1603 = vpop.f32.mrb[0].mxu0
      %v1604 = vpop.f32.mrb[0].mxu0
      %v1605 = vadd.f32 0.0, %v1604
      %v1606 = vpop.f32.mrb[0].mxu0
      %1607 = vmatprep.mubr.bf16.mxu0 0
      %1608 = vmatmul.mubr.bf16.gmra.mrb[0].mxu0 %v540
      %v1609 = vpop.f32.mrb[0].mxu0
      %v1610 = vadd.f32 0.0, %v1609
      %v1611 = vpop.f32.mrb[0].mxu0
      %v1612 = vpop.f32.mrb[0].mxu0
      %v1613 = vadd.f32 0.0, %v1612
      %v1614 = vpop.f32.mrb[0].mxu0
      %1615 = vmatprep.mubr.bf16.mxu0 0
      %1616 = vmatmul.mubr.bf16.gmra.mrb[0].mxu0 %v542
      %v1617 = vpop.f32.mrb[0].mxu0
      %v1618 = vadd.f32 0.0, %v1617
      %v1619 = vpop.f32.mrb[0].mxu0
      %v1620 = vpop.f32.mrb[0].mxu0
      %v1621 = vadd.f32 0.0, %v1620
      %v1622 = vpop.f32.mrb[0].mxu0
      %1623 = vmatprep.mubr.bf16.mxu0 0
      %1624 = vmatmul.mubr.bf16.gmra.mrb[0].mxu0 %v544
      %v1625 = vpop.f32.mrb[0].mxu0
      %v1626 = vadd.f32 0.0, %v1625
      %v1627 = vpop.f32.mrb[0].mxu0
      %v1628 = vpop.f32.mrb[0].mxu0
      %v1629 = vadd.f32 0.0, %v1628
      %v1630 = vpop.f32.mrb[0].mxu0
      %1631 = vmatprep.mubr.bf16.mxu0 0
      %1632 = vmatmul.mubr.bf16.gmra.mrb[0].mxu0 %v1114
      %v1633 = vpop.f32.mrb[0].mxu0
      %v1634 = vadd.f32 0.0, %v1633
      %v1635 = vpop.f32.mrb[0].mxu0
      %v1636 = vpop.f32.mrb[0].mxu0
      %v1637 = vadd.f32 0.0, %v1636
      %v1638 = vpop.f32.mrb[0].mxu0
      %1639 = vmatprep.mubr.bf16.mxu0 0
      %1640 = vmatmul.mubr.bf16.gmra.mrb[0].mxu0 %v1530
      %v1641 = vpop.f32.mrb[0].mxu0
      %v1642 = vadd.f32 0.0, %v1641
      %v1643 = vpop.f32.mrb[0].mxu0
      %v1644 = vpop.f32.mrb[0].mxu0
      %v1645 = vadd.f32 0.0, %v1644
      %v1646 = vpop.f32.mrb[0].mxu0
      %1647 = vdwg.mxu0
      %v1648 = vadd.f32 %v1510, %v1570
      %v1649 = vadd.f32 %v1511, %v1573
      %v1650 = vadd.f32 %v1512, %v1578
      %v1651 = vadd.f32 %v1513, %v1581
      %v1652 = vadd.f32 %v1514, %v1586
      %v1653 = vadd.f32 %v1515, %v1589
      %v1654 = vadd.f32 %v1516, %v1594
      %v1655 = vadd.f32 %v1517, %v1597
      %v1656 = vadd.f32 %v1518, %v1602
      %v1657 = vadd.f32 %v1519, %v1605
      %v1658 = vadd.f32 %v1520, %v1610
      %v1659 = vadd.f32 %v1521, %v1613
      %v1660 = vadd.f32 %v1522, %v1618
      %v1661 = vadd.f32 %v1523, %v1621
      %v1662 = vadd.f32 %v1524, %v1626
      %v1663 = vadd.f32 %v1525, %v1629
      %v1664 = vadd.f32 %v1526, %v1634
      %v1665 = vadd.f32 %v1527, %v1637
      %v1666 = vadd.f32 %v1528, %v1642
      %v1667 = vadd.f32 %v1529, %v1645
      %v1669 = vsel %vm525, %v497, 0
      %v1672 = vsel %vm546, %v506, 0
      %1674 = vmatprep.subr.bf16.mxu0 0
      %1675 = vmatpush1.bf16.msra.mxu0 %v1672
      %1676 = vmatprep.subr.bf16.mxu0 0
      %1677 = vmatpush1.bf16.msra.mxu0 0
      %1678 = vmatprep.subr.bf16.mxu0 0
      %1679 = vmatpush1.bf16.msra.mxu0 0
      %1680 = vmatprep.subr.bf16.mxu0 0
      %1681 = vmatpush1.bf16.msra.mxu0 0
      %1682 = vmatprep.subr.bf16.mxu0 0
      %1683 = vmatpush1.bf16.msra.mxu0 0
      %1684 = vmatprep.subr.bf16.mxu0 0
      %1685 = vmatpush1.bf16.msra.mxu0 0
      %1686 = vmatprep.subr.bf16.mxu0 0
      %1687 = vmatpush1.bf16.msra.mxu0 0
      %1688 = vmatprep.subr.bf16.mxu0 0
      %1689 = vmatpush1.bf16.msra.mxu0 0
      %1690 = vmatprep.subr.bf16.mxu0 0
      %1691 = vmatpush1.bf16.msra.mxu0 0
      %1692 = vmatprep.subr.bf16.mxu0 0
      %1693 = vmatpush1.bf16.msra.mxu0 0
      %1694 = vmatprep.subr.bf16.mxu0 0
      %1695 = vmatpush1.bf16.msra.mxu0 0
      %1696 = vmatprep.subr.bf16.mxu0 0
      %1697 = vmatpush1.bf16.msra.mxu0 0
      %1698 = vmatprep.subr.bf16.mxu0 0
      %1699 = vmatpush1.bf16.msra.mxu0 0
      %1700 = vmatprep.subr.bf16.mxu0 0
      %1701 = vmatpush1.bf16.msra.mxu0 0
      %1702 = vmatprep.subr.bf16.mxu0 0
      %1703 = vmatpush1.bf16.msra.mxu0 0
      %1704 = vmatprep.subr.bf16.mxu0 0
      %1705 = vmatpush1.bf16.msra.mxu0 0
      %1706 = vmatprep.mubr.bf16.mxu0 0
      %1707 = vmatmul.mubr.bf16.gmra.mrb[0].mxu0 %v816
      %v1708 = vpop.f32.mrb[0].mxu0
      %v1709 = vadd.f32 0.0, %v1708
      %v1710 = vpop.f32.mrb[0].mxu0
      %v1711 = vpop.f32.mrb[0].mxu0
      %v1712 = vadd.f32 0.0, %v1711
      %v1713 = vpop.f32.mrb[0].mxu0
      %1714 = vmatprep.mubr.bf16.mxu0 0
      %1715 = vmatmul.mubr.bf16.gmra.mrb[0].mxu0 %v819
      %v1716 = vpop.f32.mrb[0].mxu0
      %v1717 = vadd.f32 0.0, %v1716
      %v1718 = vpop.f32.mrb[0].mxu0
      %v1719 = vpop.f32.mrb[0].mxu0
      %v1720 = vadd.f32 0.0, %v1719
      %v1721 = vpop.f32.mrb[0].mxu0
      %1722 = vmatprep.mubr.bf16.mxu0 0
      %1723 = vmatmul.mubr.bf16.gmra.mrb[0].mxu0 %v822
      %v1724 = vpop.f32.mrb[0].mxu0
      %v1725 = vadd.f32 0.0, %v1724
      %v1726 = vpop.f32.mrb[0].mxu0
      %v1727 = vpop.f32.mrb[0].mxu0
      %v1728 = vadd.f32 0.0, %v1727
      %v1729 = vpop.f32.mrb[0].mxu0
      %1730 = vmatprep.mubr.bf16.mxu0 0
      %1731 = vmatmul.mubr.bf16.gmra.mrb[0].mxu0 %v825
      %v1732 = vpop.f32.mrb[0].mxu0
      %v1733 = vadd.f32 0.0, %v1732
      %v1734 = vpop.f32.mrb[0].mxu0
      %v1735 = vpop.f32.mrb[0].mxu0
      %v1736 = vadd.f32 0.0, %v1735
      %v1737 = vpop.f32.mrb[0].mxu0
      %1738 = vmatprep.mubr.bf16.mxu0 0
      %1739 = vmatmul.mubr.bf16.gmra.mrb[0].mxu0 %v828
      %v1740 = vpop.f32.mrb[0].mxu0
      %v1741 = vadd.f32 0.0, %v1740
      %v1742 = vpop.f32.mrb[0].mxu0
      %v1743 = vpop.f32.mrb[0].mxu0
      %v1744 = vadd.f32 0.0, %v1743
      %v1745 = vpop.f32.mrb[0].mxu0
      %1746 = vmatprep.mubr.bf16.mxu0 0
      %1747 = vmatmul.mubr.bf16.gmra.mrb[0].mxu0 %v831
      %v1748 = vpop.f32.mrb[0].mxu0
      %v1749 = vadd.f32 0.0, %v1748
      %v1750 = vpop.f32.mrb[0].mxu0
      %v1751 = vpop.f32.mrb[0].mxu0
      %v1752 = vadd.f32 0.0, %v1751
      %v1753 = vpop.f32.mrb[0].mxu0
      %1754 = vmatprep.mubr.bf16.mxu0 0
      %1755 = vmatmul.mubr.bf16.gmra.mrb[0].mxu0 %v834
      %v1756 = vpop.f32.mrb[0].mxu0
      %v1757 = vadd.f32 0.0, %v1756
      %v1758 = vpop.f32.mrb[0].mxu0
      %v1759 = vpop.f32.mrb[0].mxu0
      %v1760 = vadd.f32 0.0, %v1759
      %v1761 = vpop.f32.mrb[0].mxu0
      %1762 = vmatprep.mubr.bf16.mxu0 0
      %1763 = vmatmul.mubr.bf16.gmra.mrb[0].mxu0 %v837
      %v1764 = vpop.f32.mrb[0].mxu0
      %v1765 = vadd.f32 0.0, %v1764
      %v1766 = vpop.f32.mrb[0].mxu0
      %v1767 = vpop.f32.mrb[0].mxu0
      %v1768 = vadd.f32 0.0, %v1767
      %v1769 = vpop.f32.mrb[0].mxu0
      %1770 = vmatprep.mubr.bf16.mxu0 0
      %1771 = vmatmul.mubr.bf16.gmra.mrb[0].mxu0 %v1253
      %v1772 = vpop.f32.mrb[0].mxu0
      %v1773 = vadd.f32 0.0, %v1772
      %v1774 = vpop.f32.mrb[0].mxu0
      %v1775 = vpop.f32.mrb[0].mxu0
      %v1776 = vadd.f32 0.0, %v1775
      %v1777 = vpop.f32.mrb[0].mxu0
      %1778 = vmatprep.mubr.bf16.mxu0 0
      %1779 = vmatmul.mubr.bf16.gmra.mrb[0].mxu0 %v1669
      %v1780 = vpop.f32.mrb[0].mxu0
      %v1781 = vadd.f32 0.0, %v1780
      %v1782 = vpop.f32.mrb[0].mxu0
      %v1783 = vpop.f32.mrb[0].mxu0
      %v1784 = vadd.f32 0.0, %v1783
      %v1785 = vpop.f32.mrb[0].mxu0
      %1786 = vdwg.mxu0
      %v1787 = vadd.f32 %v1648, %v1709
      %v1788 = vadd.f32 %v1649, %v1712
      %v1789 = vadd.f32 %v1650, %v1717
      %v1790 = vadd.f32 %v1651, %v1720
      %v1791 = vadd.f32 %v1652, %v1725
      %v1792 = vadd.f32 %v1653, %v1728
      %v1793 = vadd.f32 %v1654, %v1733
      %v1794 = vadd.f32 %v1655, %v1736
      %v1795 = vadd.f32 %v1656, %v1741
      %v1796 = vadd.f32 %v1657, %v1744
      %v1797 = vadd.f32 %v1658, %v1749
      %v1798 = vadd.f32 %v1659, %v1752
      %v1799 = vadd.f32 %v1660, %v1757
      %v1800 = vadd.f32 %v1661, %v1760
      %v1801 = vadd.f32 %v1662, %v1765
      %v1802 = vadd.f32 %v1663, %v1768
      %v1803 = vadd.f32 %v1664, %v1773
      %v1804 = vadd.f32 %v1665, %v1776
      %v1805 = vadd.f32 %v1666, %v1781
      %v1806 = vadd.f32 %v1667, %v1784
      %p1807 = scmp.eq.s32.totalorder %s20, 0
      %s1808 = scalar_select %p1807, 1, 0
      %v1809 = vstv %s1808
      %vm1810 = vcmp.eq.s32.totalorder %v1809, 1
      %v1811 = vsel %vm1810, 1, 0
      %vm1812 = vcmp.eq.s32.totalorder %v1811, 1
      %v1813 = vsel %vm1812, %v1789, %v1787
      %v1814 = vsel %vm1812, %v1790, %v1788
      %v1815 = vsel 0, %v1789, %v1791
      %v1816 = vsel 0, %v1790, %v1792
      %v1817 = vsel 0, %v1789, %v1793
      %v1818 = vsel 0, %v1790, %v1794
      %v1819 = vsel 0, %v1789, %v1795
      %v1820 = vsel 0, %v1790, %v1796
      %v1821 = vsel 0, %v1789, %v1797
      %v1822 = vsel 0, %v1790, %v1798
      %v1823 = vsel 0, %v1789, %v1799
      %v1824 = vsel 0, %v1790, %v1800
      %v1825 = vsel 0, %v1789, %v1801
      %v1826 = vsel 0, %v1790, %v1802
      %v1827 = vsel 0, %v1789, %v1803
      %v1828 = vsel 0, %v1790, %v1804
      %v1829 = vsel 0, %v1789, %v1805
      %v1830 = vsel 0, %v1790, %v1806
      %p1831 = scmp.eq.s32.totalorder %s20, 1
      %s1832 = scalar_select %p1831, 1, 0
      %v1833 = vstv %s1832
      %vm1834 = vcmp.eq.s32.totalorder %v1833, 1
      %v1835 = vsel %vm1834, 1, 0
      %vm1836 = vcmp.eq.s32.totalorder %v1835, 1
      %v1837 = vsel 0, %v1827, %v1813
      %v1838 = vsel 0, %v1828, %v1814
      %v1839 = vsel 0, %v1827, %v1789
      %v1840 = vsel 0, %v1828, %v1790
      %v1841 = vsel 0, %v1827, %v1815
      %v1842 = vsel 0, %v1828, %v1816
      %v1843 = vsel 0, %v1827, %v1817
      %v1844 = vsel 0, %v1828, %v1818
      %v1845 = vsel 0, %v1827, %v1819
      %v1846 = vsel 0, %v1828, %v1820
      %v1847 = vsel 0, %v1827, %v1821
      %v1848 = vsel 0, %v1828, %v1822
      %v1849 = vsel 0, %v1827, %v1823
      %v1850 = vsel 0, %v1828, %v1824
      %v1851 = vsel 0, %v1827, %v1825
      %v1852 = vsel 0, %v1828, %v1826
      %v1853 = vsel %vm1836, %v1827, %v1829
      %v1854 = vsel %vm1836, %v1828, %v1830
      %v1855 = vpack.c.bf16 %v1838, %v1837
      %v1856 = vpack.c.bf16 %v1840, %v1839
      %v1857 = vpack.c.bf16 %v1842, %v1841
      %v1858 = vpack.c.bf16 %v1844, %v1843
      %v1859 = vpack.c.bf16 %v1846, %v1845
      %v1860 = vpack.c.bf16 %v1848, %v1847
      %v1861 = vpack.c.bf16 %v1850, %v1849
      %v1862 = vpack.c.bf16 %v1852, %v1851
      %v1863 = vpack.c.bf16 %v1828, %v1827
      %v1864 = vpack.c.bf16 %v1854, %v1853
      %v1866 = vshrl.u32 %v1855, 16
      %v1868 = vrot.slane %v1866, 7
      %v1869 = vshll.u32 %v1855, 16
      %v1871 = vor.u32 %v1868, %v1869
      %v1873 = vshrl.u32 %v1856, 16
      %v1875 = vrot.slane %v1873, 7
      %v1876 = vshll.u32 %v1856, 16
      %v1878 = vor.u32 %v1875, %v1876
      %v1880 = vshrl.u32 %v1857, 16
      %v1882 = vrot.slane %v1880, 7
      %v1883 = vshll.u32 %v1857, 16
      %v1885 = vor.u32 %v1882, %v1883
      %v1887 = vshrl.u32 %v1858, 16
      %v1889 = vrot.slane %v1887, 7
      %v1890 = vshll.u32 %v1858, 16
      %v1892 = vor.u32 %v1889, %v1890
      %v1894 = vshrl.u32 %v1859, 16
      %v1896 = vrot.slane %v1894, 7
      %v1897 = vshll.u32 %v1859, 16
      %v1899 = vor.u32 %v1896, %v1897
      %v1901 = vshrl.u32 %v1860, 16
      %v1903 = vrot.slane %v1901, 7
      %v1904 = vshll.u32 %v1860, 16
      %v1906 = vor.u32 %v1903, %v1904
      %v1908 = vshrl.u32 %v1861, 16
      %v1910 = vrot.slane %v1908, 7
      %v1911 = vshll.u32 %v1861, 16
      %v1913 = vor.u32 %v1910, %v1911
      %v1915 = vshrl.u32 %v1862, 16
      %v1917 = vrot.slane %v1915, 7
      %v1918 = vshll.u32 %v1862, 16
      %v1920 = vor.u32 %v1917, %v1918
      %v1922 = vshrl.u32 %v1863, 16
      %v1924 = vrot.slane %v1922, 7
      %v1925 = vshll.u32 %v1863, 16
      %v1927 = vor.u32 %v1924, %v1925
      %v1929 = vshrl.u32 %v1864, 16
      %v1931 = vrot.slane %v1929, 7
      %v1932 = vshll.u32 %v1864, 16
      %v1934 = vor.u32 %v1931, %v1932
      %v1945 = vsel %vm410, %v1855, %v1871
      %v1946 = vsel %vm410, %v1856, %v1878
      %v1947 = vsel %vm410, %v1857, %v1885
      %v1948 = vsel %vm410, %v1858, %v1892
      %v1949 = vsel %vm410, %v1859, %v1899
      %v1950 = vsel %vm410, %v1860, %v1906
      %v1951 = vsel %vm410, %v1861, %v1913
      %v1952 = vsel %vm410, %v1862, %v1920
      %v1953 = vsel %vm410, %v1863, %v1927
      %v1954 = vsel %vm410, %v1864, %v1934
      %v1955 = vrot.slane %v1869, 1
      %v1956 = vor.u32 %v1866, %v1955
      %v1957 = vrot.slane %v1876, 1
      %v1958 = vor.u32 %v1873, %v1957
      %v1959 = vrot.slane %v1883, 1
      %v1960 = vor.u32 %v1880, %v1959
      %v1961 = vrot.slane %v1890, 1
      %v1962 = vor.u32 %v1887, %v1961
      %v1963 = vrot.slane %v1897, 1
      %v1964 = vor.u32 %v1894, %v1963
      %v1965 = vrot.slane %v1904, 1
      %v1966 = vor.u32 %v1901, %v1965
      %v1967 = vrot.slane %v1911, 1
      %v1968 = vor.u32 %v1908, %v1967
      %v1969 = vrot.slane %v1918, 1
      %v1970 = vor.u32 %v1915, %v1969
      %v1971 = vrot.slane %v1925, 1
      %v1972 = vor.u32 %v1922, %v1971
      %v1973 = vrot.slane %v1932, 1
      %v1974 = vor.u32 %v1929, %v1973
      %v1985 = vsel %vm485, %v1956, %v1855
      %v1986 = vsel %vm485, %v1958, %v1856
      %v1987 = vsel %vm485, %v1960, %v1857
      %v1988 = vsel %vm485, %v1962, %v1858
      %v1989 = vsel %vm485, %v1964, %v1859
      %v1990 = vsel %vm485, %v1966, %v1860
      %v1991 = vsel %vm485, %v1968, %v1861
      %v1992 = vsel %vm485, %v1970, %v1862
      %v1993 = vsel %vm485, %v1972, %v1863
      %v1994 = vsel %vm485, %v1974, %v1864
      %vm1995 = vcmask 64512
      %v1996 = vsel %vm1995, %v1855, 0
      %v1998 = vsel %vm1995, %v1856, 0
      %v2000 = vsel %vm1995, %v1857, 0
      %v2002 = vsel %vm1995, %v1858, 0
      %v2004 = vsel %vm1995, %v1859, 0
      %v2006 = vsel %vm1995, %v1860, 0
      %v2008 = vsel %vm1995, %v1861, 0
      %v2010 = vsel %vm1995, %v1862, 0
      %vm2012 = vcmask 1043456
      %v2014 = vsel %vm2012, %v508, 0
      %2016 = vmatprep.subr.bf16.mxu0 0
      %2017 = vmatpush1.bf16.msra.mxu0 %v2014
      %2018 = vmatprep.subr.bf16.mxu0 0
      %2019 = vmatpush1.bf16.msra.mxu0 0
      %2020 = vmatprep.subr.bf16.mxu0 0
      %2021 = vmatpush1.bf16.msra.mxu0 0
      %2022 = vmatprep.subr.bf16.mxu0 0
      %2023 = vmatpush1.bf16.msra.mxu0 0
      %2024 = vmatprep.subr.bf16.mxu0 0
      %2025 = vmatpush1.bf16.msra.mxu0 0
      %2026 = vmatprep.subr.bf16.mxu0 0
      %2027 = vmatpush1.bf16.msra.mxu0 0
      %2028 = vmatprep.subr.bf16.mxu0 0
      %2029 = vmatpush1.bf16.msra.mxu0 0
      %2030 = vmatprep.subr.bf16.mxu0 0
      %2031 = vmatpush1.bf16.msra.mxu0 0
      %2032 = vmatprep.subr.bf16.mxu0 0
      %2033 = vmatpush1.bf16.msra.mxu0 0
      %2034 = vmatprep.subr.bf16.mxu0 0
      %2035 = vmatpush1.bf16.msra.mxu0 0
      %2036 = vmatprep.subr.bf16.mxu0 0
      %2037 = vmatpush1.bf16.msra.mxu0 0
      %2038 = vmatprep.subr.bf16.mxu0 0
      %2039 = vmatpush1.bf16.msra.mxu0 0
      %2040 = vmatprep.subr.bf16.mxu0 0
      %2041 = vmatpush1.bf16.msra.mxu0 0
      %2042 = vmatprep.subr.bf16.mxu0 0
      %2043 = vmatpush1.bf16.msra.mxu0 0
      %2044 = vmatprep.subr.bf16.mxu0 0
      %2045 = vmatpush1.bf16.msra.mxu0 0
      %2046 = vmatprep.subr.bf16.mxu0 0
      %2047 = vmatpush1.bf16.msra.mxu0 0
      %2048 = vmatprep.mubr.bf16.mxu0 0
      %2049 = vmatmul.mubr.bf16.gmra.mrb[0].mxu0 %v1996
      %v2050 = vpop.f32.mrb[0].mxu0
      %v2051 = vadd.f32 0.0, %v2050
      %v2052 = vpop.f32.mrb[0].mxu0
      %v2053 = vpop.f32.mrb[0].mxu0
      %v2054 = vadd.f32 0.0, %v2053
      %v2055 = vpop.f32.mrb[0].mxu0
      %2056 = vmatprep.mubr.bf16.mxu0 0
      %2057 = vmatmul.mubr.bf16.gmra.mrb[0].mxu0 %v1998
      %v2058 = vpop.f32.mrb[0].mxu0
      %v2059 = vadd.f32 0.0, %v2058
      %v2060 = vpop.f32.mrb[0].mxu0
      %v2061 = vpop.f32.mrb[0].mxu0
      %v2062 = vadd.f32 0.0, %v2061
      %v2063 = vpop.f32.mrb[0].mxu0
      %2064 = vmatprep.mubr.bf16.mxu0 0
      %2065 = vmatmul.mubr.bf16.gmra.mrb[0].mxu0 %v2000
      %v2066 = vpop.f32.mrb[0].mxu0
      %v2067 = vadd.f32 0.0, %v2066
      %v2068 = vpop.f32.mrb[0].mxu0
      %v2069 = vpop.f32.mrb[0].mxu0
      %v2070 = vadd.f32 0.0, %v2069
      %v2071 = vpop.f32.mrb[0].mxu0
      %2072 = vmatprep.mubr.bf16.mxu0 0
      %2073 = vmatmul.mubr.bf16.gmra.mrb[0].mxu0 %v2002
      %v2074 = vpop.f32.mrb[0].mxu0
      %v2075 = vadd.f32 0.0, %v2074
      %v2076 = vpop.f32.mrb[0].mxu0
      %v2077 = vpop.f32.mrb[0].mxu0
      %v2078 = vadd.f32 0.0, %v2077
      %v2079 = vpop.f32.mrb[0].mxu0
      %2080 = vmatprep.mubr.bf16.mxu0 0
      %2081 = vmatmul.mubr.bf16.gmra.mrb[0].mxu0 %v2004
      %v2082 = vpop.f32.mrb[0].mxu0
      %v2083 = vadd.f32 0.0, %v2082
      %v2084 = vpop.f32.mrb[0].mxu0
      %v2085 = vpop.f32.mrb[0].mxu0
      %v2086 = vadd.f32 0.0, %v2085
      %v2087 = vpop.f32.mrb[0].mxu0
      %2088 = vmatprep.mubr.bf16.mxu0 0
      %2089 = vmatmul.mubr.bf16.gmra.mrb[0].mxu0 %v2006
      %v2090 = vpop.f32.mrb[0].mxu0
      %v2091 = vadd.f32 0.0, %v2090
      %v2092 = vpop.f32.mrb[0].mxu0
      %v2093 = vpop.f32.mrb[0].mxu0
      %v2094 = vadd.f32 0.0, %v2093
      %v2095 = vpop.f32.mrb[0].mxu0
      %2096 = vmatprep.mubr.bf16.mxu0 0
      %2097 = vmatmul.mubr.bf16.gmra.mrb[0].mxu0 %v2008
      %v2098 = vpop.f32.mrb[0].mxu0
      %v2099 = vadd.f32 0.0, %v2098
      %v2100 = vpop.f32.mrb[0].mxu0
      %v2101 = vpop.f32.mrb[0].mxu0
      %v2102 = vadd.f32 0.0, %v2101
      %v2103 = vpop.f32.mrb[0].mxu0
      %2104 = vmatprep.mubr.bf16.mxu0 0
      %2105 = vmatmul.mubr.bf16.gmra.mrb[0].mxu0 %v2010
      %v2106 = vpop.f32.mrb[0].mxu0
      %v2107 = vadd.f32 0.0, %v2106
      %v2108 = vpop.f32.mrb[0].mxu0
      %v2109 = vpop.f32.mrb[0].mxu0
      %v2110 = vadd.f32 0.0, %v2109
      %v2111 = vpop.f32.mrb[0].mxu0
      %2112 = vdwg.mxu0
      %v2114 = vsel %vm1995, %v1945, 0
      %v2117 = vsel %vm1995, %v1946, 0
      %v2120 = vsel %vm1995, %v1947, 0
      %v2123 = vsel %vm1995, %v1948, 0
      %v2126 = vsel %vm1995, %v1949, 0
      %v2129 = vsel %vm1995, %v1950, 0
      %v2132 = vsel %vm1995, %v1951, 0
      %v2135 = vsel %vm1995, %v1952, 0
      %v2138 = vsel %vm2012, %v507, 0
      %2140 = vmatprep.subr.bf16.mxu0 0
      %2141 = vmatpush1.bf16.msra.mxu0 %v2138
      %2142 = vmatprep.subr.bf16.mxu0 0
      %2143 = vmatpush1.bf16.msra.mxu0 0
      %2144 = vmatprep.subr.bf16.mxu0 0
      %2145 = vmatpush1.bf16.msra.mxu0 0
      %2146 = vmatprep.subr.bf16.mxu0 0
      %2147 = vmatpush1.bf16.msra.mxu0 0
      %2148 = vmatprep.subr.bf16.mxu0 0
      %2149 = vmatpush1.bf16.msra.mxu0 0
      %2150 = vmatprep.subr.bf16.mxu0 0
      %2151 = vmatpush1.bf16.msra.mxu0 0
      %2152 = vmatprep.subr.bf16.mxu0 0
      %2153 = vmatpush1.bf16.msra.mxu0 0
      %2154 = vmatprep.subr.bf16.mxu0 0
      %2155 = vmatpush1.bf16.msra.mxu0 0
      %2156 = vmatprep.subr.bf16.mxu0 0
      %2157 = vmatpush1.bf16.msra.mxu0 0
      %2158 = vmatprep.subr.bf16.mxu0 0
      %2159 = vmatpush1.bf16.msra.mxu0 0
      %2160 = vmatprep.subr.bf16.mxu0 0
      %2161 = vmatpush1.bf16.msra.mxu0 0
      %2162 = vmatprep.subr.bf16.mxu0 0
      %2163 = vmatpush1.bf16.msra.mxu0 0
      %2164 = vmatprep.subr.bf16.mxu0 0
      %2165 = vmatpush1.bf16.msra.mxu0 0
      %2166 = vmatprep.subr.bf16.mxu0 0
      %2167 = vmatpush1.bf16.msra.mxu0 0
      %2168 = vmatprep.subr.bf16.mxu0 0
      %2169 = vmatpush1.bf16.msra.mxu0 0
      %2170 = vmatprep.subr.bf16.mxu0 0
      %2171 = vmatpush1.bf16.msra.mxu0 0
      %2172 = vmatprep.mubr.bf16.mxu0 0
      %2173 = vmatmul.mubr.bf16.gmra.mrb[0].mxu0 %v2114
      %v2174 = vpop.f32.mrb[0].mxu0
      %v2175 = vadd.f32 %v2051, %v2174
      %v2176 = vpop.f32.mrb[0].mxu0
      %v2177 = vpop.f32.mrb[0].mxu0
      %v2178 = vadd.f32 %v2054, %v2177
      %v2179 = vpop.f32.mrb[0].mxu0
      %2180 = vmatprep.mubr.bf16.mxu0 0
      %2181 = vmatmul.mubr.bf16.gmra.mrb[0].mxu0 %v2117
      %v2182 = vpop.f32.mrb[0].mxu0
      %v2183 = vadd.f32 %v2059, %v2182
      %v2184 = vpop.f32.mrb[0].mxu0
      %v2185 = vpop.f32.mrb[0].mxu0
      %v2186 = vadd.f32 %v2062, %v2185
      %v2187 = vpop.f32.mrb[0].mxu0
      %2188 = vmatprep.mubr.bf16.mxu0 0
      %2189 = vmatmul.mubr.bf16.gmra.mrb[0].mxu0 %v2120
      %v2190 = vpop.f32.mrb[0].mxu0
      %v2191 = vadd.f32 %v2067, %v2190
      %v2192 = vpop.f32.mrb[0].mxu0
      %v2193 = vpop.f32.mrb[0].mxu0
      %v2194 = vadd.f32 %v2070, %v2193
      %v2195 = vpop.f32.mrb[0].mxu0
      %2196 = vmatprep.mubr.bf16.mxu0 0
      %2197 = vmatmul.mubr.bf16.gmra.mrb[0].mxu0 %v2123
      %v2198 = vpop.f32.mrb[0].mxu0
      %v2199 = vadd.f32 %v2075, %v2198
      %v2200 = vpop.f32.mrb[0].mxu0
      %v2201 = vpop.f32.mrb[0].mxu0
      %v2202 = vadd.f32 %v2078, %v2201
      %v2203 = vpop.f32.mrb[0].mxu0
      %2204 = vmatprep.mubr.bf16.mxu0 0
      %2205 = vmatmul.mubr.bf16.gmra.mrb[0].mxu0 %v2126
      %v2206 = vpop.f32.mrb[0].mxu0
      %v2207 = vadd.f32 %v2083, %v2206
      %v2208 = vpop.f32.mrb[0].mxu0
      %v2209 = vpop.f32.mrb[0].mxu0
      %v2210 = vadd.f32 %v2086, %v2209
      %v2211 = vpop.f32.mrb[0].mxu0
      %2212 = vmatprep.mubr.bf16.mxu0 0
      %2213 = vmatmul.mubr.bf16.gmra.mrb[0].mxu0 %v2129
      %v2214 = vpop.f32.mrb[0].mxu0
      %v2215 = vadd.f32 %v2091, %v2214
      %v2216 = vpop.f32.mrb[0].mxu0
      %v2217 = vpop.f32.mrb[0].mxu0
      %v2218 = vadd.f32 %v2094, %v2217
      %v2219 = vpop.f32.mrb[0].mxu0
      %2220 = vmatprep.mubr.bf16.mxu0 0
      %2221 = vmatmul.mubr.bf16.gmra.mrb[0].mxu0 %v2132
      %v2222 = vpop.f32.mrb[0].mxu0
      %v2223 = vadd.f32 %v2099, %v2222
      %v2224 = vpop.f32.mrb[0].mxu0
      %v2225 = vpop.f32.mrb[0].mxu0
      %v2226 = vadd.f32 %v2102, %v2225
      %v2227 = vpop.f32.mrb[0].mxu0
      %2228 = vmatprep.mubr.bf16.mxu0 0
      %2229 = vmatmul.mubr.bf16.gmra.mrb[0].mxu0 %v2135
      %v2230 = vpop.f32.mrb[0].mxu0
      %v2231 = vadd.f32 %v2107, %v2230
      %v2232 = vpop.f32.mrb[0].mxu0
      %v2233 = vpop.f32.mrb[0].mxu0
      %v2234 = vadd.f32 %v2110, %v2233
      %v2235 = vpop.f32.mrb[0].mxu0
      %2236 = vdwg.mxu0
      %v2238 = vsel %vm1995, %v1985, 0
      %v2241 = vsel %vm1995, %v1986, 0
      %v2244 = vsel %vm1995, %v1987, 0
      %v2247 = vsel %vm1995, %v1988, 0
      %v2250 = vsel %vm1995, %v1989, 0
      %v2253 = vsel %vm1995, %v1990, 0
      %v2256 = vsel %vm1995, %v1991, 0
      %v2259 = vsel %vm1995, %v1992, 0
      %v2262 = vsel %vm2012, %v509, 0
      %2264 = vmatprep.subr.bf16.mxu0 0
      %2265 = vmatpush1.bf16.msra.mxu0 %v2262
      %2266 = vmatprep.subr.bf16.mxu0 0
      %2267 = vmatpush1.bf16.msra.mxu0 0
      %2268 = vmatprep.subr.bf16.mxu0 0
      %2269 = vmatpush1.bf16.msra.mxu0 0
      %2270 = vmatprep.subr.bf16.mxu0 0
      %2271 = vmatpush1.bf16.msra.mxu0 0
      %2272 = vmatprep.subr.bf16.mxu0 0
      %2273 = vmatpush1.bf16.msra.mxu0 0
      %2274 = vmatprep.subr.bf16.mxu0 0
      %2275 = vmatpush1.bf16.msra.mxu0 0
      %2276 = vmatprep.subr.bf16.mxu0 0
      %2277 = vmatpush1.bf16.msra.mxu0 0
      %2278 = vmatprep.subr.bf16.mxu0 0
      %2279 = vmatpush1.bf16.msra.mxu0 0
      %2280 = vmatprep.subr.bf16.mxu0 0
      %2281 = vmatpush1.bf16.msra.mxu0 0
      %2282 = vmatprep.subr.bf16.mxu0 0
      %2283 = vmatpush1.bf16.msra.mxu0 0
      %2284 = vmatprep.subr.bf16.mxu0 0
      %2285 = vmatpush1.bf16.msra.mxu0 0
      %2286 = vmatprep.subr.bf16.mxu0 0
      %2287 = vmatpush1.bf16.msra.mxu0 0
      %2288 = vmatprep.subr.bf16.mxu0 0
      %2289 = vmatpush1.bf16.msra.mxu0 0
      %2290 = vmatprep.subr.bf16.mxu0 0
      %2291 = vmatpush1.bf16.msra.mxu0 0
      %2292 = vmatprep.subr.bf16.mxu0 0
      %2293 = vmatpush1.bf16.msra.mxu0 0
      %2294 = vmatprep.subr.bf16.mxu0 0
      %2295 = vmatpush1.bf16.msra.mxu0 0
      %2296 = vmatprep.mubr.bf16.mxu0 0
      %2297 = vmatmul.mubr.bf16.gmra.mrb[0].mxu0 %v2238
      %v2298 = vpop.f32.mrb[0].mxu0
      %v2299 = vadd.f32 0.0, %v2298
      %v2300 = vpop.f32.mrb[0].mxu0
      %v2301 = vpop.f32.mrb[0].mxu0
      %v2302 = vadd.f32 0.0, %v2301
      %v2303 = vpop.f32.mrb[0].mxu0
      %2304 = vmatprep.mubr.bf16.mxu0 0
      %2305 = vmatmul.mubr.bf16.gmra.mrb[0].mxu0 %v2241
      %v2306 = vpop.f32.mrb[0].mxu0
      %v2307 = vadd.f32 0.0, %v2306
      %v2308 = vpop.f32.mrb[0].mxu0
      %v2309 = vpop.f32.mrb[0].mxu0
      %v2310 = vadd.f32 0.0, %v2309
      %v2311 = vpop.f32.mrb[0].mxu0
      %2312 = vmatprep.mubr.bf16.mxu0 0
      %2313 = vmatmul.mubr.bf16.gmra.mrb[0].mxu0 %v2244
      %v2314 = vpop.f32.mrb[0].mxu0
      %v2315 = vadd.f32 0.0, %v2314
      %v2316 = vpop.f32.mrb[0].mxu0
      %v2317 = vpop.f32.mrb[0].mxu0
      %v2318 = vadd.f32 0.0, %v2317
      %v2319 = vpop.f32.mrb[0].mxu0
      %2320 = vmatprep.mubr.bf16.mxu0 0
      %2321 = vmatmul.mubr.bf16.gmra.mrb[0].mxu0 %v2247
      %v2322 = vpop.f32.mrb[0].mxu0
      %v2323 = vadd.f32 0.0, %v2322
      %v2324 = vpop.f32.mrb[0].mxu0
      %v2325 = vpop.f32.mrb[0].mxu0
      %v2326 = vadd.f32 0.0, %v2325
      %v2327 = vpop.f32.mrb[0].mxu0
      %2328 = vmatprep.mubr.bf16.mxu0 0
      %2329 = vmatmul.mubr.bf16.gmra.mrb[0].mxu0 %v2250
      %v2330 = vpop.f32.mrb[0].mxu0
      %v2331 = vadd.f32 0.0, %v2330
      %v2332 = vpop.f32.mrb[0].mxu0
      %v2333 = vpop.f32.mrb[0].mxu0
      %v2334 = vadd.f32 0.0, %v2333
      %v2335 = vpop.f32.mrb[0].mxu0
      %2336 = vmatprep.mubr.bf16.mxu0 0
      %2337 = vmatmul.mubr.bf16.gmra.mrb[0].mxu0 %v2253
      %v2338 = vpop.f32.mrb[0].mxu0
      %v2339 = vadd.f32 0.0, %v2338
      %v2340 = vpop.f32.mrb[0].mxu0
      %v2341 = vpop.f32.mrb[0].mxu0
      %v2342 = vadd.f32 0.0, %v2341
      %v2343 = vpop.f32.mrb[0].mxu0
      %2344 = vmatprep.mubr.bf16.mxu0 0
      %2345 = vmatmul.mubr.bf16.gmra.mrb[0].mxu0 %v2256
      %v2346 = vpop.f32.mrb[0].mxu0
      %v2347 = vadd.f32 0.0, %v2346
      %v2348 = vpop.f32.mrb[0].mxu0
      %v2349 = vpop.f32.mrb[0].mxu0
      %v2350 = vadd.f32 0.0, %v2349
      %v2351 = vpop.f32.mrb[0].mxu0
      %2352 = vmatprep.mubr.bf16.mxu0 0
      %2353 = vmatmul.mubr.bf16.gmra.mrb[0].mxu0 %v2259
      %v2354 = vpop.f32.mrb[0].mxu0
      %v2355 = vadd.f32 0.0, %v2354
      %v2356 = vpop.f32.mrb[0].mxu0
      %v2357 = vpop.f32.mrb[0].mxu0
      %v2358 = vadd.f32 0.0, %v2357
      %v2359 = vpop.f32.mrb[0].mxu0
      %2360 = vdwg.mxu0
      %v2361 = vadd.f32 %v2175, %v2299
      %v2362 = vadd.f32 %v2178, %v2302
      %v2363 = vadd.f32 %v2183, %v2307
      %v2364 = vadd.f32 %v2186, %v2310
      %v2365 = vadd.f32 %v2191, %v2315
      %v2366 = vadd.f32 %v2194, %v2318
      %v2367 = vadd.f32 %v2199, %v2323
      %v2368 = vadd.f32 %v2202, %v2326
      %v2369 = vadd.f32 %v2207, %v2331
      %v2370 = vadd.f32 %v2210, %v2334
      %v2371 = vadd.f32 %v2215, %v2339
      %v2372 = vadd.f32 %v2218, %v2342
      %v2373 = vadd.f32 %v2223, %v2347
      %v2374 = vadd.f32 %v2226, %v2350
      %v2375 = vadd.f32 %v2231, %v2355
      %v2376 = vadd.f32 %v2234, %v2358
      %v2378 = vsel %vm1995, %v1953, 0
      %v2381 = vsel %vm2012, %v510, 0
      %2383 = vmatprep.subr.bf16.mxu0 0
      %2384 = vmatpush1.bf16.msra.mxu0 %v2381
      %2385 = vmatprep.subr.bf16.mxu0 0
      %2386 = vmatpush1.bf16.msra.mxu0 0
      %2387 = vmatprep.subr.bf16.mxu0 0
      %2388 = vmatpush1.bf16.msra.mxu0 0
      %2389 = vmatprep.subr.bf16.mxu0 0
      %2390 = vmatpush1.bf16.msra.mxu0 0
      %2391 = vmatprep.subr.bf16.mxu0 0
      %2392 = vmatpush1.bf16.msra.mxu0 0
      %2393 = vmatprep.subr.bf16.mxu0 0
      %2394 = vmatpush1.bf16.msra.mxu0 0
      %2395 = vmatprep.subr.bf16.mxu0 0
      %2396 = vmatpush1.bf16.msra.mxu0 0
      %2397 = vmatprep.subr.bf16.mxu0 0
      %2398 = vmatpush1.bf16.msra.mxu0 0
      %2399 = vmatprep.subr.bf16.mxu0 0
      %2400 = vmatpush1.bf16.msra.mxu0 0
      %2401 = vmatprep.subr.bf16.mxu0 0
      %2402 = vmatpush1.bf16.msra.mxu0 0
      %2403 = vmatprep.subr.bf16.mxu0 0
      %2404 = vmatpush1.bf16.msra.mxu0 0
      %2405 = vmatprep.subr.bf16.mxu0 0
      %2406 = vmatpush1.bf16.msra.mxu0 0
      %2407 = vmatprep.subr.bf16.mxu0 0
      %2408 = vmatpush1.bf16.msra.mxu0 0
      %2409 = vmatprep.subr.bf16.mxu0 0
      %2410 = vmatpush1.bf16.msra.mxu0 0
      %2411 = vmatprep.subr.bf16.mxu0 0
      %2412 = vmatpush1.bf16.msra.mxu0 0
      %2413 = vmatprep.subr.bf16.mxu0 0
      %2414 = vmatpush1.bf16.msra.mxu0 0
      %2415 = vmatprep.mubr.bf16.mxu0 0
      %2416 = vmatmul.mubr.bf16.gmra.mrb[0].mxu0 %v2117
      %v2417 = vpop.f32.mrb[0].mxu0
      %v2418 = vadd.f32 0.0, %v2417
      %v2419 = vpop.f32.mrb[0].mxu0
      %v2420 = vpop.f32.mrb[0].mxu0
      %v2421 = vadd.f32 0.0, %v2420
      %v2422 = vpop.f32.mrb[0].mxu0
      %2423 = vmatprep.mubr.bf16.mxu0 0
      %2424 = vmatmul.mubr.bf16.gmra.mrb[0].mxu0 %v2120
      %v2425 = vpop.f32.mrb[0].mxu0
      %v2426 = vadd.f32 0.0, %v2425
      %v2427 = vpop.f32.mrb[0].mxu0
      %v2428 = vpop.f32.mrb[0].mxu0
      %v2429 = vadd.f32 0.0, %v2428
      %v2430 = vpop.f32.mrb[0].mxu0
      %2431 = vmatprep.mubr.bf16.mxu0 0
      %2432 = vmatmul.mubr.bf16.gmra.mrb[0].mxu0 %v2123
      %v2433 = vpop.f32.mrb[0].mxu0
      %v2434 = vadd.f32 0.0, %v2433
      %v2435 = vpop.f32.mrb[0].mxu0
      %v2436 = vpop.f32.mrb[0].mxu0
      %v2437 = vadd.f32 0.0, %v2436
      %v2438 = vpop.f32.mrb[0].mxu0
      %2439 = vmatprep.mubr.bf16.mxu0 0
      %2440 = vmatmul.mubr.bf16.gmra.mrb[0].mxu0 %v2126
      %v2441 = vpop.f32.mrb[0].mxu0
      %v2442 = vadd.f32 0.0, %v2441
      %v2443 = vpop.f32.mrb[0].mxu0
      %v2444 = vpop.f32.mrb[0].mxu0
      %v2445 = vadd.f32 0.0, %v2444
      %v2446 = vpop.f32.mrb[0].mxu0
      %2447 = vmatprep.mubr.bf16.mxu0 0
      %2448 = vmatmul.mubr.bf16.gmra.mrb[0].mxu0 %v2129
      %v2449 = vpop.f32.mrb[0].mxu0
      %v2450 = vadd.f32 0.0, %v2449
      %v2451 = vpop.f32.mrb[0].mxu0
      %v2452 = vpop.f32.mrb[0].mxu0
      %v2453 = vadd.f32 0.0, %v2452
      %v2454 = vpop.f32.mrb[0].mxu0
      %2455 = vmatprep.mubr.bf16.mxu0 0
      %2456 = vmatmul.mubr.bf16.gmra.mrb[0].mxu0 %v2132
      %v2457 = vpop.f32.mrb[0].mxu0
      %v2458 = vadd.f32 0.0, %v2457
      %v2459 = vpop.f32.mrb[0].mxu0
      %v2460 = vpop.f32.mrb[0].mxu0
      %v2461 = vadd.f32 0.0, %v2460
      %v2462 = vpop.f32.mrb[0].mxu0
      %2463 = vmatprep.mubr.bf16.mxu0 0
      %2464 = vmatmul.mubr.bf16.gmra.mrb[0].mxu0 %v2135
      %v2465 = vpop.f32.mrb[0].mxu0
      %v2466 = vadd.f32 0.0, %v2465
      %v2467 = vpop.f32.mrb[0].mxu0
      %v2468 = vpop.f32.mrb[0].mxu0
      %v2469 = vadd.f32 0.0, %v2468
      %v2470 = vpop.f32.mrb[0].mxu0
      %2471 = vmatprep.mubr.bf16.mxu0 0
      %2472 = vmatmul.mubr.bf16.gmra.mrb[0].mxu0 %v2378
      %v2473 = vpop.f32.mrb[0].mxu0
      %v2474 = vadd.f32 0.0, %v2473
      %v2475 = vpop.f32.mrb[0].mxu0
      %v2476 = vpop.f32.mrb[0].mxu0
      %v2477 = vadd.f32 0.0, %v2476
      %v2478 = vpop.f32.mrb[0].mxu0
      %2479 = vdwg.mxu0
      %v2480 = vadd.f32 %v2361, %v2418
      %v2481 = vadd.f32 %v2362, %v2421
      %v2482 = vadd.f32 %v2363, %v2426
      %v2483 = vadd.f32 %v2364, %v2429
      %v2484 = vadd.f32 %v2365, %v2434
      %v2485 = vadd.f32 %v2366, %v2437
      %v2486 = vadd.f32 %v2367, %v2442
      %v2487 = vadd.f32 %v2368, %v2445
      %v2488 = vadd.f32 %v2369, %v2450
      %v2489 = vadd.f32 %v2370, %v2453
      %v2490 = vadd.f32 %v2371, %v2458
      %v2491 = vadd.f32 %v2372, %v2461
      %v2492 = vadd.f32 %v2373, %v2466
      %v2493 = vadd.f32 %v2374, %v2469
      %v2494 = vadd.f32 %v2375, %v2474
      %v2495 = vadd.f32 %v2376, %v2477
      %v2496 = vsel %vm1995, %v1863, 0
      %v2499 = vsel %vm2012, %v511, 0
      %2501 = vmatprep.subr.bf16.mxu0 0
      %2502 = vmatpush1.bf16.msra.mxu0 %v2499
      %2503 = vmatprep.subr.bf16.mxu0 0
      %2504 = vmatpush1.bf16.msra.mxu0 0
      %2505 = vmatprep.subr.bf16.mxu0 0
      %2506 = vmatpush1.bf16.msra.mxu0 0
      %2507 = vmatprep.subr.bf16.mxu0 0
      %2508 = vmatpush1.bf16.msra.mxu0 0
      %2509 = vmatprep.subr.bf16.mxu0 0
      %2510 = vmatpush1.bf16.msra.mxu0 0
      %2511 = vmatprep.subr.bf16.mxu0 0
      %2512 = vmatpush1.bf16.msra.mxu0 0
      %2513 = vmatprep.subr.bf16.mxu0 0
      %2514 = vmatpush1.bf16.msra.mxu0 0
      %2515 = vmatprep.subr.bf16.mxu0 0
      %2516 = vmatpush1.bf16.msra.mxu0 0
      %2517 = vmatprep.subr.bf16.mxu0 0
      %2518 = vmatpush1.bf16.msra.mxu0 0
      %2519 = vmatprep.subr.bf16.mxu0 0
      %2520 = vmatpush1.bf16.msra.mxu0 0
      %2521 = vmatprep.subr.bf16.mxu0 0
      %2522 = vmatpush1.bf16.msra.mxu0 0
      %2523 = vmatprep.subr.bf16.mxu0 0
      %2524 = vmatpush1.bf16.msra.mxu0 0
      %2525 = vmatprep.subr.bf16.mxu0 0
      %2526 = vmatpush1.bf16.msra.mxu0 0
      %2527 = vmatprep.subr.bf16.mxu0 0
      %2528 = vmatpush1.bf16.msra.mxu0 0
      %2529 = vmatprep.subr.bf16.mxu0 0
      %2530 = vmatpush1.bf16.msra.mxu0 0
      %2531 = vmatprep.subr.bf16.mxu0 0
      %2532 = vmatpush1.bf16.msra.mxu0 0
      %2533 = vmatprep.mubr.bf16.mxu0 0
      %2534 = vmatmul.mubr.bf16.gmra.mrb[0].mxu0 %v1998
      %v2535 = vpop.f32.mrb[0].mxu0
      %v2536 = vadd.f32 0.0, %v2535
      %v2537 = vpop.f32.mrb[0].mxu0
      %v2538 = vpop.f32.mrb[0].mxu0
      %v2539 = vadd.f32 0.0, %v2538
      %v2540 = vpop.f32.mrb[0].mxu0
      %2541 = vmatprep.mubr.bf16.mxu0 0
      %2542 = vmatmul.mubr.bf16.gmra.mrb[0].mxu0 %v2000
      %v2543 = vpop.f32.mrb[0].mxu0
      %v2544 = vadd.f32 0.0, %v2543
      %v2545 = vpop.f32.mrb[0].mxu0
      %v2546 = vpop.f32.mrb[0].mxu0
      %v2547 = vadd.f32 0.0, %v2546
      %v2548 = vpop.f32.mrb[0].mxu0
      %2549 = vmatprep.mubr.bf16.mxu0 0
      %2550 = vmatmul.mubr.bf16.gmra.mrb[0].mxu0 %v2002
      %v2551 = vpop.f32.mrb[0].mxu0
      %v2552 = vadd.f32 0.0, %v2551
      %v2553 = vpop.f32.mrb[0].mxu0
      %v2554 = vpop.f32.mrb[0].mxu0
      %v2555 = vadd.f32 0.0, %v2554
      %v2556 = vpop.f32.mrb[0].mxu0
      %2557 = vmatprep.mubr.bf16.mxu0 0
      %2558 = vmatmul.mubr.bf16.gmra.mrb[0].mxu0 %v2004
      %v2559 = vpop.f32.mrb[0].mxu0
      %v2560 = vadd.f32 0.0, %v2559
      %v2561 = vpop.f32.mrb[0].mxu0
      %v2562 = vpop.f32.mrb[0].mxu0
      %v2563 = vadd.f32 0.0, %v2562
      %v2564 = vpop.f32.mrb[0].mxu0
      %2565 = vmatprep.mubr.bf16.mxu0 0
      %2566 = vmatmul.mubr.bf16.gmra.mrb[0].mxu0 %v2006
      %v2567 = vpop.f32.mrb[0].mxu0
      %v2568 = vadd.f32 0.0, %v2567
      %v2569 = vpop.f32.mrb[0].mxu0
      %v2570 = vpop.f32.mrb[0].mxu0
      %v2571 = vadd.f32 0.0, %v2570
      %v2572 = vpop.f32.mrb[0].mxu0
      %2573 = vmatprep.mubr.bf16.mxu0 0
      %2574 = vmatmul.mubr.bf16.gmra.mrb[0].mxu0 %v2008
      %v2575 = vpop.f32.mrb[0].mxu0
      %v2576 = vadd.f32 0.0, %v2575
      %v2577 = vpop.f32.mrb[0].mxu0
      %v2578 = vpop.f32.mrb[0].mxu0
      %v2579 = vadd.f32 0.0, %v2578
      %v2580 = vpop.f32.mrb[0].mxu0
      %2581 = vmatprep.mubr.bf16.mxu0 0
      %2582 = vmatmul.mubr.bf16.gmra.mrb[0].mxu0 %v2010
      %v2583 = vpop.f32.mrb[0].mxu0
      %v2584 = vadd.f32 0.0, %v2583
      %v2585 = vpop.f32.mrb[0].mxu0
      %v2586 = vpop.f32.mrb[0].mxu0
      %v2587 = vadd.f32 0.0, %v2586
      %v2588 = vpop.f32.mrb[0].mxu0
      %2589 = vmatprep.mubr.bf16.mxu0 0
      %2590 = vmatmul.mubr.bf16.gmra.mrb[0].mxu0 %v2496
      %v2591 = vpop.f32.mrb[0].mxu0
      %v2592 = vadd.f32 0.0, %v2591
      %v2593 = vpop.f32.mrb[0].mxu0
      %v2594 = vpop.f32.mrb[0].mxu0
      %v2595 = vadd.f32 0.0, %v2594
      %v2596 = vpop.f32.mrb[0].mxu0
      %2597 = vdwg.mxu0
      %v2598 = vadd.f32 %v2480, %v2536
      %v2599 = vadd.f32 %v2481, %v2539
      %v2600 = vadd.f32 %v2482, %v2544
      %v2601 = vadd.f32 %v2483, %v2547
      %v2602 = vadd.f32 %v2484, %v2552
      %v2603 = vadd.f32 %v2485, %v2555
      %v2604 = vadd.f32 %v2486, %v2560
      %v2605 = vadd.f32 %v2487, %v2563
      %v2606 = vadd.f32 %v2488, %v2568
      %v2607 = vadd.f32 %v2489, %v2571
      %v2608 = vadd.f32 %v2490, %v2576
      %v2609 = vadd.f32 %v2491, %v2579
      %v2610 = vadd.f32 %v2492, %v2584
      %v2611 = vadd.f32 %v2493, %v2587
      %v2612 = vadd.f32 %v2494, %v2592
      %v2613 = vadd.f32 %v2495, %v2595
      %v2615 = vsel %vm1995, %v1993, 0
      %v2618 = vsel %vm2012, %v512, 0
      %2620 = vmatprep.subr.bf16.mxu0 0
      %2621 = vmatpush1.bf16.msra.mxu0 %v2618
      %2622 = vmatprep.subr.bf16.mxu0 0
      %2623 = vmatpush1.bf16.msra.mxu0 0
      %2624 = vmatprep.subr.bf16.mxu0 0
      %2625 = vmatpush1.bf16.msra.mxu0 0
      %2626 = vmatprep.subr.bf16.mxu0 0
      %2627 = vmatpush1.bf16.msra.mxu0 0
      %2628 = vmatprep.subr.bf16.mxu0 0
      %2629 = vmatpush1.bf16.msra.mxu0 0
      %2630 = vmatprep.subr.bf16.mxu0 0
      %2631 = vmatpush1.bf16.msra.mxu0 0
      %2632 = vmatprep.subr.bf16.mxu0 0
      %2633 = vmatpush1.bf16.msra.mxu0 0
      %2634 = vmatprep.subr.bf16.mxu0 0
      %2635 = vmatpush1.bf16.msra.mxu0 0
      %2636 = vmatprep.subr.bf16.mxu0 0
      %2637 = vmatpush1.bf16.msra.mxu0 0
      %2638 = vmatprep.subr.bf16.mxu0 0
      %2639 = vmatpush1.bf16.msra.mxu0 0
      %2640 = vmatprep.subr.bf16.mxu0 0
      %2641 = vmatpush1.bf16.msra.mxu0 0
      %2642 = vmatprep.subr.bf16.mxu0 0
      %2643 = vmatpush1.bf16.msra.mxu0 0
      %2644 = vmatprep.subr.bf16.mxu0 0
      %2645 = vmatpush1.bf16.msra.mxu0 0
      %2646 = vmatprep.subr.bf16.mxu0 0
      %2647 = vmatpush1.bf16.msra.mxu0 0
      %2648 = vmatprep.subr.bf16.mxu0 0
      %2649 = vmatpush1.bf16.msra.mxu0 0
      %2650 = vmatprep.subr.bf16.mxu0 0
      %2651 = vmatpush1.bf16.msra.mxu0 0
      %2652 = vmatprep.mubr.bf16.mxu0 0
      %2653 = vmatmul.mubr.bf16.gmra.mrb[0].mxu0 %v2241
      %v2654 = vpop.f32.mrb[0].mxu0
      %v2655 = vadd.f32 0.0, %v2654
      %v2656 = vpop.f32.mrb[0].mxu0
      %v2657 = vpop.f32.mrb[0].mxu0
      %v2658 = vadd.f32 0.0, %v2657
      %v2659 = vpop.f32.mrb[0].mxu0
      %2660 = vmatprep.mubr.bf16.mxu0 0
      %2661 = vmatmul.mubr.bf16.gmra.mrb[0].mxu0 %v2244
      %v2662 = vpop.f32.mrb[0].mxu0
      %v2663 = vadd.f32 0.0, %v2662
      %v2664 = vpop.f32.mrb[0].mxu0
      %v2665 = vpop.f32.mrb[0].mxu0
      %v2666 = vadd.f32 0.0, %v2665
      %v2667 = vpop.f32.mrb[0].mxu0
      %2668 = vmatprep.mubr.bf16.mxu0 0
      %2669 = vmatmul.mubr.bf16.gmra.mrb[0].mxu0 %v2247
      %v2670 = vpop.f32.mrb[0].mxu0
      %v2671 = vadd.f32 0.0, %v2670
      %v2672 = vpop.f32.mrb[0].mxu0
      %v2673 = vpop.f32.mrb[0].mxu0
      %v2674 = vadd.f32 0.0, %v2673
      %v2675 = vpop.f32.mrb[0].mxu0
      %2676 = vmatprep.mubr.bf16.mxu0 0
      %2677 = vmatmul.mubr.bf16.gmra.mrb[0].mxu0 %v2250
      %v2678 = vpop.f32.mrb[0].mxu0
      %v2679 = vadd.f32 0.0, %v2678
      %v2680 = vpop.f32.mrb[0].mxu0
      %v2681 = vpop.f32.mrb[0].mxu0
      %v2682 = vadd.f32 0.0, %v2681
      %v2683 = vpop.f32.mrb[0].mxu0
      %2684 = vmatprep.mubr.bf16.mxu0 0
      %2685 = vmatmul.mubr.bf16.gmra.mrb[0].mxu0 %v2253
      %v2686 = vpop.f32.mrb[0].mxu0
      %v2687 = vadd.f32 0.0, %v2686
      %v2688 = vpop.f32.mrb[0].mxu0
      %v2689 = vpop.f32.mrb[0].mxu0
      %v2690 = vadd.f32 0.0, %v2689
      %v2691 = vpop.f32.mrb[0].mxu0
      %2692 = vmatprep.mubr.bf16.mxu0 0
      %2693 = vmatmul.mubr.bf16.gmra.mrb[0].mxu0 %v2256
      %v2694 = vpop.f32.mrb[0].mxu0
      %v2695 = vadd.f32 0.0, %v2694
      %v2696 = vpop.f32.mrb[0].mxu0
      %v2697 = vpop.f32.mrb[0].mxu0
      %v2698 = vadd.f32 0.0, %v2697
      %v2699 = vpop.f32.mrb[0].mxu0
      %2700 = vmatprep.mubr.bf16.mxu0 0
      %2701 = vmatmul.mubr.bf16.gmra.mrb[0].mxu0 %v2259
      %v2702 = vpop.f32.mrb[0].mxu0
      %v2703 = vadd.f32 0.0, %v2702
      %v2704 = vpop.f32.mrb[0].mxu0
      %v2705 = vpop.f32.mrb[0].mxu0
      %v2706 = vadd.f32 0.0, %v2705
      %v2707 = vpop.f32.mrb[0].mxu0
      %2708 = vmatprep.mubr.bf16.mxu0 0
      %2709 = vmatmul.mubr.bf16.gmra.mrb[0].mxu0 %v2615
      %v2710 = vpop.f32.mrb[0].mxu0
      %v2711 = vadd.f32 0.0, %v2710
      %v2712 = vpop.f32.mrb[0].mxu0
      %v2713 = vpop.f32.mrb[0].mxu0
      %v2714 = vadd.f32 0.0, %v2713
      %v2715 = vpop.f32.mrb[0].mxu0
      %2716 = vdwg.mxu0
      %v2717 = vadd.f32 %v2598, %v2655
      %v2718 = vadd.f32 %v2599, %v2658
      %v2719 = vadd.f32 %v2600, %v2663
      %v2720 = vadd.f32 %v2601, %v2666
      %v2721 = vadd.f32 %v2602, %v2671
      %v2722 = vadd.f32 %v2603, %v2674
      %v2723 = vadd.f32 %v2604, %v2679
      %v2724 = vadd.f32 %v2605, %v2682
      %v2725 = vadd.f32 %v2606, %v2687
      %v2726 = vadd.f32 %v2607, %v2690
      %v2727 = vadd.f32 %v2608, %v2695
      %v2728 = vadd.f32 %v2609, %v2698
      %v2729 = vadd.f32 %v2610, %v2703
      %v2730 = vadd.f32 %v2611, %v2706
      %v2731 = vadd.f32 %v2612, %v2711
      %v2732 = vadd.f32 %v2613, %v2714
      %v2734 = vsel %vm1995, %v1954, 0
      %v2737 = vsel %vm2012, %v513, 0
      %2739 = vmatprep.subr.bf16.mxu0 0
      %2740 = vmatpush1.bf16.msra.mxu0 %v2737
      %2741 = vmatprep.subr.bf16.mxu0 0
      %2742 = vmatpush1.bf16.msra.mxu0 0
      %2743 = vmatprep.subr.bf16.mxu0 0
      %2744 = vmatpush1.bf16.msra.mxu0 0
      %2745 = vmatprep.subr.bf16.mxu0 0
      %2746 = vmatpush1.bf16.msra.mxu0 0
      %2747 = vmatprep.subr.bf16.mxu0 0
      %2748 = vmatpush1.bf16.msra.mxu0 0
      %2749 = vmatprep.subr.bf16.mxu0 0
      %2750 = vmatpush1.bf16.msra.mxu0 0
      %2751 = vmatprep.subr.bf16.mxu0 0
      %2752 = vmatpush1.bf16.msra.mxu0 0
      %2753 = vmatprep.subr.bf16.mxu0 0
      %2754 = vmatpush1.bf16.msra.mxu0 0
      %2755 = vmatprep.subr.bf16.mxu0 0
      %2756 = vmatpush1.bf16.msra.mxu0 0
      %2757 = vmatprep.subr.bf16.mxu0 0
      %2758 = vmatpush1.bf16.msra.mxu0 0
      %2759 = vmatprep.subr.bf16.mxu0 0
      %2760 = vmatpush1.bf16.msra.mxu0 0
      %2761 = vmatprep.subr.bf16.mxu0 0
      %2762 = vmatpush1.bf16.msra.mxu0 0
      %2763 = vmatprep.subr.bf16.mxu0 0
      %2764 = vmatpush1.bf16.msra.mxu0 0
      %2765 = vmatprep.subr.bf16.mxu0 0
      %2766 = vmatpush1.bf16.msra.mxu0 0
      %2767 = vmatprep.subr.bf16.mxu0 0
      %2768 = vmatpush1.bf16.msra.mxu0 0
      %2769 = vmatprep.subr.bf16.mxu0 0
      %2770 = vmatpush1.bf16.msra.mxu0 0
      %2771 = vmatprep.mubr.bf16.mxu0 0
      %2772 = vmatmul.mubr.bf16.gmra.mrb[0].mxu0 %v2120
      %v2773 = vpop.f32.mrb[0].mxu0
      %v2774 = vadd.f32 0.0, %v2773
      %v2775 = vpop.f32.mrb[0].mxu0
      %v2776 = vpop.f32.mrb[0].mxu0
      %v2777 = vadd.f32 0.0, %v2776
      %v2778 = vpop.f32.mrb[0].mxu0
      %2779 = vmatprep.mubr.bf16.mxu0 0
      %2780 = vmatmul.mubr.bf16.gmra.mrb[0].mxu0 %v2123
      %v2781 = vpop.f32.mrb[0].mxu0
      %v2782 = vadd.f32 0.0, %v2781
      %v2783 = vpop.f32.mrb[0].mxu0
      %v2784 = vpop.f32.mrb[0].mxu0
      %v2785 = vadd.f32 0.0, %v2784
      %v2786 = vpop.f32.mrb[0].mxu0
      %2787 = vmatprep.mubr.bf16.mxu0 0
      %2788 = vmatmul.mubr.bf16.gmra.mrb[0].mxu0 %v2126
      %v2789 = vpop.f32.mrb[0].mxu0
      %v2790 = vadd.f32 0.0, %v2789
      %v2791 = vpop.f32.mrb[0].mxu0
      %v2792 = vpop.f32.mrb[0].mxu0
      %v2793 = vadd.f32 0.0, %v2792
      %v2794 = vpop.f32.mrb[0].mxu0
      %2795 = vmatprep.mubr.bf16.mxu0 0
      %2796 = vmatmul.mubr.bf16.gmra.mrb[0].mxu0 %v2129
      %v2797 = vpop.f32.mrb[0].mxu0
      %v2798 = vadd.f32 0.0, %v2797
      %v2799 = vpop.f32.mrb[0].mxu0
      %v2800 = vpop.f32.mrb[0].mxu0
      %v2801 = vadd.f32 0.0, %v2800
      %v2802 = vpop.f32.mrb[0].mxu0
      %2803 = vmatprep.mubr.bf16.mxu0 0
      %2804 = vmatmul.mubr.bf16.gmra.mrb[0].mxu0 %v2132
      %v2805 = vpop.f32.mrb[0].mxu0
      %v2806 = vadd.f32 0.0, %v2805
      %v2807 = vpop.f32.mrb[0].mxu0
      %v2808 = vpop.f32.mrb[0].mxu0
      %v2809 = vadd.f32 0.0, %v2808
      %v2810 = vpop.f32.mrb[0].mxu0
      %2811 = vmatprep.mubr.bf16.mxu0 0
      %2812 = vmatmul.mubr.bf16.gmra.mrb[0].mxu0 %v2135
      %v2813 = vpop.f32.mrb[0].mxu0
      %v2814 = vadd.f32 0.0, %v2813
      %v2815 = vpop.f32.mrb[0].mxu0
      %v2816 = vpop.f32.mrb[0].mxu0
      %v2817 = vadd.f32 0.0, %v2816
      %v2818 = vpop.f32.mrb[0].mxu0
      %2819 = vmatprep.mubr.bf16.mxu0 0
      %2820 = vmatmul.mubr.bf16.gmra.mrb[0].mxu0 %v2378
      %v2821 = vpop.f32.mrb[0].mxu0
      %v2822 = vadd.f32 0.0, %v2821
      %v2823 = vpop.f32.mrb[0].mxu0
      %v2824 = vpop.f32.mrb[0].mxu0
      %v2825 = vadd.f32 0.0, %v2824
      %v2826 = vpop.f32.mrb[0].mxu0
      %2827 = vmatprep.mubr.bf16.mxu0 0
      %2828 = vmatmul.mubr.bf16.gmra.mrb[0].mxu0 %v2734
      %v2829 = vpop.f32.mrb[0].mxu0
      %v2830 = vadd.f32 0.0, %v2829
      %v2831 = vpop.f32.mrb[0].mxu0
      %v2832 = vpop.f32.mrb[0].mxu0
      %v2833 = vadd.f32 0.0, %v2832
      %v2834 = vpop.f32.mrb[0].mxu0
      %2835 = vdwg.mxu0
      %v2836 = vadd.f32 %v2717, %v2774
      %v2837 = vadd.f32 %v2718, %v2777
      %v2838 = vadd.f32 %v2719, %v2782
      %v2839 = vadd.f32 %v2720, %v2785
      %v2840 = vadd.f32 %v2721, %v2790
      %v2841 = vadd.f32 %v2722, %v2793
      %v2842 = vadd.f32 %v2723, %v2798
      %v2843 = vadd.f32 %v2724, %v2801
      %v2844 = vadd.f32 %v2725, %v2806
      %v2845 = vadd.f32 %v2726, %v2809
      %v2846 = vadd.f32 %v2727, %v2814
      %v2847 = vadd.f32 %v2728, %v2817
      %v2848 = vadd.f32 %v2729, %v2822
      %v2849 = vadd.f32 %v2730, %v2825
      %v2850 = vadd.f32 %v2731, %v2830
      %v2851 = vadd.f32 %v2732, %v2833
      %v2852 = vsel %vm1995, %v1864, 0
      %v2855 = vsel %vm2012, %v514, 0
      %2857 = vmatprep.subr.bf16.mxu0 0
      %2858 = vmatpush1.bf16.msra.mxu0 %v2855
      %2859 = vmatprep.subr.bf16.mxu0 0
      %2860 = vmatpush1.bf16.msra.mxu0 0
      %2861 = vmatprep.subr.bf16.mxu0 0
      %2862 = vmatpush1.bf16.msra.mxu0 0
      %2863 = vmatprep.subr.bf16.mxu0 0
      %2864 = vmatpush1.bf16.msra.mxu0 0
      %2865 = vmatprep.subr.bf16.mxu0 0
      %2866 = vmatpush1.bf16.msra.mxu0 0
      %2867 = vmatprep.subr.bf16.mxu0 0
      %2868 = vmatpush1.bf16.msra.mxu0 0
      %2869 = vmatprep.subr.bf16.mxu0 0
      %2870 = vmatpush1.bf16.msra.mxu0 0
      %2871 = vmatprep.subr.bf16.mxu0 0
      %2872 = vmatpush1.bf16.msra.mxu0 0
      %2873 = vmatprep.subr.bf16.mxu0 0
      %2874 = vmatpush1.bf16.msra.mxu0 0
      %2875 = vmatprep.subr.bf16.mxu0 0
      %2876 = vmatpush1.bf16.msra.mxu0 0
      %2877 = vmatprep.subr.bf16.mxu0 0
      %2878 = vmatpush1.bf16.msra.mxu0 0
      %2879 = vmatprep.subr.bf16.mxu0 0
      %2880 = vmatpush1.bf16.msra.mxu0 0
      %2881 = vmatprep.subr.bf16.mxu0 0
      %2882 = vmatpush1.bf16.msra.mxu0 0
      %2883 = vmatprep.subr.bf16.mxu0 0
      %2884 = vmatpush1.bf16.msra.mxu0 0
      %2885 = vmatprep.subr.bf16.mxu0 0
      %2886 = vmatpush1.bf16.msra.mxu0 0
      %2887 = vmatprep.subr.bf16.mxu0 0
      %2888 = vmatpush1.bf16.msra.mxu0 0
      %2889 = vmatprep.mubr.bf16.mxu0 0
      %2890 = vmatmul.mubr.bf16.gmra.mrb[0].mxu0 %v2000
      %v2891 = vpop.f32.mrb[0].mxu0
      %v2892 = vadd.f32 0.0, %v2891
      %v2893 = vpop.f32.mrb[0].mxu0
      %v2894 = vpop.f32.mrb[0].mxu0
      %v2895 = vadd.f32 0.0, %v2894
      %v2896 = vpop.f32.mrb[0].mxu0
      %2897 = vmatprep.mubr.bf16.mxu0 0
      %2898 = vmatmul.mubr.bf16.gmra.mrb[0].mxu0 %v2002
      %v2899 = vpop.f32.mrb[0].mxu0
      %v2900 = vadd.f32 0.0, %v2899
      %v2901 = vpop.f32.mrb[0].mxu0
      %v2902 = vpop.f32.mrb[0].mxu0
      %v2903 = vadd.f32 0.0, %v2902
      %v2904 = vpop.f32.mrb[0].mxu0
      %2905 = vmatprep.mubr.bf16.mxu0 0
      %2906 = vmatmul.mubr.bf16.gmra.mrb[0].mxu0 %v2004
      %v2907 = vpop.f32.mrb[0].mxu0
      %v2908 = vadd.f32 0.0, %v2907
      %v2909 = vpop.f32.mrb[0].mxu0
      %v2910 = vpop.f32.mrb[0].mxu0
      %v2911 = vadd.f32 0.0, %v2910
      %v2912 = vpop.f32.mrb[0].mxu0
      %2913 = vmatprep.mubr.bf16.mxu0 0
      %2914 = vmatmul.mubr.bf16.gmra.mrb[0].mxu0 %v2006
      %v2915 = vpop.f32.mrb[0].mxu0
      %v2916 = vadd.f32 0.0, %v2915
      %v2917 = vpop.f32.mrb[0].mxu0
      %v2918 = vpop.f32.mrb[0].mxu0
      %v2919 = vadd.f32 0.0, %v2918
      %v2920 = vpop.f32.mrb[0].mxu0
      %2921 = vmatprep.mubr.bf16.mxu0 0
      %2922 = vmatmul.mubr.bf16.gmra.mrb[0].mxu0 %v2008
      %v2923 = vpop.f32.mrb[0].mxu0
      %v2924 = vadd.f32 0.0, %v2923
      %v2925 = vpop.f32.mrb[0].mxu0
      %v2926 = vpop.f32.mrb[0].mxu0
      %v2927 = vadd.f32 0.0, %v2926
      %v2928 = vpop.f32.mrb[0].mxu0
      %2929 = vmatprep.mubr.bf16.mxu0 0
      %2930 = vmatmul.mubr.bf16.gmra.mrb[0].mxu0 %v2010
      %v2931 = vpop.f32.mrb[0].mxu0
      %v2932 = vadd.f32 0.0, %v2931
      %v2933 = vpop.f32.mrb[0].mxu0
      %v2934 = vpop.f32.mrb[0].mxu0
      %v2935 = vadd.f32 0.0, %v2934
      %v2936 = vpop.f32.mrb[0].mxu0
      %2937 = vmatprep.mubr.bf16.mxu0 0
      %2938 = vmatmul.mubr.bf16.gmra.mrb[0].mxu0 %v2496
      %v2939 = vpop.f32.mrb[0].mxu0
      %v2940 = vadd.f32 0.0, %v2939
      %v2941 = vpop.f32.mrb[0].mxu0
      %v2942 = vpop.f32.mrb[0].mxu0
      %v2943 = vadd.f32 0.0, %v2942
      %v2944 = vpop.f32.mrb[0].mxu0
      %2945 = vmatprep.mubr.bf16.mxu0 0
      %2946 = vmatmul.mubr.bf16.gmra.mrb[0].mxu0 %v2852
      %v2947 = vpop.f32.mrb[0].mxu0
      %v2948 = vadd.f32 0.0, %v2947
      %v2949 = vpop.f32.mrb[0].mxu0
      %v2950 = vpop.f32.mrb[0].mxu0
      %v2951 = vadd.f32 0.0, %v2950
      %v2952 = vpop.f32.mrb[0].mxu0
      %2953 = vdwg.mxu0
      %v2954 = vadd.f32 %v2836, %v2892
      %v2955 = vadd.f32 %v2837, %v2895
      %v2956 = vadd.f32 %v2838, %v2900
      %v2957 = vadd.f32 %v2839, %v2903
      %v2958 = vadd.f32 %v2840, %v2908
      %v2959 = vadd.f32 %v2841, %v2911
      %v2960 = vadd.f32 %v2842, %v2916
      %v2961 = vadd.f32 %v2843, %v2919
      %v2962 = vadd.f32 %v2844, %v2924
      %v2963 = vadd.f32 %v2845, %v2927
      %v2964 = vadd.f32 %v2846, %v2932
      %v2965 = vadd.f32 %v2847, %v2935
      %v2966 = vadd.f32 %v2848, %v2940
      %v2967 = vadd.f32 %v2849, %v2943
      %v2968 = vadd.f32 %v2850, %v2948
      %v2969 = vadd.f32 %v2851, %v2951
      %v2971 = vsel %vm1995, %v1994, 0
      %v2974 = vsel %vm2012, %v515, 0
      %2976 = vmatprep.subr.bf16.mxu0 0
      %2977 = vmatpush1.bf16.msra.mxu0 %v2974
      %2978 = vmatprep.subr.bf16.mxu0 0
      %2979 = vmatpush1.bf16.msra.mxu0 0
      %2980 = vmatprep.subr.bf16.mxu0 0
      %2981 = vmatpush1.bf16.msra.mxu0 0
      %2982 = vmatprep.subr.bf16.mxu0 0
      %2983 = vmatpush1.bf16.msra.mxu0 0
      %2984 = vmatprep.subr.bf16.mxu0 0
      %2985 = vmatpush1.bf16.msra.mxu0 0
      %2986 = vmatprep.subr.bf16.mxu0 0
      %2987 = vmatpush1.bf16.msra.mxu0 0
      %2988 = vmatprep.subr.bf16.mxu0 0
      %2989 = vmatpush1.bf16.msra.mxu0 0
      %2990 = vmatprep.subr.bf16.mxu0 0
      %2991 = vmatpush1.bf16.msra.mxu0 0
      %2992 = vmatprep.subr.bf16.mxu0 0
      %2993 = vmatpush1.bf16.msra.mxu0 0
      %2994 = vmatprep.subr.bf16.mxu0 0
      %2995 = vmatpush1.bf16.msra.mxu0 0
      %2996 = vmatprep.subr.bf16.mxu0 0
      %2997 = vmatpush1.bf16.msra.mxu0 0
      %2998 = vmatprep.subr.bf16.mxu0 0
      %2999 = vmatpush1.bf16.msra.mxu0 0
      %3000 = vmatprep.subr.bf16.mxu0 0
      %3001 = vmatpush1.bf16.msra.mxu0 0
      %3002 = vmatprep.subr.bf16.mxu0 0
      %3003 = vmatpush1.bf16.msra.mxu0 0
      %3004 = vmatprep.subr.bf16.mxu0 0
      %3005 = vmatpush1.bf16.msra.mxu0 0
      %3006 = vmatprep.subr.bf16.mxu0 0
      %3007 = vmatpush1.bf16.msra.mxu0 0
      %3008 = vmatprep.mubr.bf16.mxu0 0
      %3009 = vmatmul.mubr.bf16.gmra.mrb[0].mxu0 %v2244
      %v3010 = vpop.f32.mrb[0].mxu0
      %v3011 = vadd.f32 0.0, %v3010
      %v3012 = vpop.f32.mrb[0].mxu0
      %v3013 = vpop.f32.mrb[0].mxu0
      %v3014 = vadd.f32 0.0, %v3013
      %v3015 = vpop.f32.mrb[0].mxu0
      %3016 = vmatprep.mubr.bf16.mxu0 0
      %3017 = vmatmul.mubr.bf16.gmra.mrb[0].mxu0 %v2247
      %v3018 = vpop.f32.mrb[0].mxu0
      %v3019 = vadd.f32 0.0, %v3018
      %v3020 = vpop.f32.mrb[0].mxu0
      %v3021 = vpop.f32.mrb[0].mxu0
      %v3022 = vadd.f32 0.0, %v3021
      %v3023 = vpop.f32.mrb[0].mxu0
      %3024 = vmatprep.mubr.bf16.mxu0 0
      %3025 = vmatmul.mubr.bf16.gmra.mrb[0].mxu0 %v2250
      %v3026 = vpop.f32.mrb[0].mxu0
      %v3027 = vadd.f32 0.0, %v3026
      %v3028 = vpop.f32.mrb[0].mxu0
      %v3029 = vpop.f32.mrb[0].mxu0
      %v3030 = vadd.f32 0.0, %v3029
      %v3031 = vpop.f32.mrb[0].mxu0
      %3032 = vmatprep.mubr.bf16.mxu0 0
      %3033 = vmatmul.mubr.bf16.gmra.mrb[0].mxu0 %v2253
      %v3034 = vpop.f32.mrb[0].mxu0
      %v3035 = vadd.f32 0.0, %v3034
      %v3036 = vpop.f32.mrb[0].mxu0
      %v3037 = vpop.f32.mrb[0].mxu0
      %v3038 = vadd.f32 0.0, %v3037
      %v3039 = vpop.f32.mrb[0].mxu0
      %3040 = vmatprep.mubr.bf16.mxu0 0
      %3041 = vmatmul.mubr.bf16.gmra.mrb[0].mxu0 %v2256
      %v3042 = vpop.f32.mrb[0].mxu0
      %v3043 = vadd.f32 0.0, %v3042
      %v3044 = vpop.f32.mrb[0].mxu0
      %v3045 = vpop.f32.mrb[0].mxu0
      %v3046 = vadd.f32 0.0, %v3045
      %v3047 = vpop.f32.mrb[0].mxu0
      %3048 = vmatprep.mubr.bf16.mxu0 0
      %3049 = vmatmul.mubr.bf16.gmra.mrb[0].mxu0 %v2259
      %v3050 = vpop.f32.mrb[0].mxu0
      %v3051 = vadd.f32 0.0, %v3050
      %v3052 = vpop.f32.mrb[0].mxu0
      %v3053 = vpop.f32.mrb[0].mxu0
      %v3054 = vadd.f32 0.0, %v3053
      %v3055 = vpop.f32.mrb[0].mxu0
      %3056 = vmatprep.mubr.bf16.mxu0 0
      %3057 = vmatmul.mubr.bf16.gmra.mrb[0].mxu0 %v2615
      %v3058 = vpop.f32.mrb[0].mxu0
      %v3059 = vadd.f32 0.0, %v3058
      %v3060 = vpop.f32.mrb[0].mxu0
      %v3061 = vpop.f32.mrb[0].mxu0
      %v3062 = vadd.f32 0.0, %v3061
      %v3063 = vpop.f32.mrb[0].mxu0
      %3064 = vmatprep.mubr.bf16.mxu0 0
      %3065 = vmatmul.mubr.bf16.gmra.mrb[0].mxu0 %v2971
      %v3066 = vpop.f32.mrb[0].mxu0
      %v3067 = vadd.f32 0.0, %v3066
      %v3068 = vpop.f32.mrb[0].mxu0
      %v3069 = vpop.f32.mrb[0].mxu0
      %v3070 = vadd.f32 0.0, %v3069
      %v3071 = vpop.f32.mrb[0].mxu0
      %3072 = vdwg.mxu0
      %v3073 = vadd.f32 %v2954, %v3011
      %v3074 = vadd.f32 %v2955, %v3014
      %v3075 = vadd.f32 %v2956, %v3019
      %v3076 = vadd.f32 %v2957, %v3022
      %v3077 = vadd.f32 %v2958, %v3027
      %v3078 = vadd.f32 %v2959, %v3030
      %v3079 = vadd.f32 %v2960, %v3035
      %v3080 = vadd.f32 %v2961, %v3038
      %v3081 = vadd.f32 %v2962, %v3043
      %v3082 = vadd.f32 %v2963, %v3046
      %v3083 = vadd.f32 %v2964, %v3051
      %v3084 = vadd.f32 %v2965, %v3054
      %v3085 = vadd.f32 %v2966, %v3059
      %v3086 = vadd.f32 %v2967, %v3062
      %v3087 = vadd.f32 %v2968, %v3067
      %v3088 = vadd.f32 %v2969, %v3070
      %v3090 = vsel %vm546, %v517, 0
      %3092 = vmatprep.subr.bf16.mxu0 0
      %3093 = vmatpush1.bf16.msra.mxu0 %v3090
      %3094 = vmatprep.subr.bf16.mxu0 0
      %3095 = vmatpush1.bf16.msra.mxu0 0
      %3096 = vmatprep.subr.bf16.mxu0 0
      %3097 = vmatpush1.bf16.msra.mxu0 0
      %3098 = vmatprep.subr.bf16.mxu0 0
      %3099 = vmatpush1.bf16.msra.mxu0 0
      %3100 = vmatprep.subr.bf16.mxu0 0
      %3101 = vmatpush1.bf16.msra.mxu0 0
      %3102 = vmatprep.subr.bf16.mxu0 0
      %3103 = vmatpush1.bf16.msra.mxu0 0
      %3104 = vmatprep.subr.bf16.mxu0 0
      %3105 = vmatpush1.bf16.msra.mxu0 0
      %3106 = vmatprep.subr.bf16.mxu0 0
      %3107 = vmatpush1.bf16.msra.mxu0 0
      %3108 = vmatprep.subr.bf16.mxu0 0
      %3109 = vmatpush1.bf16.msra.mxu0 0
      %3110 = vmatprep.subr.bf16.mxu0 0
      %3111 = vmatpush1.bf16.msra.mxu0 0
      %3112 = vmatprep.subr.bf16.mxu0 0
      %3113 = vmatpush1.bf16.msra.mxu0 0
      %3114 = vmatprep.subr.bf16.mxu0 0
      %3115 = vmatpush1.bf16.msra.mxu0 0
      %3116 = vmatprep.subr.bf16.mxu0 0
      %3117 = vmatpush1.bf16.msra.mxu0 0
      %3118 = vmatprep.subr.bf16.mxu0 0
      %3119 = vmatpush1.bf16.msra.mxu0 0
      %3120 = vmatprep.subr.bf16.mxu0 0
      %3121 = vmatpush1.bf16.msra.mxu0 0
      %3122 = vmatprep.subr.bf16.mxu0 0
      %3123 = vmatpush1.bf16.msra.mxu0 0
      %3124 = vmatprep.mubr.bf16.mxu0 0
      %3125 = vmatmul.mubr.bf16.gmra.mrb[0].mxu0 %v528
      %v3126 = vpop.f32.mrb[0].mxu0
      %v3127 = vadd.f32 0.0, %v3126
      %v3128 = vpop.f32.mrb[0].mxu0
      %v3129 = vpop.f32.mrb[0].mxu0
      %v3130 = vadd.f32 0.0, %v3129
      %v3131 = vpop.f32.mrb[0].mxu0
      %3132 = vmatprep.mubr.bf16.mxu0 0
      %3133 = vmatmul.mubr.bf16.gmra.mrb[0].mxu0 %v530
      %v3134 = vpop.f32.mrb[0].mxu0
      %v3135 = vadd.f32 0.0, %v3134
      %v3136 = vpop.f32.mrb[0].mxu0
      %v3137 = vpop.f32.mrb[0].mxu0
      %v3138 = vadd.f32 0.0, %v3137
      %v3139 = vpop.f32.mrb[0].mxu0
      %3140 = vmatprep.mubr.bf16.mxu0 0
      %3141 = vmatmul.mubr.bf16.gmra.mrb[0].mxu0 %v532
      %v3142 = vpop.f32.mrb[0].mxu0
      %v3143 = vadd.f32 0.0, %v3142
      %v3144 = vpop.f32.mrb[0].mxu0
      %v3145 = vpop.f32.mrb[0].mxu0
      %v3146 = vadd.f32 0.0, %v3145
      %v3147 = vpop.f32.mrb[0].mxu0
      %3148 = vmatprep.mubr.bf16.mxu0 0
      %3149 = vmatmul.mubr.bf16.gmra.mrb[0].mxu0 %v534
      %v3150 = vpop.f32.mrb[0].mxu0
      %v3151 = vadd.f32 0.0, %v3150
      %v3152 = vpop.f32.mrb[0].mxu0
      %v3153 = vpop.f32.mrb[0].mxu0
      %v3154 = vadd.f32 0.0, %v3153
      %v3155 = vpop.f32.mrb[0].mxu0
      %3156 = vmatprep.mubr.bf16.mxu0 0
      %3157 = vmatmul.mubr.bf16.gmra.mrb[0].mxu0 %v536
      %v3158 = vpop.f32.mrb[0].mxu0
      %v3159 = vadd.f32 0.0, %v3158
      %v3160 = vpop.f32.mrb[0].mxu0
      %v3161 = vpop.f32.mrb[0].mxu0
      %v3162 = vadd.f32 0.0, %v3161
      %v3163 = vpop.f32.mrb[0].mxu0
      %3164 = vmatprep.mubr.bf16.mxu0 0
      %3165 = vmatmul.mubr.bf16.gmra.mrb[0].mxu0 %v538
      %v3166 = vpop.f32.mrb[0].mxu0
      %v3167 = vadd.f32 0.0, %v3166
      %v3168 = vpop.f32.mrb[0].mxu0
      %v3169 = vpop.f32.mrb[0].mxu0
      %v3170 = vadd.f32 0.0, %v3169
      %v3171 = vpop.f32.mrb[0].mxu0
      %3172 = vmatprep.mubr.bf16.mxu0 0
      %3173 = vmatmul.mubr.bf16.gmra.mrb[0].mxu0 %v540
      %v3174 = vpop.f32.mrb[0].mxu0
      %v3175 = vadd.f32 0.0, %v3174
      %v3176 = vpop.f32.mrb[0].mxu0
      %v3177 = vpop.f32.mrb[0].mxu0
      %v3178 = vadd.f32 0.0, %v3177
      %v3179 = vpop.f32.mrb[0].mxu0
      %3180 = vmatprep.mubr.bf16.mxu0 0
      %3181 = vmatmul.mubr.bf16.gmra.mrb[0].mxu0 %v542
      %v3182 = vpop.f32.mrb[0].mxu0
      %v3183 = vadd.f32 0.0, %v3182
      %v3184 = vpop.f32.mrb[0].mxu0
      %v3185 = vpop.f32.mrb[0].mxu0
      %v3186 = vadd.f32 0.0, %v3185
      %v3187 = vpop.f32.mrb[0].mxu0
      %3188 = vdwg.mxu0
      %v3190 = vsel %vm546, %v516, 0
      %3192 = vmatprep.subr.bf16.mxu0 0
      %3193 = vmatpush1.bf16.msra.mxu0 %v3190
      %3194 = vmatprep.subr.bf16.mxu0 0
      %3195 = vmatpush1.bf16.msra.mxu0 0
      %3196 = vmatprep.subr.bf16.mxu0 0
      %3197 = vmatpush1.bf16.msra.mxu0 0
      %3198 = vmatprep.subr.bf16.mxu0 0
      %3199 = vmatpush1.bf16.msra.mxu0 0
      %3200 = vmatprep.subr.bf16.mxu0 0
      %3201 = vmatpush1.bf16.msra.mxu0 0
      %3202 = vmatprep.subr.bf16.mxu0 0
      %3203 = vmatpush1.bf16.msra.mxu0 0
      %3204 = vmatprep.subr.bf16.mxu0 0
      %3205 = vmatpush1.bf16.msra.mxu0 0
      %3206 = vmatprep.subr.bf16.mxu0 0
      %3207 = vmatpush1.bf16.msra.mxu0 0
      %3208 = vmatprep.subr.bf16.mxu0 0
      %3209 = vmatpush1.bf16.msra.mxu0 0
      %3210 = vmatprep.subr.bf16.mxu0 0
      %3211 = vmatpush1.bf16.msra.mxu0 0
      %3212 = vmatprep.subr.bf16.mxu0 0
      %3213 = vmatpush1.bf16.msra.mxu0 0
      %3214 = vmatprep.subr.bf16.mxu0 0
      %3215 = vmatpush1.bf16.msra.mxu0 0
      %3216 = vmatprep.subr.bf16.mxu0 0
      %3217 = vmatpush1.bf16.msra.mxu0 0
      %3218 = vmatprep.subr.bf16.mxu0 0
      %3219 = vmatpush1.bf16.msra.mxu0 0
      %3220 = vmatprep.subr.bf16.mxu0 0
      %3221 = vmatpush1.bf16.msra.mxu0 0
      %3222 = vmatprep.subr.bf16.mxu0 0
      %3223 = vmatpush1.bf16.msra.mxu0 0
      %3224 = vmatprep.mubr.bf16.mxu0 0
      %3225 = vmatmul.mubr.bf16.gmra.mrb[0].mxu0 %v667
      %v3226 = vpop.f32.mrb[0].mxu0
      %v3227 = vadd.f32 %v3127, %v3226
      %v3228 = vpop.f32.mrb[0].mxu0
      %v3229 = vpop.f32.mrb[0].mxu0
      %v3230 = vadd.f32 %v3130, %v3229
      %v3231 = vpop.f32.mrb[0].mxu0
      %3232 = vmatprep.mubr.bf16.mxu0 0
      %3233 = vmatmul.mubr.bf16.gmra.mrb[0].mxu0 %v670
      %v3234 = vpop.f32.mrb[0].mxu0
      %v3235 = vadd.f32 %v3135, %v3234
      %v3236 = vpop.f32.mrb[0].mxu0
      %v3237 = vpop.f32.mrb[0].mxu0
      %v3238 = vadd.f32 %v3138, %v3237
      %v3239 = vpop.f32.mrb[0].mxu0
      %3240 = vmatprep.mubr.bf16.mxu0 0
      %3241 = vmatmul.mubr.bf16.gmra.mrb[0].mxu0 %v673
      %v3242 = vpop.f32.mrb[0].mxu0
      %v3243 = vadd.f32 %v3143, %v3242
      %v3244 = vpop.f32.mrb[0].mxu0
      %v3245 = vpop.f32.mrb[0].mxu0
      %v3246 = vadd.f32 %v3146, %v3245
      %v3247 = vpop.f32.mrb[0].mxu0
      %3248 = vmatprep.mubr.bf16.mxu0 0
      %3249 = vmatmul.mubr.bf16.gmra.mrb[0].mxu0 %v676
      %v3250 = vpop.f32.mrb[0].mxu0
      %v3251 = vadd.f32 %v3151, %v3250
      %v3252 = vpop.f32.mrb[0].mxu0
      %v3253 = vpop.f32.mrb[0].mxu0
      %v3254 = vadd.f32 %v3154, %v3253
      %v3255 = vpop.f32.mrb[0].mxu0
      %3256 = vmatprep.mubr.bf16.mxu0 0
      %3257 = vmatmul.mubr.bf16.gmra.mrb[0].mxu0 %v679
      %v3258 = vpop.f32.mrb[0].mxu0
      %v3259 = vadd.f32 %v3159, %v3258
      %v3260 = vpop.f32.mrb[0].mxu0
      %v3261 = vpop.f32.mrb[0].mxu0
      %v3262 = vadd.f32 %v3162, %v3261
      %v3263 = vpop.f32.mrb[0].mxu0
      %3264 = vmatprep.mubr.bf16.mxu0 0
      %3265 = vmatmul.mubr.bf16.gmra.mrb[0].mxu0 %v682
      %v3266 = vpop.f32.mrb[0].mxu0
      %v3267 = vadd.f32 %v3167, %v3266
      %v3268 = vpop.f32.mrb[0].mxu0
      %v3269 = vpop.f32.mrb[0].mxu0
      %v3270 = vadd.f32 %v3170, %v3269
      %v3271 = vpop.f32.mrb[0].mxu0
      %3272 = vmatprep.mubr.bf16.mxu0 0
      %3273 = vmatmul.mubr.bf16.gmra.mrb[0].mxu0 %v685
      %v3274 = vpop.f32.mrb[0].mxu0
      %v3275 = vadd.f32 %v3175, %v3274
      %v3276 = vpop.f32.mrb[0].mxu0
      %v3277 = vpop.f32.mrb[0].mxu0
      %v3278 = vadd.f32 %v3178, %v3277
      %v3279 = vpop.f32.mrb[0].mxu0
      %3280 = vmatprep.mubr.bf16.mxu0 0
      %3281 = vmatmul.mubr.bf16.gmra.mrb[0].mxu0 %v688
      %v3282 = vpop.f32.mrb[0].mxu0
      %v3283 = vadd.f32 %v3183, %v3282
      %v3284 = vpop.f32.mrb[0].mxu0
      %v3285 = vpop.f32.mrb[0].mxu0
      %v3286 = vadd.f32 %v3186, %v3285
      %v3287 = vpop.f32.mrb[0].mxu0
      %3288 = vdwg.mxu0
      %v3290 = vsel %vm546, %v518, 0
      %3292 = vmatprep.subr.bf16.mxu0 0
      %3293 = vmatpush1.bf16.msra.mxu0 %v3290
      %3294 = vmatprep.subr.bf16.mxu0 0
      %3295 = vmatpush1.bf16.msra.mxu0 0
      %3296 = vmatprep.subr.bf16.mxu0 0
      %3297 = vmatpush1.bf16.msra.mxu0 0
      %3298 = vmatprep.subr.bf16.mxu0 0
      %3299 = vmatpush1.bf16.msra.mxu0 0
      %3300 = vmatprep.subr.bf16.mxu0 0
      %3301 = vmatpush1.bf16.msra.mxu0 0
      %3302 = vmatprep.subr.bf16.mxu0 0
      %3303 = vmatpush1.bf16.msra.mxu0 0
      %3304 = vmatprep.subr.bf16.mxu0 0
      %3305 = vmatpush1.bf16.msra.mxu0 0
      %3306 = vmatprep.subr.bf16.mxu0 0
      %3307 = vmatpush1.bf16.msra.mxu0 0
      %3308 = vmatprep.subr.bf16.mxu0 0
      %3309 = vmatpush1.bf16.msra.mxu0 0
      %3310 = vmatprep.subr.bf16.mxu0 0
      %3311 = vmatpush1.bf16.msra.mxu0 0
      %3312 = vmatprep.subr.bf16.mxu0 0
      %3313 = vmatpush1.bf16.msra.mxu0 0
      %3314 = vmatprep.subr.bf16.mxu0 0
      %3315 = vmatpush1.bf16.msra.mxu0 0
      %3316 = vmatprep.subr.bf16.mxu0 0
      %3317 = vmatpush1.bf16.msra.mxu0 0
      %3318 = vmatprep.subr.bf16.mxu0 0
      %3319 = vmatpush1.bf16.msra.mxu0 0
      %3320 = vmatprep.subr.bf16.mxu0 0
      %3321 = vmatpush1.bf16.msra.mxu0 0
      %3322 = vmatprep.subr.bf16.mxu0 0
      %3323 = vmatpush1.bf16.msra.mxu0 0
      %3324 = vmatprep.mubr.bf16.mxu0 0
      %3325 = vmatmul.mubr.bf16.gmra.mrb[0].mxu0 %v813
      %v3326 = vpop.f32.mrb[0].mxu0
      %v3327 = vadd.f32 0.0, %v3326
      %v3328 = vpop.f32.mrb[0].mxu0
      %v3329 = vpop.f32.mrb[0].mxu0
      %v3330 = vadd.f32 0.0, %v3329
      %v3331 = vpop.f32.mrb[0].mxu0
      %3332 = vmatprep.mubr.bf16.mxu0 0
      %3333 = vmatmul.mubr.bf16.gmra.mrb[0].mxu0 %v816
      %v3334 = vpop.f32.mrb[0].mxu0
      %v3335 = vadd.f32 0.0, %v3334
      %v3336 = vpop.f32.mrb[0].mxu0
      %v3337 = vpop.f32.mrb[0].mxu0
      %v3338 = vadd.f32 0.0, %v3337
      %v3339 = vpop.f32.mrb[0].mxu0
      %3340 = vmatprep.mubr.bf16.mxu0 0
      %3341 = vmatmul.mubr.bf16.gmra.mrb[0].mxu0 %v819
      %v3342 = vpop.f32.mrb[0].mxu0
      %v3343 = vadd.f32 0.0, %v3342
      %v3344 = vpop.f32.mrb[0].mxu0
      %v3345 = vpop.f32.mrb[0].mxu0
      %v3346 = vadd.f32 0.0, %v3345
      %v3347 = vpop.f32.mrb[0].mxu0
      %3348 = vmatprep.mubr.bf16.mxu0 0
      %3349 = vmatmul.mubr.bf16.gmra.mrb[0].mxu0 %v822
      %v3350 = vpop.f32.mrb[0].mxu0
      %v3351 = vadd.f32 0.0, %v3350
      %v3352 = vpop.f32.mrb[0].mxu0
      %v3353 = vpop.f32.mrb[0].mxu0
      %v3354 = vadd.f32 0.0, %v3353
      %v3355 = vpop.f32.mrb[0].mxu0
      %3356 = vmatprep.mubr.bf16.mxu0 0
      %3357 = vmatmul.mubr.bf16.gmra.mrb[0].mxu0 %v825
      %v3358 = vpop.f32.mrb[0].mxu0
      %v3359 = vadd.f32 0.0, %v3358
      %v3360 = vpop.f32.mrb[0].mxu0
      %v3361 = vpop.f32.mrb[0].mxu0
      %v3362 = vadd.f32 0.0, %v3361
      %v3363 = vpop.f32.mrb[0].mxu0
      %3364 = vmatprep.mubr.bf16.mxu0 0
      %3365 = vmatmul.mubr.bf16.gmra.mrb[0].mxu0 %v828
      %v3366 = vpop.f32.mrb[0].mxu0
      %v3367 = vadd.f32 0.0, %v3366
      %v3368 = vpop.f32.mrb[0].mxu0
      %v3369 = vpop.f32.mrb[0].mxu0
      %v3370 = vadd.f32 0.0, %v3369
      %v3371 = vpop.f32.mrb[0].mxu0
      %3372 = vmatprep.mubr.bf16.mxu0 0
      %3373 = vmatmul.mubr.bf16.gmra.mrb[0].mxu0 %v831
      %v3374 = vpop.f32.mrb[0].mxu0
      %v3375 = vadd.f32 0.0, %v3374
      %v3376 = vpop.f32.mrb[0].mxu0
      %v3377 = vpop.f32.mrb[0].mxu0
      %v3378 = vadd.f32 0.0, %v3377
      %v3379 = vpop.f32.mrb[0].mxu0
      %3380 = vmatprep.mubr.bf16.mxu0 0
      %3381 = vmatmul.mubr.bf16.gmra.mrb[0].mxu0 %v834
      %v3382 = vpop.f32.mrb[0].mxu0
      %v3383 = vadd.f32 0.0, %v3382
      %v3384 = vpop.f32.mrb[0].mxu0
      %v3385 = vpop.f32.mrb[0].mxu0
      %v3386 = vadd.f32 0.0, %v3385
      %v3387 = vpop.f32.mrb[0].mxu0
      %3388 = vdwg.mxu0
      %v3389 = vadd.f32 %v3227, %v3327
      %v3390 = vadd.f32 %v3230, %v3330
      %v3391 = vadd.f32 %v3235, %v3335
      %v3392 = vadd.f32 %v3238, %v3338
      %v3393 = vadd.f32 %v3243, %v3343
      %v3394 = vadd.f32 %v3246, %v3346
      %v3395 = vadd.f32 %v3251, %v3351
      %v3396 = vadd.f32 %v3254, %v3354
      %v3397 = vadd.f32 %v3259, %v3359
      %v3398 = vadd.f32 %v3262, %v3362
      %v3399 = vadd.f32 %v3267, %v3367
      %v3400 = vadd.f32 %v3270, %v3370
      %v3401 = vadd.f32 %v3275, %v3375
      %v3402 = vadd.f32 %v3278, %v3378
      %v3403 = vadd.f32 %v3283, %v3383
      %v3404 = vadd.f32 %v3286, %v3386
      %v3406 = vsel %vm546, %v519, 0
      %3408 = vmatprep.subr.bf16.mxu0 0
      %3409 = vmatpush1.bf16.msra.mxu0 %v3406
      %3410 = vmatprep.subr.bf16.mxu0 0
      %3411 = vmatpush1.bf16.msra.mxu0 0
      %3412 = vmatprep.subr.bf16.mxu0 0
      %3413 = vmatpush1.bf16.msra.mxu0 0
      %3414 = vmatprep.subr.bf16.mxu0 0
      %3415 = vmatpush1.bf16.msra.mxu0 0
      %3416 = vmatprep.subr.bf16.mxu0 0
      %3417 = vmatpush1.bf16.msra.mxu0 0
      %3418 = vmatprep.subr.bf16.mxu0 0
      %3419 = vmatpush1.bf16.msra.mxu0 0
      %3420 = vmatprep.subr.bf16.mxu0 0
      %3421 = vmatpush1.bf16.msra.mxu0 0
      %3422 = vmatprep.subr.bf16.mxu0 0
      %3423 = vmatpush1.bf16.msra.mxu0 0
      %3424 = vmatprep.subr.bf16.mxu0 0
      %3425 = vmatpush1.bf16.msra.mxu0 0
      %3426 = vmatprep.subr.bf16.mxu0 0
      %3427 = vmatpush1.bf16.msra.mxu0 0
      %3428 = vmatprep.subr.bf16.mxu0 0
      %3429 = vmatpush1.bf16.msra.mxu0 0
      %3430 = vmatprep.subr.bf16.mxu0 0
      %3431 = vmatpush1.bf16.msra.mxu0 0
      %3432 = vmatprep.subr.bf16.mxu0 0
      %3433 = vmatpush1.bf16.msra.mxu0 0
      %3434 = vmatprep.subr.bf16.mxu0 0
      %3435 = vmatpush1.bf16.msra.mxu0 0
      %3436 = vmatprep.subr.bf16.mxu0 0
      %3437 = vmatpush1.bf16.msra.mxu0 0
      %3438 = vmatprep.subr.bf16.mxu0 0
      %3439 = vmatpush1.bf16.msra.mxu0 0
      %3440 = vmatprep.mubr.bf16.mxu0 0
      %3441 = vmatmul.mubr.bf16.gmra.mrb[0].mxu0 %v670
      %v3442 = vpop.f32.mrb[0].mxu0
      %v3443 = vadd.f32 0.0, %v3442
      %v3444 = vpop.f32.mrb[0].mxu0
      %v3445 = vpop.f32.mrb[0].mxu0
      %v3446 = vadd.f32 0.0, %v3445
      %v3447 = vpop.f32.mrb[0].mxu0
      %3448 = vmatprep.mubr.bf16.mxu0 0
      %3449 = vmatmul.mubr.bf16.gmra.mrb[0].mxu0 %v673
      %v3450 = vpop.f32.mrb[0].mxu0
      %v3451 = vadd.f32 0.0, %v3450
      %v3452 = vpop.f32.mrb[0].mxu0
      %v3453 = vpop.f32.mrb[0].mxu0
      %v3454 = vadd.f32 0.0, %v3453
      %v3455 = vpop.f32.mrb[0].mxu0
      %3456 = vmatprep.mubr.bf16.mxu0 0
      %3457 = vmatmul.mubr.bf16.gmra.mrb[0].mxu0 %v676
      %v3458 = vpop.f32.mrb[0].mxu0
      %v3459 = vadd.f32 0.0, %v3458
      %v3460 = vpop.f32.mrb[0].mxu0
      %v3461 = vpop.f32.mrb[0].mxu0
      %v3462 = vadd.f32 0.0, %v3461
      %v3463 = vpop.f32.mrb[0].mxu0
      %3464 = vmatprep.mubr.bf16.mxu0 0
      %3465 = vmatmul.mubr.bf16.gmra.mrb[0].mxu0 %v679
      %v3466 = vpop.f32.mrb[0].mxu0
      %v3467 = vadd.f32 0.0, %v3466
      %v3468 = vpop.f32.mrb[0].mxu0
      %v3469 = vpop.f32.mrb[0].mxu0
      %v3470 = vadd.f32 0.0, %v3469
      %v3471 = vpop.f32.mrb[0].mxu0
      %3472 = vmatprep.mubr.bf16.mxu0 0
      %3473 = vmatmul.mubr.bf16.gmra.mrb[0].mxu0 %v682
      %v3474 = vpop.f32.mrb[0].mxu0
      %v3475 = vadd.f32 0.0, %v3474
      %v3476 = vpop.f32.mrb[0].mxu0
      %v3477 = vpop.f32.mrb[0].mxu0
      %v3478 = vadd.f32 0.0, %v3477
      %v3479 = vpop.f32.mrb[0].mxu0
      %3480 = vmatprep.mubr.bf16.mxu0 0
      %3481 = vmatmul.mubr.bf16.gmra.mrb[0].mxu0 %v685
      %v3482 = vpop.f32.mrb[0].mxu0
      %v3483 = vadd.f32 0.0, %v3482
      %v3484 = vpop.f32.mrb[0].mxu0
      %v3485 = vpop.f32.mrb[0].mxu0
      %v3486 = vadd.f32 0.0, %v3485
      %v3487 = vpop.f32.mrb[0].mxu0
      %3488 = vmatprep.mubr.bf16.mxu0 0
      %3489 = vmatmul.mubr.bf16.gmra.mrb[0].mxu0 %v688
      %v3490 = vpop.f32.mrb[0].mxu0
      %v3491 = vadd.f32 0.0, %v3490
      %v3492 = vpop.f32.mrb[0].mxu0
      %v3493 = vpop.f32.mrb[0].mxu0
      %v3494 = vadd.f32 0.0, %v3493
      %v3495 = vpop.f32.mrb[0].mxu0
      %3496 = vmatprep.mubr.bf16.mxu0 0
      %3497 = vmatmul.mubr.bf16.gmra.mrb[0].mxu0 %v691
      %v3498 = vpop.f32.mrb[0].mxu0
      %v3499 = vadd.f32 0.0, %v3498
      %v3500 = vpop.f32.mrb[0].mxu0
      %v3501 = vpop.f32.mrb[0].mxu0
      %v3502 = vadd.f32 0.0, %v3501
      %v3503 = vpop.f32.mrb[0].mxu0
      %3504 = vdwg.mxu0
      %v3505 = vadd.f32 %v3389, %v3443
      %v3506 = vadd.f32 %v3390, %v3446
      %v3507 = vadd.f32 %v3391, %v3451
      %v3508 = vadd.f32 %v3392, %v3454
      %v3509 = vadd.f32 %v3393, %v3459
      %v3510 = vadd.f32 %v3394, %v3462
      %v3511 = vadd.f32 %v3395, %v3467
      %v3512 = vadd.f32 %v3396, %v3470
      %v3513 = vadd.f32 %v3397, %v3475
      %v3514 = vadd.f32 %v3398, %v3478
      %v3515 = vadd.f32 %v3399, %v3483
      %v3516 = vadd.f32 %v3400, %v3486
      %v3517 = vadd.f32 %v3401, %v3491
      %v3518 = vadd.f32 %v3402, %v3494
      %v3519 = vadd.f32 %v3403, %v3499
      %v3520 = vadd.f32 %v3404, %v3502
      %v3522 = vsel %vm546, %v520, 0
      %3524 = vmatprep.subr.bf16.mxu0 0
      %3525 = vmatpush1.bf16.msra.mxu0 %v3522
      %3526 = vmatprep.subr.bf16.mxu0 0
      %3527 = vmatpush1.bf16.msra.mxu0 0
      %3528 = vmatprep.subr.bf16.mxu0 0
      %3529 = vmatpush1.bf16.msra.mxu0 0
      %3530 = vmatprep.subr.bf16.mxu0 0
      %3531 = vmatpush1.bf16.msra.mxu0 0
      %3532 = vmatprep.subr.bf16.mxu0 0
      %3533 = vmatpush1.bf16.msra.mxu0 0
      %3534 = vmatprep.subr.bf16.mxu0 0
      %3535 = vmatpush1.bf16.msra.mxu0 0
      %3536 = vmatprep.subr.bf16.mxu0 0
      %3537 = vmatpush1.bf16.msra.mxu0 0
      %3538 = vmatprep.subr.bf16.mxu0 0
      %3539 = vmatpush1.bf16.msra.mxu0 0
      %3540 = vmatprep.subr.bf16.mxu0 0
      %3541 = vmatpush1.bf16.msra.mxu0 0
      %3542 = vmatprep.subr.bf16.mxu0 0
      %3543 = vmatpush1.bf16.msra.mxu0 0
      %3544 = vmatprep.subr.bf16.mxu0 0
      %3545 = vmatpush1.bf16.msra.mxu0 0
      %3546 = vmatprep.subr.bf16.mxu0 0
      %3547 = vmatpush1.bf16.msra.mxu0 0
      %3548 = vmatprep.subr.bf16.mxu0 0
      %3549 = vmatpush1.bf16.msra.mxu0 0
      %3550 = vmatprep.subr.bf16.mxu0 0
      %3551 = vmatpush1.bf16.msra.mxu0 0
      %3552 = vmatprep.subr.bf16.mxu0 0
      %3553 = vmatpush1.bf16.msra.mxu0 0
      %3554 = vmatprep.subr.bf16.mxu0 0
      %3555 = vmatpush1.bf16.msra.mxu0 0
      %3556 = vmatprep.mubr.bf16.mxu0 0
      %3557 = vmatmul.mubr.bf16.gmra.mrb[0].mxu0 %v530
      %v3558 = vpop.f32.mrb[0].mxu0
      %v3559 = vadd.f32 0.0, %v3558
      %v3560 = vpop.f32.mrb[0].mxu0
      %v3561 = vpop.f32.mrb[0].mxu0
      %v3562 = vadd.f32 0.0, %v3561
      %v3563 = vpop.f32.mrb[0].mxu0
      %3564 = vmatprep.mubr.bf16.mxu0 0
      %3565 = vmatmul.mubr.bf16.gmra.mrb[0].mxu0 %v532
      %v3566 = vpop.f32.mrb[0].mxu0
      %v3567 = vadd.f32 0.0, %v3566
      %v3568 = vpop.f32.mrb[0].mxu0
      %v3569 = vpop.f32.mrb[0].mxu0
      %v3570 = vadd.f32 0.0, %v3569
      %v3571 = vpop.f32.mrb[0].mxu0
      %3572 = vmatprep.mubr.bf16.mxu0 0
      %3573 = vmatmul.mubr.bf16.gmra.mrb[0].mxu0 %v534
      %v3574 = vpop.f32.mrb[0].mxu0
      %v3575 = vadd.f32 0.0, %v3574
      %v3576 = vpop.f32.mrb[0].mxu0
      %v3577 = vpop.f32.mrb[0].mxu0
      %v3578 = vadd.f32 0.0, %v3577
      %v3579 = vpop.f32.mrb[0].mxu0
      %3580 = vmatprep.mubr.bf16.mxu0 0
      %3581 = vmatmul.mubr.bf16.gmra.mrb[0].mxu0 %v536
      %v3582 = vpop.f32.mrb[0].mxu0
      %v3583 = vadd.f32 0.0, %v3582
      %v3584 = vpop.f32.mrb[0].mxu0
      %v3585 = vpop.f32.mrb[0].mxu0
      %v3586 = vadd.f32 0.0, %v3585
      %v3587 = vpop.f32.mrb[0].mxu0
      %3588 = vmatprep.mubr.bf16.mxu0 0
      %3589 = vmatmul.mubr.bf16.gmra.mrb[0].mxu0 %v538
      %v3590 = vpop.f32.mrb[0].mxu0
      %v3591 = vadd.f32 0.0, %v3590
      %v3592 = vpop.f32.mrb[0].mxu0
      %v3593 = vpop.f32.mrb[0].mxu0
      %v3594 = vadd.f32 0.0, %v3593
      %v3595 = vpop.f32.mrb[0].mxu0
      %3596 = vmatprep.mubr.bf16.mxu0 0
      %3597 = vmatmul.mubr.bf16.gmra.mrb[0].mxu0 %v540
      %v3598 = vpop.f32.mrb[0].mxu0
      %v3599 = vadd.f32 0.0, %v3598
      %v3600 = vpop.f32.mrb[0].mxu0
      %v3601 = vpop.f32.mrb[0].mxu0
      %v3602 = vadd.f32 0.0, %v3601
      %v3603 = vpop.f32.mrb[0].mxu0
      %3604 = vmatprep.mubr.bf16.mxu0 0
      %3605 = vmatmul.mubr.bf16.gmra.mrb[0].mxu0 %v542
      %v3606 = vpop.f32.mrb[0].mxu0
      %v3607 = vadd.f32 0.0, %v3606
      %v3608 = vpop.f32.mrb[0].mxu0
      %v3609 = vpop.f32.mrb[0].mxu0
      %v3610 = vadd.f32 0.0, %v3609
      %v3611 = vpop.f32.mrb[0].mxu0
      %3612 = vmatprep.mubr.bf16.mxu0 0
      %3613 = vmatmul.mubr.bf16.gmra.mrb[0].mxu0 %v544
      %v3614 = vpop.f32.mrb[0].mxu0
      %v3615 = vadd.f32 0.0, %v3614
      %v3616 = vpop.f32.mrb[0].mxu0
      %v3617 = vpop.f32.mrb[0].mxu0
      %v3618 = vadd.f32 0.0, %v3617
      %v3619 = vpop.f32.mrb[0].mxu0
      %3620 = vdwg.mxu0
      %v3621 = vadd.f32 %v3505, %v3559
      %v3622 = vadd.f32 %v3506, %v3562
      %v3623 = vadd.f32 %v3507, %v3567
      %v3624 = vadd.f32 %v3508, %v3570
      %v3625 = vadd.f32 %v3509, %v3575
      %v3626 = vadd.f32 %v3510, %v3578
      %v3627 = vadd.f32 %v3511, %v3583
      %v3628 = vadd.f32 %v3512, %v3586
      %v3629 = vadd.f32 %v3513, %v3591
      %v3630 = vadd.f32 %v3514, %v3594
      %v3631 = vadd.f32 %v3515, %v3599
      %v3632 = vadd.f32 %v3516, %v3602
      %v3633 = vadd.f32 %v3517, %v3607
      %v3634 = vadd.f32 %v3518, %v3610
      %v3635 = vadd.f32 %v3519, %v3615
      %v3636 = vadd.f32 %v3520, %v3618
      %v3638 = vsel %vm546, %v521, 0
      %3640 = vmatprep.subr.bf16.mxu0 0
      %3641 = vmatpush1.bf16.msra.mxu0 %v3638
      %3642 = vmatprep.subr.bf16.mxu0 0
      %3643 = vmatpush1.bf16.msra.mxu0 0
      %3644 = vmatprep.subr.bf16.mxu0 0
      %3645 = vmatpush1.bf16.msra.mxu0 0
      %3646 = vmatprep.subr.bf16.mxu0 0
      %3647 = vmatpush1.bf16.msra.mxu0 0
      %3648 = vmatprep.subr.bf16.mxu0 0
      %3649 = vmatpush1.bf16.msra.mxu0 0
      %3650 = vmatprep.subr.bf16.mxu0 0
      %3651 = vmatpush1.bf16.msra.mxu0 0
      %3652 = vmatprep.subr.bf16.mxu0 0
      %3653 = vmatpush1.bf16.msra.mxu0 0
      %3654 = vmatprep.subr.bf16.mxu0 0
      %3655 = vmatpush1.bf16.msra.mxu0 0
      %3656 = vmatprep.subr.bf16.mxu0 0
      %3657 = vmatpush1.bf16.msra.mxu0 0
      %3658 = vmatprep.subr.bf16.mxu0 0
      %3659 = vmatpush1.bf16.msra.mxu0 0
      %3660 = vmatprep.subr.bf16.mxu0 0
      %3661 = vmatpush1.bf16.msra.mxu0 0
      %3662 = vmatprep.subr.bf16.mxu0 0
      %3663 = vmatpush1.bf16.msra.mxu0 0
      %3664 = vmatprep.subr.bf16.mxu0 0
      %3665 = vmatpush1.bf16.msra.mxu0 0
      %3666 = vmatprep.subr.bf16.mxu0 0
      %3667 = vmatpush1.bf16.msra.mxu0 0
      %3668 = vmatprep.subr.bf16.mxu0 0
      %3669 = vmatpush1.bf16.msra.mxu0 0
      %3670 = vmatprep.subr.bf16.mxu0 0
      %3671 = vmatpush1.bf16.msra.mxu0 0
      %3672 = vmatprep.mubr.bf16.mxu0 0
      %3673 = vmatmul.mubr.bf16.gmra.mrb[0].mxu0 %v816
      %v3674 = vpop.f32.mrb[0].mxu0
      %v3675 = vadd.f32 0.0, %v3674
      %v3676 = vpop.f32.mrb[0].mxu0
      %v3677 = vpop.f32.mrb[0].mxu0
      %v3678 = vadd.f32 0.0, %v3677
      %v3679 = vpop.f32.mrb[0].mxu0
      %3680 = vmatprep.mubr.bf16.mxu0 0
      %3681 = vmatmul.mubr.bf16.gmra.mrb[0].mxu0 %v819
      %v3682 = vpop.f32.mrb[0].mxu0
      %v3683 = vadd.f32 0.0, %v3682
      %v3684 = vpop.f32.mrb[0].mxu0
      %v3685 = vpop.f32.mrb[0].mxu0
      %v3686 = vadd.f32 0.0, %v3685
      %v3687 = vpop.f32.mrb[0].mxu0
      %3688 = vmatprep.mubr.bf16.mxu0 0
      %3689 = vmatmul.mubr.bf16.gmra.mrb[0].mxu0 %v822
      %v3690 = vpop.f32.mrb[0].mxu0
      %v3691 = vadd.f32 0.0, %v3690
      %v3692 = vpop.f32.mrb[0].mxu0
      %v3693 = vpop.f32.mrb[0].mxu0
      %v3694 = vadd.f32 0.0, %v3693
      %v3695 = vpop.f32.mrb[0].mxu0
      %3696 = vmatprep.mubr.bf16.mxu0 0
      %3697 = vmatmul.mubr.bf16.gmra.mrb[0].mxu0 %v825
      %v3698 = vpop.f32.mrb[0].mxu0
      %v3699 = vadd.f32 0.0, %v3698
      %v3700 = vpop.f32.mrb[0].mxu0
      %v3701 = vpop.f32.mrb[0].mxu0
      %v3702 = vadd.f32 0.0, %v3701
      %v3703 = vpop.f32.mrb[0].mxu0
      %3704 = vmatprep.mubr.bf16.mxu0 0
      %3705 = vmatmul.mubr.bf16.gmra.mrb[0].mxu0 %v828
      %v3706 = vpop.f32.mrb[0].mxu0
      %v3707 = vadd.f32 0.0, %v3706
      %v3708 = vpop.f32.mrb[0].mxu0
      %v3709 = vpop.f32.mrb[0].mxu0
      %v3710 = vadd.f32 0.0, %v3709
      %v3711 = vpop.f32.mrb[0].mxu0
      %3712 = vmatprep.mubr.bf16.mxu0 0
      %3713 = vmatmul.mubr.bf16.gmra.mrb[0].mxu0 %v831
      %v3714 = vpop.f32.mrb[0].mxu0
      %v3715 = vadd.f32 0.0, %v3714
      %v3716 = vpop.f32.mrb[0].mxu0
      %v3717 = vpop.f32.mrb[0].mxu0
      %v3718 = vadd.f32 0.0, %v3717
      %v3719 = vpop.f32.mrb[0].mxu0
      %3720 = vmatprep.mubr.bf16.mxu0 0
      %3721 = vmatmul.mubr.bf16.gmra.mrb[0].mxu0 %v834
      %v3722 = vpop.f32.mrb[0].mxu0
      %v3723 = vadd.f32 0.0, %v3722
      %v3724 = vpop.f32.mrb[0].mxu0
      %v3725 = vpop.f32.mrb[0].mxu0
      %v3726 = vadd.f32 0.0, %v3725
      %v3727 = vpop.f32.mrb[0].mxu0
      %3728 = vmatprep.mubr.bf16.mxu0 0
      %3729 = vmatmul.mubr.bf16.gmra.mrb[0].mxu0 %v837
      %v3730 = vpop.f32.mrb[0].mxu0
      %v3731 = vadd.f32 0.0, %v3730
      %v3732 = vpop.f32.mrb[0].mxu0
      %v3733 = vpop.f32.mrb[0].mxu0
      %v3734 = vadd.f32 0.0, %v3733
      %v3735 = vpop.f32.mrb[0].mxu0
      %3736 = vdwg.mxu0
      %v3737 = vadd.f32 %v3621, %v3675
      %v3738 = vadd.f32 %v3622, %v3678
      %v3739 = vadd.f32 %v3623, %v3683
      %v3740 = vadd.f32 %v3624, %v3686
      %v3741 = vadd.f32 %v3625, %v3691
      %v3742 = vadd.f32 %v3626, %v3694
      %v3743 = vadd.f32 %v3627, %v3699
      %v3744 = vadd.f32 %v3628, %v3702
      %v3745 = vadd.f32 %v3629, %v3707
      %v3746 = vadd.f32 %v3630, %v3710
      %v3747 = vadd.f32 %v3631, %v3715
      %v3748 = vadd.f32 %v3632, %v3718
      %v3749 = vadd.f32 %v3633, %v3723
      %v3750 = vadd.f32 %v3634, %v3726
      %v3751 = vadd.f32 %v3635, %v3731
      %v3752 = vadd.f32 %v3636, %v3734
      %v3754 = vsel %vm546, %v522, 0
      %3756 = vmatprep.subr.bf16.mxu0 0
      %3757 = vmatpush1.bf16.msra.mxu0 %v3754
      %3758 = vmatprep.subr.bf16.mxu0 0
      %3759 = vmatpush1.bf16.msra.mxu0 0
      %3760 = vmatprep.subr.bf16.mxu0 0
      %3761 = vmatpush1.bf16.msra.mxu0 0
      %3762 = vmatprep.subr.bf16.mxu0 0
      %3763 = vmatpush1.bf16.msra.mxu0 0
      %3764 = vmatprep.subr.bf16.mxu0 0
      %3765 = vmatpush1.bf16.msra.mxu0 0
      %3766 = vmatprep.subr.bf16.mxu0 0
      %3767 = vmatpush1.bf16.msra.mxu0 0
      %3768 = vmatprep.subr.bf16.mxu0 0
      %3769 = vmatpush1.bf16.msra.mxu0 0
      %3770 = vmatprep.subr.bf16.mxu0 0
      %3771 = vmatpush1.bf16.msra.mxu0 0
      %3772 = vmatprep.subr.bf16.mxu0 0
      %3773 = vmatpush1.bf16.msra.mxu0 0
      %3774 = vmatprep.subr.bf16.mxu0 0
      %3775 = vmatpush1.bf16.msra.mxu0 0
      %3776 = vmatprep.subr.bf16.mxu0 0
      %3777 = vmatpush1.bf16.msra.mxu0 0
      %3778 = vmatprep.subr.bf16.mxu0 0
      %3779 = vmatpush1.bf16.msra.mxu0 0
      %3780 = vmatprep.subr.bf16.mxu0 0
      %3781 = vmatpush1.bf16.msra.mxu0 0
      %3782 = vmatprep.subr.bf16.mxu0 0
      %3783 = vmatpush1.bf16.msra.mxu0 0
      %3784 = vmatprep.subr.bf16.mxu0 0
      %3785 = vmatpush1.bf16.msra.mxu0 0
      %3786 = vmatprep.subr.bf16.mxu0 0
      %3787 = vmatpush1.bf16.msra.mxu0 0
      %3788 = vmatprep.mubr.bf16.mxu0 0
      %3789 = vmatmul.mubr.bf16.gmra.mrb[0].mxu0 %v673
      %v3790 = vpop.f32.mrb[0].mxu0
      %v3791 = vadd.f32 0.0, %v3790
      %v3792 = vpop.f32.mrb[0].mxu0
      %v3793 = vpop.f32.mrb[0].mxu0
      %v3794 = vadd.f32 0.0, %v3793
      %v3795 = vpop.f32.mrb[0].mxu0
      %3796 = vmatprep.mubr.bf16.mxu0 0
      %3797 = vmatmul.mubr.bf16.gmra.mrb[0].mxu0 %v676
      %v3798 = vpop.f32.mrb[0].mxu0
      %v3799 = vadd.f32 0.0, %v3798
      %v3800 = vpop.f32.mrb[0].mxu0
      %v3801 = vpop.f32.mrb[0].mxu0
      %v3802 = vadd.f32 0.0, %v3801
      %v3803 = vpop.f32.mrb[0].mxu0
      %3804 = vmatprep.mubr.bf16.mxu0 0
      %3805 = vmatmul.mubr.bf16.gmra.mrb[0].mxu0 %v679
      %v3806 = vpop.f32.mrb[0].mxu0
      %v3807 = vadd.f32 0.0, %v3806
      %v3808 = vpop.f32.mrb[0].mxu0
      %v3809 = vpop.f32.mrb[0].mxu0
      %v3810 = vadd.f32 0.0, %v3809
      %v3811 = vpop.f32.mrb[0].mxu0
      %3812 = vmatprep.mubr.bf16.mxu0 0
      %3813 = vmatmul.mubr.bf16.gmra.mrb[0].mxu0 %v682
      %v3814 = vpop.f32.mrb[0].mxu0
      %v3815 = vadd.f32 0.0, %v3814
      %v3816 = vpop.f32.mrb[0].mxu0
      %v3817 = vpop.f32.mrb[0].mxu0
      %v3818 = vadd.f32 0.0, %v3817
      %v3819 = vpop.f32.mrb[0].mxu0
      %3820 = vmatprep.mubr.bf16.mxu0 0
      %3821 = vmatmul.mubr.bf16.gmra.mrb[0].mxu0 %v685
      %v3822 = vpop.f32.mrb[0].mxu0
      %v3823 = vadd.f32 0.0, %v3822
      %v3824 = vpop.f32.mrb[0].mxu0
      %v3825 = vpop.f32.mrb[0].mxu0
      %v3826 = vadd.f32 0.0, %v3825
      %v3827 = vpop.f32.mrb[0].mxu0
      %3828 = vmatprep.mubr.bf16.mxu0 0
      %3829 = vmatmul.mubr.bf16.gmra.mrb[0].mxu0 %v688
      %v3830 = vpop.f32.mrb[0].mxu0
      %v3831 = vadd.f32 0.0, %v3830
      %v3832 = vpop.f32.mrb[0].mxu0
      %v3833 = vpop.f32.mrb[0].mxu0
      %v3834 = vadd.f32 0.0, %v3833
      %v3835 = vpop.f32.mrb[0].mxu0
      %3836 = vmatprep.mubr.bf16.mxu0 0
      %3837 = vmatmul.mubr.bf16.gmra.mrb[0].mxu0 %v691
      %v3838 = vpop.f32.mrb[0].mxu0
      %v3839 = vadd.f32 0.0, %v3838
      %v3840 = vpop.f32.mrb[0].mxu0
      %v3841 = vpop.f32.mrb[0].mxu0
      %v3842 = vadd.f32 0.0, %v3841
      %v3843 = vpop.f32.mrb[0].mxu0
      %3844 = vmatprep.mubr.bf16.mxu0 0
      %3845 = vmatmul.mubr.bf16.gmra.mrb[0].mxu0 %v976
      %v3846 = vpop.f32.mrb[0].mxu0
      %v3847 = vadd.f32 0.0, %v3846
      %v3848 = vpop.f32.mrb[0].mxu0
      %v3849 = vpop.f32.mrb[0].mxu0
      %v3850 = vadd.f32 0.0, %v3849
      %v3851 = vpop.f32.mrb[0].mxu0
      %3852 = vdwg.mxu0
      %v3853 = vadd.f32 %v3737, %v3791
      %v3854 = vadd.f32 %v3738, %v3794
      %v3855 = vadd.f32 %v3739, %v3799
      %v3856 = vadd.f32 %v3740, %v3802
      %v3857 = vadd.f32 %v3741, %v3807
      %v3858 = vadd.f32 %v3742, %v3810
      %v3859 = vadd.f32 %v3743, %v3815
      %v3860 = vadd.f32 %v3744, %v3818
      %v3861 = vadd.f32 %v3745, %v3823
      %v3862 = vadd.f32 %v3746, %v3826
      %v3863 = vadd.f32 %v3747, %v3831
      %v3864 = vadd.f32 %v3748, %v3834
      %v3865 = vadd.f32 %v3749, %v3839
      %v3866 = vadd.f32 %v3750, %v3842
      %v3867 = vadd.f32 %v3751, %v3847
      %v3868 = vadd.f32 %v3752, %v3850
      %v3870 = vsel %vm546, %v523, 0
      %3872 = vmatprep.subr.bf16.mxu0 0
      %3873 = vmatpush1.bf16.msra.mxu0 %v3870
      %3874 = vmatprep.subr.bf16.mxu0 0
      %3875 = vmatpush1.bf16.msra.mxu0 0
      %3876 = vmatprep.subr.bf16.mxu0 0
      %3877 = vmatpush1.bf16.msra.mxu0 0
      %3878 = vmatprep.subr.bf16.mxu0 0
      %3879 = vmatpush1.bf16.msra.mxu0 0
      %3880 = vmatprep.subr.bf16.mxu0 0
      %3881 = vmatpush1.bf16.msra.mxu0 0
      %3882 = vmatprep.subr.bf16.mxu0 0
      %3883 = vmatpush1.bf16.msra.mxu0 0
      %3884 = vmatprep.subr.bf16.mxu0 0
      %3885 = vmatpush1.bf16.msra.mxu0 0
      %3886 = vmatprep.subr.bf16.mxu0 0
      %3887 = vmatpush1.bf16.msra.mxu0 0
      %3888 = vmatprep.subr.bf16.mxu0 0
      %3889 = vmatpush1.bf16.msra.mxu0 0
      %3890 = vmatprep.subr.bf16.mxu0 0
      %3891 = vmatpush1.bf16.msra.mxu0 0
      %3892 = vmatprep.subr.bf16.mxu0 0
      %3893 = vmatpush1.bf16.msra.mxu0 0
      %3894 = vmatprep.subr.bf16.mxu0 0
      %3895 = vmatpush1.bf16.msra.mxu0 0
      %3896 = vmatprep.subr.bf16.mxu0 0
      %3897 = vmatpush1.bf16.msra.mxu0 0
      %3898 = vmatprep.subr.bf16.mxu0 0
      %3899 = vmatpush1.bf16.msra.mxu0 0
      %3900 = vmatprep.subr.bf16.mxu0 0
      %3901 = vmatpush1.bf16.msra.mxu0 0
      %3902 = vmatprep.subr.bf16.mxu0 0
      %3903 = vmatpush1.bf16.msra.mxu0 0
      %3904 = vmatprep.mubr.bf16.mxu0 0
      %3905 = vmatmul.mubr.bf16.gmra.mrb[0].mxu0 %v532
      %v3906 = vpop.f32.mrb[0].mxu0
      %v3907 = vadd.f32 0.0, %v3906
      %v3908 = vpop.f32.mrb[0].mxu0
      %v3909 = vpop.f32.mrb[0].mxu0
      %v3910 = vadd.f32 0.0, %v3909
      %v3911 = vpop.f32.mrb[0].mxu0
      %3912 = vmatprep.mubr.bf16.mxu0 0
      %3913 = vmatmul.mubr.bf16.gmra.mrb[0].mxu0 %v534
      %v3914 = vpop.f32.mrb[0].mxu0
      %v3915 = vadd.f32 0.0, %v3914
      %v3916 = vpop.f32.mrb[0].mxu0
      %v3917 = vpop.f32.mrb[0].mxu0
      %v3918 = vadd.f32 0.0, %v3917
      %v3919 = vpop.f32.mrb[0].mxu0
      %3920 = vmatprep.mubr.bf16.mxu0 0
      %3921 = vmatmul.mubr.bf16.gmra.mrb[0].mxu0 %v536
      %v3922 = vpop.f32.mrb[0].mxu0
      %v3923 = vadd.f32 0.0, %v3922
      %v3924 = vpop.f32.mrb[0].mxu0
      %v3925 = vpop.f32.mrb[0].mxu0
      %v3926 = vadd.f32 0.0, %v3925
      %v3927 = vpop.f32.mrb[0].mxu0
      %3928 = vmatprep.mubr.bf16.mxu0 0
      %3929 = vmatmul.mubr.bf16.gmra.mrb[0].mxu0 %v538
      %v3930 = vpop.f32.mrb[0].mxu0
      %v3931 = vadd.f32 0.0, %v3930
      %v3932 = vpop.f32.mrb[0].mxu0
      %v3933 = vpop.f32.mrb[0].mxu0
      %v3934 = vadd.f32 0.0, %v3933
      %v3935 = vpop.f32.mrb[0].mxu0
      %3936 = vmatprep.mubr.bf16.mxu0 0
      %3937 = vmatmul.mubr.bf16.gmra.mrb[0].mxu0 %v540
      %v3938 = vpop.f32.mrb[0].mxu0
      %v3939 = vadd.f32 0.0, %v3938
      %v3940 = vpop.f32.mrb[0].mxu0
      %v3941 = vpop.f32.mrb[0].mxu0
      %v3942 = vadd.f32 0.0, %v3941
      %v3943 = vpop.f32.mrb[0].mxu0
      %3944 = vmatprep.mubr.bf16.mxu0 0
      %3945 = vmatmul.mubr.bf16.gmra.mrb[0].mxu0 %v542
      %v3946 = vpop.f32.mrb[0].mxu0
      %v3947 = vadd.f32 0.0, %v3946
      %v3948 = vpop.f32.mrb[0].mxu0
      %v3949 = vpop.f32.mrb[0].mxu0
      %v3950 = vadd.f32 0.0, %v3949
      %v3951 = vpop.f32.mrb[0].mxu0
      %3952 = vmatprep.mubr.bf16.mxu0 0
      %3953 = vmatmul.mubr.bf16.gmra.mrb[0].mxu0 %v544
      %v3954 = vpop.f32.mrb[0].mxu0
      %v3955 = vadd.f32 0.0, %v3954
      %v3956 = vpop.f32.mrb[0].mxu0
      %v3957 = vpop.f32.mrb[0].mxu0
      %v3958 = vadd.f32 0.0, %v3957
      %v3959 = vpop.f32.mrb[0].mxu0
      %3960 = vmatprep.mubr.bf16.mxu0 0
      %3961 = vmatmul.mubr.bf16.gmra.mrb[0].mxu0 %v1114
      %v3962 = vpop.f32.mrb[0].mxu0
      %v3963 = vadd.f32 0.0, %v3962
      %v3964 = vpop.f32.mrb[0].mxu0
      %v3965 = vpop.f32.mrb[0].mxu0
      %v3966 = vadd.f32 0.0, %v3965
      %v3967 = vpop.f32.mrb[0].mxu0
      %3968 = vdwg.mxu0
      %v3969 = vadd.f32 %v3853, %v3907
      %v3970 = vadd.f32 %v3854, %v3910
      %v3971 = vadd.f32 %v3855, %v3915
      %v3972 = vadd.f32 %v3856, %v3918
      %v3973 = vadd.f32 %v3857, %v3923
      %v3974 = vadd.f32 %v3858, %v3926
      %v3975 = vadd.f32 %v3859, %v3931
      %v3976 = vadd.f32 %v3860, %v3934
      %v3977 = vadd.f32 %v3861, %v3939
      %v3978 = vadd.f32 %v3862, %v3942
      %v3979 = vadd.f32 %v3863, %v3947
      %v3980 = vadd.f32 %v3864, %v3950
      %v3981 = vadd.f32 %v3865, %v3955
      %v3982 = vadd.f32 %v3866, %v3958
      %v3983 = vadd.f32 %v3867, %v3963
      %v3984 = vadd.f32 %v3868, %v3966
      %v3986 = vsel %vm546, %v524, 0
      %3988 = vmatprep.subr.bf16.mxu0 0
      %3989 = vmatpush1.bf16.msra.mxu0 %v3986
      %3990 = vmatprep.subr.bf16.mxu0 0
      %3991 = vmatpush1.bf16.msra.mxu0 0
      %3992 = vmatprep.subr.bf16.mxu0 0
      %3993 = vmatpush1.bf16.msra.mxu0 0
      %3994 = vmatprep.subr.bf16.mxu0 0
      %3995 = vmatpush1.bf16.msra.mxu0 0
      %3996 = vmatprep.subr.bf16.mxu0 0
      %3997 = vmatpush1.bf16.msra.mxu0 0
      %3998 = vmatprep.subr.bf16.mxu0 0
      %3999 = vmatpush1.bf16.msra.mxu0 0
      %4000 = vmatprep.subr.bf16.mxu0 0
      %4001 = vmatpush1.bf16.msra.mxu0 0
      %4002 = vmatprep.subr.bf16.mxu0 0
      %4003 = vmatpush1.bf16.msra.mxu0 0
      %4004 = vmatprep.subr.bf16.mxu0 0
      %4005 = vmatpush1.bf16.msra.mxu0 0
      %4006 = vmatprep.subr.bf16.mxu0 0
      %4007 = vmatpush1.bf16.msra.mxu0 0
      %4008 = vmatprep.subr.bf16.mxu0 0
      %4009 = vmatpush1.bf16.msra.mxu0 0
      %4010 = vmatprep.subr.bf16.mxu0 0
      %4011 = vmatpush1.bf16.msra.mxu0 0
      %4012 = vmatprep.subr.bf16.mxu0 0
      %4013 = vmatpush1.bf16.msra.mxu0 0
      %4014 = vmatprep.subr.bf16.mxu0 0
      %4015 = vmatpush1.bf16.msra.mxu0 0
      %4016 = vmatprep.subr.bf16.mxu0 0
      %4017 = vmatpush1.bf16.msra.mxu0 0
      %4018 = vmatprep.subr.bf16.mxu0 0
      %4019 = vmatpush1.bf16.msra.mxu0 0
      %4020 = vmatprep.mubr.bf16.mxu0 0
      %4021 = vmatmul.mubr.bf16.gmra.mrb[0].mxu0 %v819
      %v4022 = vpop.f32.mrb[0].mxu0
      %v4023 = vadd.f32 0.0, %v4022
      %v4024 = vpop.f32.mrb[0].mxu0
      %v4025 = vpop.f32.mrb[0].mxu0
      %v4026 = vadd.f32 0.0, %v4025
      %v4027 = vpop.f32.mrb[0].mxu0
      %4028 = vmatprep.mubr.bf16.mxu0 0
      %4029 = vmatmul.mubr.bf16.gmra.mrb[0].mxu0 %v822
      %v4030 = vpop.f32.mrb[0].mxu0
      %v4031 = vadd.f32 0.0, %v4030
      %v4032 = vpop.f32.mrb[0].mxu0
      %v4033 = vpop.f32.mrb[0].mxu0
      %v4034 = vadd.f32 0.0, %v4033
      %v4035 = vpop.f32.mrb[0].mxu0
      %4036 = vmatprep.mubr.bf16.mxu0 0
      %4037 = vmatmul.mubr.bf16.gmra.mrb[0].mxu0 %v825
      %v4038 = vpop.f32.mrb[0].mxu0
      %v4039 = vadd.f32 0.0, %v4038
      %v4040 = vpop.f32.mrb[0].mxu0
      %v4041 = vpop.f32.mrb[0].mxu0
      %v4042 = vadd.f32 0.0, %v4041
      %v4043 = vpop.f32.mrb[0].mxu0
      %4044 = vmatprep.mubr.bf16.mxu0 0
      %4045 = vmatmul.mubr.bf16.gmra.mrb[0].mxu0 %v828
      %v4046 = vpop.f32.mrb[0].mxu0
      %v4047 = vadd.f32 0.0, %v4046
      %v4048 = vpop.f32.mrb[0].mxu0
      %v4049 = vpop.f32.mrb[0].mxu0
      %v4050 = vadd.f32 0.0, %v4049
      %v4051 = vpop.f32.mrb[0].mxu0
      %4052 = vmatprep.mubr.bf16.mxu0 0
      %4053 = vmatmul.mubr.bf16.gmra.mrb[0].mxu0 %v831
      %v4054 = vpop.f32.mrb[0].mxu0
      %v4055 = vadd.f32 0.0, %v4054
      %v4056 = vpop.f32.mrb[0].mxu0
      %v4057 = vpop.f32.mrb[0].mxu0
      %v4058 = vadd.f32 0.0, %v4057
      %v4059 = vpop.f32.mrb[0].mxu0
      %4060 = vmatprep.mubr.bf16.mxu0 0
      %4061 = vmatmul.mubr.bf16.gmra.mrb[0].mxu0 %v834
      %v4062 = vpop.f32.mrb[0].mxu0
      %v4063 = vadd.f32 0.0, %v4062
      %v4064 = vpop.f32.mrb[0].mxu0
      %v4065 = vpop.f32.mrb[0].mxu0
      %v4066 = vadd.f32 0.0, %v4065
      %v4067 = vpop.f32.mrb[0].mxu0
      %4068 = vmatprep.mubr.bf16.mxu0 0
      %4069 = vmatmul.mubr.bf16.gmra.mrb[0].mxu0 %v837
      %v4070 = vpop.f32.mrb[0].mxu0
      %v4071 = vadd.f32 0.0, %v4070
      %v4072 = vpop.f32.mrb[0].mxu0
      %v4073 = vpop.f32.mrb[0].mxu0
      %v4074 = vadd.f32 0.0, %v4073
      %v4075 = vpop.f32.mrb[0].mxu0
      %4076 = vmatprep.mubr.bf16.mxu0 0
      %4077 = vmatmul.mubr.bf16.gmra.mrb[0].mxu0 %v1253
      %v4078 = vpop.f32.mrb[0].mxu0
      %v4079 = vadd.f32 0.0, %v4078
      %v4080 = vpop.f32.mrb[0].mxu0
      %v4081 = vpop.f32.mrb[0].mxu0
      %v4082 = vadd.f32 0.0, %v4081
      %v4083 = vpop.f32.mrb[0].mxu0
      %4084 = vdwg.mxu0
      %v4085 = vadd.f32 %v3969, %v4023
      %v4086 = vadd.f32 %v3970, %v4026
      %v4087 = vadd.f32 %v3971, %v4031
      %v4088 = vadd.f32 %v3972, %v4034
      %v4089 = vadd.f32 %v3973, %v4039
      %v4090 = vadd.f32 %v3974, %v4042
      %v4091 = vadd.f32 %v3975, %v4047
      %v4092 = vadd.f32 %v3976, %v4050
      %v4093 = vadd.f32 %v3977, %v4055
      %v4094 = vadd.f32 %v3978, %v4058
      %v4095 = vadd.f32 %v3979, %v4063
      %v4096 = vadd.f32 %v3980, %v4066
      %v4097 = vadd.f32 %v3981, %v4071
      %v4098 = vadd.f32 %v3982, %v4074
      %v4099 = vadd.f32 %v3983, %v4079
      %v4100 = vadd.f32 %v3984, %v4082
      %4117 = vrot.lane.b32.xlu0 %v4085, 4
      %v4118 = vpop.permute.xlu0 %4117
      %4119 = vrot.lane.b32.xlu0 %v4086, 4
      %v4120 = vpop.permute.xlu0 %4119
      %4121 = vrot.lane.b32.xlu0 %v4087, 4
      %v4122 = vpop.permute.xlu0 %4121
      %4123 = vrot.lane.b32.xlu0 %v4088, 4
      %v4124 = vpop.permute.xlu0 %4123
      %4125 = vrot.lane.b32.xlu0 %v4089, 4
      %v4126 = vpop.permute.xlu0 %4125
      %4127 = vrot.lane.b32.xlu0 %v4090, 4
      %v4128 = vpop.permute.xlu0 %4127
      %4129 = vrot.lane.b32.xlu0 %v4091, 4
      %v4130 = vpop.permute.xlu0 %4129
      %4131 = vrot.lane.b32.xlu0 %v4092, 4
      %v4132 = vpop.permute.xlu0 %4131
      %4133 = vrot.lane.b32.xlu0 %v4093, 4
      %v4134 = vpop.permute.xlu0 %4133
      %4135 = vrot.lane.b32.xlu0 %v4094, 4
      %v4136 = vpop.permute.xlu0 %4135
      %4137 = vrot.lane.b32.xlu0 %v4095, 4
      %v4138 = vpop.permute.xlu0 %4137
      %4139 = vrot.lane.b32.xlu0 %v4096, 4
      %v4140 = vpop.permute.xlu0 %4139
      %4141 = vrot.lane.b32.xlu0 %v4097, 4
      %v4142 = vpop.permute.xlu0 %4141
      %4143 = vrot.lane.b32.xlu0 %v4098, 4
      %v4144 = vpop.permute.xlu0 %4143
      %4145 = vrot.lane.b32.xlu0 %v4099, 4
      %v4146 = vpop.permute.xlu0 %4145
      %4147 = vrot.lane.b32.xlu0 %v4100, 4
      %v4148 = vpop.permute.xlu0 %4147
      %v4165 = vsel %vm525, %v3073, %v4118
      %v4166 = vsel %vm525, %v3074, %v4120
      %v4167 = vsel %vm525, %v3075, %v4122
      %v4168 = vsel %vm525, %v3076, %v4124
      %v4169 = vsel %vm525, %v3077, %v4126
      %v4170 = vsel %vm525, %v3078, %v4128
      %v4171 = vsel %vm525, %v3079, %v4130
      %v4172 = vsel %vm525, %v3080, %v4132
      %v4173 = vsel %vm525, %v3081, %v4134
      %v4174 = vsel %vm525, %v3082, %v4136
      %v4175 = vsel %vm525, %v3083, %v4138
      %v4176 = vsel %vm525, %v3084, %v4140
      %v4177 = vsel %vm525, %v3085, %v4142
      %v4178 = vsel %vm525, %v3086, %v4144
      %v4179 = vsel %vm525, %v3087, %v4146
      %v4180 = vsel %vm525, %v3088, %v4148
      %4181 = vst.msk [vmem:[%s221] sm:$0xff] %vm1995, %v4165
      %4182 = vst.msk [vmem:[%s221 + $0x8] sm:$0xff] %vm1995, %v4166
      %4183 = vst.msk [vmem:[%s221 + $0x10] sm:$0xff] %vm1995, %v4167
      %4184 = vst.msk [vmem:[%s221 + $0x18] sm:$0xff] %vm1995, %v4168
      %4185 = vst.msk [vmem:[%s221 + $0x20] sm:$0xff] %vm1995, %v4169
      %4186 = vst.msk [vmem:[%s221 + $0x28] sm:$0xff] %vm1995, %v4170
      %4187 = vst.msk [vmem:[%s221 + $0x30] sm:$0xff] %vm1995, %v4171
      %4188 = vst.msk [vmem:[%s221 + $0x38] sm:$0xff] %vm1995, %v4172
      %4189 = vst.msk [vmem:[%s221 + $0x40] sm:$0xff] %vm1995, %v4173
      %4190 = vst.msk [vmem:[%s221 + $0x48] sm:$0xff] %vm1995, %v4174
      %4191 = vst.msk [vmem:[%s221 + $0x50] sm:$0xff] %vm1995, %v4175
      %4192 = vst.msk [vmem:[%s221 + $0x58] sm:$0xff] %vm1995, %v4176
      %4193 = vst.msk [vmem:[%s221 + $0x60] sm:$0xff] %vm1995, %v4177
      %4194 = vst.msk [vmem:[%s221 + $0x68] sm:$0xff] %vm1995, %v4178
      %4195 = vst.msk [vmem:[%s221 + $0x70] sm:$0xff] %vm1995, %v4179
      %4196 = vst.msk [vmem:[%s221 + $0x78] sm:$0xff] %vm1995, %v4180
      %s4197 = smul.u32 8, %s20
      %p4198 = scmp.lt.s32.totalorder %s19, 1
      %s4199 = scalar_select %p4198, %s19, 1
      %p4200 = scmp.lt.s32.totalorder %s4197, 15
      %s4201 = scalar_select %p4200, %s4197, 15
      %s4202 = smul.addr %s4201, 2
      %s4203 = smul.addr %s4199, 32
      %s4204 = sadd.s32 %s4202, %s4203
      %s4205 = smul.addr %s4204, 8
      %s4206 = scalar_lea.vmem %s4, %s4205
      // Predicated region
      $region37: #{inception_block.1} parent=35 // pred_check
        %p4207 = pneg %p136
      $region38: #{inception_block.1} parent=35 // pred_check_branch
        %4209 = sbr.rel (%p4207) target = $region40
      $region39: #{inception_block.1} parent=35 // pred_region
        %s4210 = smul.u32 8, %s20
      $region40: #{inception_block.1} parent=35 // pred_fallthru
        _
    $region36: #{inception_block.1} parent=5 // pred_fallthru
      _
    %p4211 = scmp.le.s32.totalorder 2, %s10
    // Predicated region
    $region41: #{inception_block.1} parent=5 // pred_check
      %p4212 = pneg %p4211
    $region42: #{inception_block.1} parent=5 // pred_check_branch
      %4214 = sbr.rel (%p4212) target = $region44
    $region43: #{inception_block.1} parent=5 // pred_region
      %s4215 = ssub.s32 %s10, 2
      // Predicated region
      $region45: #{inception_block.1} parent=43 // pred_check
        %p4216 = pneg %p142
      $region46: #{inception_block.1} parent=43 // pred_check_branch
        %4218 = sbr.rel (%p4216) target = $region48
      $region47: #{inception_block.1} parent=43 // pred_region
        %s4219 = smul.u32 8, %s22
        %p4220 = scmp.lt.s32.totalorder %s21, 1
        %s4221 = scalar_select %p4220, %s21, 1
        %p4222 = scmp.lt.s32.totalorder %s4219, 15
        %s4223 = scalar_select %p4222, %s4219, 15
        %s4224 = smul.addr %s4223, 2
        %s4225 = smul.addr %s4221, 32
        %s4226 = sadd.s32 %s4224, %s4225
        %s4227 = smul.addr %s4226, 8
        %s4228 = scalar_lea.vmem %s4, %s4227
      $region48: #{inception_block.1} parent=43 // pred_fallthru
        _
    $region44: #{inception_block.1} parent=5 // pred_fallthru
      _
  $region6: #{inception_block.1} parent=0 // loop_footer
    %s14 = sadd.s32 1, %s10
  $region7: #{inception_block.1} parent=0 // loop_footer_branch
    %9 = sbr.rel target = $region3
  $region8: #{inception_block.1} parent=0 // loop_exit
    _

</llo_original>
